<compile_context>
chip_gen: v5e
topology: v5e:2x2
jax: 0.10.0
libtpu: 0.0.40
codegen_flags: <defaults>
</compile_context>

<pallas_src>
import jax
import jax.numpy as jnp
from jax.experimental import pallas as pl
from jax.experimental.pallas import tpu as pltpu

HIDDEN = 768      # bert-base hidden size (fc1 input)
FC1_DIM = 512     # nn.Linear(768, 512)
NCLASS = 2        # nn.Linear(512, 2)
NCLASS_PAD = 128  # lane-dense padded logits width (multiple of 128 lanes)


def bert_arch_kernel(pooled_ref, wp_ref, bp_ref, w1_ref, b1_ref,
                     w2_ref, b2_ref, out_ref):
    """Per-batch-tile kernel: pooler + fc1 + relu + fc2 + log_softmax.

    pooled_ref : (TILE_B, 768) bf16   surrogate encoder output tile
    wp_ref     : (768, 768) bf16, bp_ref: (1, 768) f32   BERT pooler dense
    w1_ref     : (768, 512) bf16, b1_ref: (1, 512) f32   fc1
    w2_ref     : (512, 128) bf16, b2_ref: (1, 128) f32   fc2 (lane-padded)
    out_ref    : (TILE_B, 128) f32    log-probs (cols >= 2 are padding)
    """
    pooled = pooled_ref[...]

    # surrogate BERT pooler: cls_hs = tanh(pooled @ Wp + bp)  (f32 accumulate)
    cls_hs = jnp.tanh(
        jnp.dot(pooled, wp_ref[...], preferred_element_type=jnp.float32)
        + bp_ref[...])

    # x = relu(fc1(cls_hs))
    h = jnp.dot(cls_hs.astype(jnp.bfloat16), w1_ref[...],
                preferred_element_type=jnp.float32) + b1_ref[...]
    h = jnp.maximum(h, 0.0)

    # dropout(p=0.1): identity at inference time.
    # TODO(synk): training-mode dropout via pltpu.prng_seed/prng_random_bits
    # not applied.

    # logits = fc2(x) over a full 512x128 MXU tile (lane-dense)
    logits = jnp.dot(h.astype(jnp.bfloat16), w2_ref[...],
                     preferred_element_type=jnp.float32) + b2_ref[...]

    # mask padded lanes so they do not leak into the softmax denominator
    col = jax.lax.broadcasted_iota(jnp.int32, logits.shape, 1)
    logits = jnp.where(col < NCLASS, logits, -1e30)

    # log_softmax over dim=1 (numerically stable)
    m = jnp.max(logits, axis=1, keepdims=True)
    z = logits - m
    lse = jnp.log(jnp.sum(jnp.exp(z), axis=1, keepdims=True))
    out_ref[...] = z - lse


def bert_arch_forward(sent_id, mask, params, *, tile_b=128):
    """Mirrors BERT_Arch.forward(sent_id, mask, return_dict=False)."""
    # --- glue (plain JAX): surrogate encoder = embedding + masked mean pool ---
    # TODO(synk): pretrained BERT encoder replaced by this surrogate; the
    # pooler dense + tanh is computed inside the Pallas kernel.
    emb = params["embedding"][sent_id]                        # (B, S, 768)
    maskf = mask.astype(jnp.float32)[..., None]               # (B, S, 1)
    pooled = (emb * maskf).sum(axis=1) / jnp.maximum(maskf.sum(axis=1), 1.0)

    B = sent_id.shape[0]
    num_tiles = pl.cdiv(B, tile_b)
    b_pad = num_tiles * tile_b
    pooled = jnp.pad(pooled, ((0, b_pad - B), (0, 0))).astype(jnp.bfloat16)

    # activation tiles march over the batch; weights stay resident in VMEM
    act_spec = pl.BlockSpec((tile_b, HIDDEN), lambda i: (i, 0))
    out_spec = pl.BlockSpec((tile_b, NCLASS_PAD), lambda i: (i, 0))

    def resident(shape):
        return pl.BlockSpec(shape, lambda i: (0, 0))

    grid_spec = pltpu.PrefetchScalarGridSpec(
        num_scalar_prefetch=0,
        grid=(num_tiles,),
        in_specs=[
            act_spec,
            resident((HIDDEN, HIDDEN)),        # wp (bf16)
            resident((1, HIDDEN)),             # bp (f32)
            resident((HIDDEN, FC1_DIM)),       # w1 (bf16)
            resident((1, FC1_DIM)),            # b1 (f32)
            resident((FC1_DIM, NCLASS_PAD)),   # w2 padded (bf16)
            resident((1, NCLASS_PAD)),         # b2 padded (f32)
        ],
        out_specs=out_spec,
    )

    out = pl.pallas_call(
        bert_arch_kernel,
        out_shape=jax.ShapeDtypeStruct((b_pad, NCLASS_PAD), jnp.float32),
        grid_spec=grid_spec,
        compiler_params=pltpu.CompilerParams(
            dimension_semantics=("parallel",),
            vmem_limit_bytes=32 * 1024 * 1024),
    )(pooled,
      params["wp"], params["bp"],
      params["w1"], params["b1"],
      params["w2"], params["b2"])

    return out[:B, :NCLASS]


def bert_arch_reference(sent_id, mask, params):
    """Pure-JAX reference (same bf16 rounding points, f32 math)."""
    emb = params["embedding"][sent_id]
    maskf = mask.astype(jnp.float32)[..., None]
    pooled = (emb * maskf).sum(axis=1) / jnp.maximum(maskf.sum(axis=1), 1.0)
    pooled = pooled.astype(jnp.bfloat16).astype(jnp.float32)
    cls_hs = jnp.tanh(pooled @ params["wp"].astype(jnp.float32) + params["bp"])
    h = (cls_hs.astype(jnp.bfloat16).astype(jnp.float32)
         @ params["w1"].astype(jnp.float32) + params["b1"])
    h = jnp.maximum(h, 0.0)
    logits = (h.astype(jnp.bfloat16).astype(jnp.float32)
              @ params["w2"].astype(jnp.float32)[:, :NCLASS]
              + params["b2"][:, :NCLASS])
    return jax.nn.log_softmax(logits, axis=1)


def init_params(key, vocab_size):
    ks = jax.random.split(key, 7)
    scale = 0.02
    w2 = scale * jax.random.normal(ks[5], (FC1_DIM, NCLASS), jnp.float32)
    b2 = scale * jax.random.normal(ks[6], (1, NCLASS), jnp.float32)
    return {
        "embedding": scale * jax.random.normal(ks[0], (vocab_size, HIDDEN),
                                               jnp.float32),
        "wp": (scale * jax.random.normal(ks[1], (HIDDEN, HIDDEN), jnp.float32)
               ).astype(jnp.bfloat16),
        "bp": scale * jax.random.normal(ks[2], (1, HIDDEN), jnp.float32),
        "w1": (scale * jax.random.normal(ks[3], (HIDDEN, FC1_DIM), jnp.float32)
               ).astype(jnp.bfloat16),
        "b1": scale * jax.random.normal(ks[4], (1, FC1_DIM), jnp.float32),
        # fc2 padded from 2 -> 128 output columns (lane-dense logits)
        "w2": jnp.pad(w2, ((0, 0), (0, NCLASS_PAD - NCLASS))
                      ).astype(jnp.bfloat16),
        "b2": jnp.pad(b2, ((0, 0), (0, NCLASS_PAD - NCLASS))),
    }


if __name__ == "__main__":
    key = jax.random.PRNGKey(0)
    k_param, k_ids = jax.random.split(key)

    B, S, VOCAB = 8, 16, 128
    params = init_params(k_param, VOCAB)

    sent_id = jax.random.randint(k_ids, (B, S), 0, VOCAB, dtype=jnp.int32)
    # attention mask: first 12 tokens valid, rest padding
    mask = jnp.broadcast_to(jnp.arange(S)[None, :] < 12, (B, S)).astype(jnp.int32)

    log_probs = bert_arch_forward(sent_id, mask, params)
    jax.block_until_ready(log_probs)

    assert log_probs.shape == (B, NCLASS)
    # rows of exp(log_probs) must sum to ~1
    assert bool(jnp.all(jnp.abs(jnp.exp(log_probs).sum(axis=1) - 1.0) < 1e-5))
    # match the pure-JAX reference
    ref = bert_arch_reference(sent_id, mask, params)
    assert bool(jnp.all(jnp.abs(log_probs - ref) < 5e-2))
    print("KERNEL_OK")
</pallas_src>

<mosaic_0001>
module attributes {stable_mosaic.version = 11 : i64} {
  func.func @bert_arch_kernel(%arg0: i32, %arg1: memref<128x768xbf16, #tpu.memory_space<vmem>>, %arg2: memref<768x768xbf16, #tpu.memory_space<vmem>>, %arg3: memref<1x768xf32, #tpu.memory_space<vmem>>, %arg4: memref<768x512xbf16, #tpu.memory_space<vmem>>, %arg5: memref<1x512xf32, #tpu.memory_space<vmem>>, %arg6: memref<512x128xbf16, #tpu.memory_space<vmem>>, %arg7: memref<1x128xf32, #tpu.memory_space<vmem>>, %arg8: memref<128x128xf32, #tpu.memory_space<vmem>>) attributes {dimension_semantics = [#tpu.dimension_semantics<parallel>], iteration_bounds = array<i64: 1>, scalar_prefetch = 0 : i64, scratch_operands = 0 : i64, tpu.core_type = #tpu.core_type<tc>, window_params = [{transform_indices = @transform_0, window_bounds = array<i64: 128, 768>}, {pipeline_mode = #tpu.pipeline_mode<synchronous>, transform_indices = @transform_1, window_bounds = array<i64: 768, 768>}, {pipeline_mode = #tpu.pipeline_mode<synchronous>, transform_indices = @transform_2, window_bounds = array<i64: 1, 768>}, {pipeline_mode = #tpu.pipeline_mode<synchronous>, transform_indices = @transform_3, window_bounds = array<i64: 768, 512>}, {pipeline_mode = #tpu.pipeline_mode<synchronous>, transform_indices = @transform_4, window_bounds = array<i64: 1, 512>}, {pipeline_mode = #tpu.pipeline_mode<synchronous>, transform_indices = @transform_5, window_bounds = array<i64: 512, 128>}, {pipeline_mode = #tpu.pipeline_mode<synchronous>, transform_indices = @transform_6, window_bounds = array<i64: 1, 128>}, {transform_indices = @transform_7, window_bounds = array<i64: 128, 128>}]} {
    %c0 = arith.constant 0 : index
    %c0_0 = arith.constant 0 : index
    %0 = vector.load %arg1[%c0, %c0_0] : memref<128x768xbf16, #tpu.memory_space<vmem>>, vector<128x768xbf16>
    %c0_1 = arith.constant 0 : index
    %c0_2 = arith.constant 0 : index
    %1 = vector.load %arg2[%c0_1, %c0_2] : memref<768x768xbf16, #tpu.memory_space<vmem>>, vector<768x768xbf16>
    %cst = arith.constant dense<0.000000e+00> : vector<128x768xf32>
    %2 = tpu.matmul %0, %1, %cst {dimension_numbers = #tpu.dot_dimension_numbers<[1], [0], [0], [1], [0, 0, 1, 1], [], []>} : vector<128x768xbf16>, vector<768x768xbf16>, vector<128x768xf32> -> vector<128x768xf32>
    %c0_3 = arith.constant 0 : index
    %c0_4 = arith.constant 0 : index
    %3 = vector.load %arg3[%c0_3, %c0_4] : memref<1x768xf32, #tpu.memory_space<vmem>>, vector<1x768xf32>
    %4 = vector.broadcast %3 : vector<1x768xf32> to vector<128x768xf32>
    %5 = arith.addf %2, %4 : vector<128x768xf32>
    %6 = math.tanh %5 : vector<128x768xf32>
    %7 = arith.truncf %6 : vector<128x768xf32> to vector<128x768xbf16>
    %c0_5 = arith.constant 0 : index
    %c0_6 = arith.constant 0 : index
    %8 = vector.load %arg4[%c0_5, %c0_6] : memref<768x512xbf16, #tpu.memory_space<vmem>>, vector<768x512xbf16>
    %cst_7 = arith.constant dense<0.000000e+00> : vector<128x512xf32>
    %9 = tpu.matmul %7, %8, %cst_7 {dimension_numbers = #tpu.dot_dimension_numbers<[1], [0], [0], [1], [0, 0, 1, 1], [], []>} : vector<128x768xbf16>, vector<768x512xbf16>, vector<128x512xf32> -> vector<128x512xf32>
    %c0_8 = arith.constant 0 : index
    %c0_9 = arith.constant 0 : index
    %10 = vector.load %arg5[%c0_8, %c0_9] : memref<1x512xf32, #tpu.memory_space<vmem>>, vector<1x512xf32>
    %11 = vector.broadcast %10 : vector<1x512xf32> to vector<128x512xf32>
    %12 = arith.addf %9, %11 : vector<128x512xf32>
    %cst_10 = arith.constant 0.000000e+00 : f32
    %13 = vector.broadcast %cst_10 : f32 to vector<128x512xf32>
    %14 = arith.maximumf %12, %13 : vector<128x512xf32>
    %15 = arith.truncf %14 : vector<128x512xf32> to vector<128x512xbf16>
    %c0_11 = arith.constant 0 : index
    %c0_12 = arith.constant 0 : index
    %16 = vector.load %arg6[%c0_11, %c0_12] : memref<512x128xbf16, #tpu.memory_space<vmem>>, vector<512x128xbf16>
    %cst_13 = arith.constant dense<0.000000e+00> : vector<128x128xf32>
    %17 = tpu.matmul %15, %16, %cst_13 {dimension_numbers = #tpu.dot_dimension_numbers<[1], [0], [0], [1], [0, 0, 1, 1], [], []>} : vector<128x512xbf16>, vector<512x128xbf16>, vector<128x128xf32> -> vector<128x128xf32>
    %c0_14 = arith.constant 0 : index
    %c0_15 = arith.constant 0 : index
    %18 = vector.load %arg7[%c0_14, %c0_15] : memref<1x128xf32, #tpu.memory_space<vmem>>, vector<1x128xf32>
    %19 = vector.broadcast %18 : vector<1x128xf32> to vector<128x128xf32>
    %20 = arith.addf %17, %19 : vector<128x128xf32>
    %21 = tpu.iota {dimensions = array<i32: 1>} : vector<128x128xi32>
    %c2_i32 = arith.constant 2 : i32
    %22 = vector.broadcast %c2_i32 : i32 to vector<128x128xi32>
    %23 = arith.cmpi slt, %21, %22 : vector<128x128xi32>
    %cst_16 = arith.constant -1.000000e+30 : f32
    %24 = vector.broadcast %cst_16 : f32 to vector<128x128xf32>
    %25 = arith.select %23, %20, %24 : vector<128x128xi1>, vector<128x128xf32>
    %cst_17 = arith.constant dense<0xFF800000> : vector<128xf32>
    %26 = vector.multi_reduction <maximumf>, %25, %cst_17 [1] : vector<128x128xf32> to vector<128xf32>
    %27 = vector.shape_cast %26 : vector<128xf32> to vector<128x1xf32>
    %28 = vector.broadcast %27 : vector<128x1xf32> to vector<128x128xf32>
    %29 = arith.subf %25, %28 : vector<128x128xf32>
    %30 = math.exp %29 : vector<128x128xf32>
    %cst_18 = arith.constant dense<0.000000e+00> : vector<128xf32>
    %31 = vector.multi_reduction <add>, %30, %cst_18 [1] : vector<128x128xf32> to vector<128xf32>
    %32 = vector.shape_cast %31 : vector<128xf32> to vector<128x1xf32>
    %33 = math.log %32 : vector<128x1xf32>
    %34 = vector.broadcast %33 : vector<128x1xf32> to vector<128x128xf32>
    %35 = arith.subf %29, %34 : vector<128x128xf32>
    %c0_19 = arith.constant 0 : index
    %c0_20 = arith.constant 0 : index
    %36 = vector.load %arg8[%c0_19, %c0_20] : memref<128x128xf32, #tpu.memory_space<vmem>>, vector<128x128xf32>
    tpu.vector_store %arg8[%c0_19, %c0_20], %35 {strides = array<i32>} : memref<128x128xf32, #tpu.memory_space<vmem>>, vector<128x128xf32>,
    return
  }
  func.func @transform_0(%arg0: i32) -> (i32, i32) {
    %c0_i32 = arith.constant 0 : i32
    %c0_i32_0 = arith.constant 0 : i32
    return %arg0, %c0_i32 : i32, i32
  }
  func.func @transform_1(%arg0: i32) -> (i32, i32) {
    %c0_i32 = arith.constant 0 : i32
    %c0_i32_0 = arith.constant 0 : i32
    %c0_i32_1 = arith.constant 0 : i32
    return %c0_i32, %c0_i32_0 : i32, i32
  }
  func.func @transform_2(%arg0: i32) -> (i32, i32) {
    %c0_i32 = arith.constant 0 : i32
    %c0_i32_0 = arith.constant 0 : i32
    %c0_i32_1 = arith.constant 0 : i32
    return %c0_i32, %c0_i32_0 : i32, i32
  }
  func.func @transform_3(%arg0: i32) -> (i32, i32) {
    %c0_i32 = arith.constant 0 : i32
    %c0_i32_0 = arith.constant 0 : i32
    %c0_i32_1 = arith.constant 0 : i32
    return %c0_i32, %c0_i32_0 : i32, i32
  }
  func.func @transform_4(%arg0: i32) -> (i32, i32) {
    %c0_i32 = arith.constant 0 : i32
    %c0_i32_0 = arith.constant 0 : i32
    %c0_i32_1 = arith.constant 0 : i32
    return %c0_i32, %c0_i32_0 : i32, i32
  }
  func.func @transform_5(%arg0: i32) -> (i32, i32) {
    %c0_i32 = arith.constant 0 : i32
    %c0_i32_0 = arith.constant 0 : i32
    %c0_i32_1 = arith.constant 0 : i32
    return %c0_i32, %c0_i32_0 : i32, i32
  }
  func.func @transform_6(%arg0: i32) -> (i32, i32) {
    %c0_i32 = arith.constant 0 : i32
    %c0_i32_0 = arith.constant 0 : i32
    %c0_i32_1 = arith.constant 0 : i32
    return %c0_i32, %c0_i32_0 : i32, i32
  }
  func.func @transform_7(%arg0: i32) -> (i32, i32) {
    %c0_i32 = arith.constant 0 : i32
    %c0_i32_0 = arith.constant 0 : i32
    return %arg0, %c0_i32 : i32, i32
  }
}

</mosaic_0001>

<llo_original>
// kernel: tpu_custom_call.1
$region0: #{tpu_custom_call.1}
  #allocation0 [shape = 'u32[]', space=smem, size = 0x4, offset = 0x4, fixed_abs, tag = 'smem constant byte address 0x4 - core index']
  #allocation1 [shape = 'u32[72,128]{1,0:T(1,128)}', space=vmem, size = 0x9000, scoped, tag = 'internal scratch']
  %s0 = inlined_call_operand.hbm [shape: bf16[128,768], index: 0, kind: input, shape index: {}]
  %s1 = inlined_call_operand.hbm [shape: bf16[768,768], index: 1, kind: input, shape index: {}]
  %s2 = inlined_call_operand.hbm [shape: f32[1,768], index: 2, kind: input, shape index: {}]
  %s3 = inlined_call_operand.hbm [shape: bf16[768,512], index: 3, kind: input, shape index: {}]
  %s4 = inlined_call_operand.hbm [shape: f32[1,512], index: 4, kind: input, shape index: {}]
  %s5 = inlined_call_operand.hbm [shape: bf16[512,128], index: 5, kind: input, shape index: {}]
  %s6 = inlined_call_operand.hbm [shape: f32[1,128], index: 6, kind: input, shape index: {}]
  %s7 = inlined_call_operand.hbm [shape: f32[128,128], index: 7, kind: output, shape index: {}]
  %s8 = sld [smem:[#allocation0]]
  $region66: #{tpu_custom_call.1} parent=0
    _
  %s10 = ssub.s32 1, %s8
  %s11 = scalar_select 0, %s10, %s8
  $region1: #{tpu_custom_call.1} parent=0
    #allocation2 [shape = 'u8[196608]{0}', space=vmem, size = 0x30000, scoped, tag = 'input window, operand 0, single buffered']
    #allocation3 [shape = 's32[1]{0}', space=sflag, size = 0x4, scoped, tag = 'scoped memory for tpu_custom_call.1']
    #allocation4 [shape = 's32[1]{0}', space=sflag, size = 0x4, scoped, tag = 'scoped memory for tpu_custom_call.1']
    #allocation5 [shape = 'u8[1179648]{0}', space=vmem, size = 0x120000, scoped, tag = 'input window, operand 1, single buffered']
    #allocation6 [shape = 's32[1]{0}', space=sflag, size = 0x4, scoped, tag = 'scoped memory for tpu_custom_call.1']
    #allocation7 [shape = 'u8[3072]{0}', space=vmem, size = 0xc00, scoped, tag = 'input window, operand 2, single buffered']
    #allocation8 [shape = 'u8[786432]{0}', space=vmem, size = 0xc0000, scoped, tag = 'input window, operand 3, single buffered']
    #allocation9 [shape = 's32[1]{0}', space=sflag, size = 0x4, scoped, tag = 'scoped memory for tpu_custom_call.1']
    #allocation10 [shape = 'u8[2048]{0}', space=vmem, size = 0x800, scoped, tag = 'input window, operand 4, single buffered']
    #allocation11 [shape = 'u8[131072]{0}', space=vmem, size = 0x20000, scoped, tag = 'input window, operand 5, single buffered']
    #allocation12 [shape = 's32[1]{0}', space=sflag, size = 0x4, scoped, tag = 'scoped memory for tpu_custom_call.1']
    #allocation13 [shape = 'u8[512]{0}', space=vmem, size = 0x400, scoped, tag = 'input window, operand 6, single buffered']
    #allocation14 [shape = 'u8[65536]{0}', space=vmem, size = 0x10000, scoped, tag = 'output window, operand 0, single buffered']
    %12 = vsyncpa [#allocation3], 0
    %13 = vsyncpa [#allocation6], 0
    %14 = vsyncpa [#allocation9], 0
    %15 = vsyncpa [#allocation12], 0
    %16 = vsyncpa [#allocation4], 0
    // Predicated region
    $region2: #{tpu_custom_call.1} parent=1 // pred_check
      _
    $region3: #{tpu_custom_call.1} parent=1 // pred_check_branch
      %18 = sbr.rel (0) target = $region5
    $region4: #{tpu_custom_call.1} parent=1 // pred_region
      %20 = vsyncadd [#allocation3], 0
      %s21 = sshll.u32 %s0, 4
      %s22 = int_to_ptr.hbm [resolvable:$true] %s21
      %s23 = sshll.u32 [#allocation2], 4
      %s24 = int_to_ptr.vmem [resolvable:$true] %s23
      %29 = dma.hbm_to_vmem [thread:$0]  %s22, 6144, %s24, [#allocation3], 384, 384, 24
    $region5: #{tpu_custom_call.1} parent=1 // pred_fallthru
      _
    // Predicated region
    $region6: #{tpu_custom_call.1} parent=1 // pred_check
      _
    $region7: #{tpu_custom_call.1} parent=1 // pred_check_branch
      %31 = sbr.rel (0) target = $region9
    $region8: #{tpu_custom_call.1} parent=1 // pred_region
      %33 = vsyncadd [#allocation6], 0
      %s34 = sshll.u32 %s1, 4
      %s35 = int_to_ptr.hbm [resolvable:$true] %s34
      %s36 = sshll.u32 [#allocation5], 4
      %s37 = int_to_ptr.vmem [resolvable:$true] %s36
      %42 = dma.hbm_to_vmem [thread:$0]  %s35, 36864, %s37, [#allocation6], 384, 384, 24
    $region9: #{tpu_custom_call.1} parent=1 // pred_fallthru
      _
    // Predicated region
    $region10: #{tpu_custom_call.1} parent=1 // pred_check
      _
    $region11: #{tpu_custom_call.1} parent=1 // pred_check_branch
      %44 = sbr.rel (0) target = $region13
    $region12: #{tpu_custom_call.1} parent=1 // pred_region
      %46 = vsyncadd [#allocation6], 0
      %s48 = sshll.u32 %s2, 4
      %s49 = int_to_ptr.hbm [resolvable:$true] %s48
      %s50 = sshll.u32 [#allocation7], 4
      %s51 = int_to_ptr.vmem [resolvable:$true] %s50
      %53 = dma.hbm_to_vmem [thread:$0]  %s49, 96, %s51, [#allocation6]
    $region13: #{tpu_custom_call.1} parent=1 // pred_fallthru
      _
    // Predicated region
    $region14: #{tpu_custom_call.1} parent=1 // pred_check
      _
    $region15: #{tpu_custom_call.1} parent=1 // pred_check_branch
      %55 = sbr.rel (0) target = $region17
    $region16: #{tpu_custom_call.1} parent=1 // pred_region
      %57 = vsyncadd [#allocation9], 0
      %s58 = sshll.u32 %s3, 4
      %s59 = int_to_ptr.hbm [resolvable:$true] %s58
      %s60 = sshll.u32 [#allocation8], 4
      %s61 = int_to_ptr.vmem [resolvable:$true] %s60
      %66 = dma.hbm_to_vmem [thread:$0]  %s59, 24576, %s61, [#allocation9], 256, 256, 16
    $region17: #{tpu_custom_call.1} parent=1 // pred_fallthru
      _
    // Predicated region
    $region18: #{tpu_custom_call.1} parent=1 // pred_check
      _
    $region19: #{tpu_custom_call.1} parent=1 // pred_check_branch
      %68 = sbr.rel (0) target = $region21
    $region20: #{tpu_custom_call.1} parent=1 // pred_region
      %70 = vsyncadd [#allocation9], 0
      %s72 = sshll.u32 %s4, 4
      %s73 = int_to_ptr.hbm [resolvable:$true] %s72
      %s74 = sshll.u32 [#allocation10], 4
      %s75 = int_to_ptr.vmem [resolvable:$true] %s74
      %77 = dma.hbm_to_vmem [thread:$0]  %s73, 64, %s75, [#allocation9]
    $region21: #{tpu_custom_call.1} parent=1 // pred_fallthru
      _
    // Predicated region
    $region22: #{tpu_custom_call.1} parent=1 // pred_check
      _
    $region23: #{tpu_custom_call.1} parent=1 // pred_check_branch
      %79 = sbr.rel (0) target = $region25
    $region24: #{tpu_custom_call.1} parent=1 // pred_region
      %81 = vsyncadd [#allocation12], 0
      %s82 = sshll.u32 %s5, 4
      %s83 = int_to_ptr.hbm [resolvable:$true] %s82
      %s84 = sshll.u32 [#allocation11], 4
      %s85 = int_to_ptr.vmem [resolvable:$true] %s84
      %90 = dma.hbm_to_vmem [thread:$0]  %s83, 4096, %s85, [#allocation12], 64, 64, 4
    $region25: #{tpu_custom_call.1} parent=1 // pred_fallthru
      _
    // Predicated region
    $region26: #{tpu_custom_call.1} parent=1 // pred_check
      _
    $region27: #{tpu_custom_call.1} parent=1 // pred_check_branch
      %92 = sbr.rel (0) target = $region29
    $region28: #{tpu_custom_call.1} parent=1 // pred_region
      %94 = vsyncadd [#allocation12], 0
      %s96 = sshll.u32 %s6, 4
      %s97 = int_to_ptr.hbm [resolvable:$true] %s96
      %s98 = sshll.u32 [#allocation13], 4
      %s99 = int_to_ptr.vmem [resolvable:$true] %s98
      %101 = dma.hbm_to_vmem [thread:$0]  %s97, 16, %s99, [#allocation12]
    $region29: #{tpu_custom_call.1} parent=1 // pred_fallthru
      _
    // Predicated region
    $region30: #{tpu_custom_call.1} parent=1 // pred_check
      _
    $region31: #{tpu_custom_call.1} parent=1 // pred_check_branch
      %103 = sbr.rel (0) target = $region33
    $region32: #{tpu_custom_call.1} parent=1 // pred_region
      %105 = dma.done [#allocation3], 6144
    $region33: #{tpu_custom_call.1} parent=1 // pred_fallthru
      _
    // Predicated region
    $region34: #{tpu_custom_call.1} parent=1 // pred_check
      _
    $region35: #{tpu_custom_call.1} parent=1 // pred_check_branch
      %107 = sbr.rel (0) target = $region37
    $region36: #{tpu_custom_call.1} parent=1 // pred_region
      %109 = dma.done [#allocation6], 36864
    $region37: #{tpu_custom_call.1} parent=1 // pred_fallthru
      _
    // Predicated region
    $region38: #{tpu_custom_call.1} parent=1 // pred_check
      _
    $region39: #{tpu_custom_call.1} parent=1 // pred_check_branch
      %111 = sbr.rel (0) target = $region41
    $region40: #{tpu_custom_call.1} parent=1 // pred_region
      %113 = dma.done [#allocation6], 96
    $region41: #{tpu_custom_call.1} parent=1 // pred_fallthru
      _
    // Predicated region
    $region42: #{tpu_custom_call.1} parent=1 // pred_check
      _
    $region43: #{tpu_custom_call.1} parent=1 // pred_check_branch
      %115 = sbr.rel (0) target = $region45
    $region44: #{tpu_custom_call.1} parent=1 // pred_region
      %117 = dma.done [#allocation9], 24576
    $region45: #{tpu_custom_call.1} parent=1 // pred_fallthru
      _
    // Predicated region
    $region46: #{tpu_custom_call.1} parent=1 // pred_check
      _
    $region47: #{tpu_custom_call.1} parent=1 // pred_check_branch
      %119 = sbr.rel (0) target = $region49
    $region48: #{tpu_custom_call.1} parent=1 // pred_region
      %121 = dma.done [#allocation9], 64
    $region49: #{tpu_custom_call.1} parent=1 // pred_fallthru
      _
    // Predicated region
    $region50: #{tpu_custom_call.1} parent=1 // pred_check
      _
    $region51: #{tpu_custom_call.1} parent=1 // pred_check_branch
      %123 = sbr.rel (0) target = $region53
    $region52: #{tpu_custom_call.1} parent=1 // pred_region
      %125 = dma.done [#allocation12], 4096
    $region53: #{tpu_custom_call.1} parent=1 // pred_fallthru
      _
    // Predicated region
    $region54: #{tpu_custom_call.1} parent=1 // pred_check
      _
    $region55: #{tpu_custom_call.1} parent=1 // pred_check_branch
      %127 = sbr.rel (0) target = $region57
    $region56: #{tpu_custom_call.1} parent=1 // pred_region
      %129 = dma.done [#allocation12], 16
    $region57: #{tpu_custom_call.1} parent=1 // pred_fallthru
      _
    %v130 = vld [vmem:[#allocation2] sm:$0xff]
    %v131 = vld [vmem:[#allocation2 + $0x8] sm:$0xff]
    %v132 = vld [vmem:[#allocation2 + $0x10] sm:$0xff]
    %v133 = vld [vmem:[#allocation2 + $0x18] sm:$0xff]
    %v134 = vld [vmem:[#allocation2 + $0x20] sm:$0xff]
    %v135 = vld [vmem:[#allocation2 + $0x28] sm:$0xff]
    %v136 = vld [vmem:[#allocation2 + $0x30] sm:$0xff]
    %v137 = vld [vmem:[#allocation2 + $0x38] sm:$0xff]
    %v138 = vld [vmem:[#allocation2 + $0x40] sm:$0xff]
    %v139 = vld [vmem:[#allocation2 + $0x48] sm:$0xff]
    %v140 = vld [vmem:[#allocation2 + $0x50] sm:$0xff]
    %v141 = vld [vmem:[#allocation2 + $0x58] sm:$0xff]
    %v142 = vld [vmem:[#allocation2 + $0x60] sm:$0xff]
    %v143 = vld [vmem:[#allocation2 + $0x68] sm:$0xff]
    %v144 = vld [vmem:[#allocation2 + $0x70] sm:$0xff]
    %v145 = vld [vmem:[#allocation2 + $0x78] sm:$0xff]
    %v146 = vld [vmem:[#allocation2 + $0x80] sm:$0xff]
    %v147 = vld [vmem:[#allocation2 + $0x88] sm:$0xff]
    %v148 = vld [vmem:[#allocation2 + $0x90] sm:$0xff]
    %v149 = vld [vmem:[#allocation2 + $0x98] sm:$0xff]
    %v150 = vld [vmem:[#allocation2 + $0xa0] sm:$0xff]
    %v151 = vld [vmem:[#allocation2 + $0xa8] sm:$0xff]
    %v152 = vld [vmem:[#allocation2 + $0xb0] sm:$0xff]
    %v153 = vld [vmem:[#allocation2 + $0xb8] sm:$0xff]
    %v154 = vld [vmem:[#allocation2 + $0xc0] sm:$0xff]
    %v155 = vld [vmem:[#allocation2 + $0xc8] sm:$0xff]
    %v156 = vld [vmem:[#allocation2 + $0xd0] sm:$0xff]
    %v157 = vld [vmem:[#allocation2 + $0xd8] sm:$0xff]
    %v158 = vld [vmem:[#allocation2 + $0xe0] sm:$0xff]
    %v159 = vld [vmem:[#allocation2 + $0xe8] sm:$0xff]
    %v160 = vld [vmem:[#allocation2 + $0xf0] sm:$0xff]
    %v161 = vld [vmem:[#allocation2 + $0xf8] sm:$0xff]
    %v162 = vld [vmem:[#allocation2 + $0x100] sm:$0xff]
    %v163 = vld [vmem:[#allocation2 + $0x108] sm:$0xff]
    %v164 = vld [vmem:[#allocation2 + $0x110] sm:$0xff]
    %v165 = vld [vmem:[#allocation2 + $0x118] sm:$0xff]
    %v166 = vld [vmem:[#allocation2 + $0x120] sm:$0xff]
    %v167 = vld [vmem:[#allocation2 + $0x128] sm:$0xff]
    %v168 = vld [vmem:[#allocation2 + $0x130] sm:$0xff]
    %v169 = vld [vmem:[#allocation2 + $0x138] sm:$0xff]
    %v170 = vld [vmem:[#allocation2 + $0x140] sm:$0xff]
    %v171 = vld [vmem:[#allocation2 + $0x148] sm:$0xff]
    %v172 = vld [vmem:[#allocation2 + $0x150] sm:$0xff]
    %v173 = vld [vmem:[#allocation2 + $0x158] sm:$0xff]
    %v174 = vld [vmem:[#allocation2 + $0x160] sm:$0xff]
    %v175 = vld [vmem:[#allocation2 + $0x168] sm:$0xff]
    %v176 = vld [vmem:[#allocation2 + $0x170] sm:$0xff]
    %v177 = vld [vmem:[#allocation2 + $0x178] sm:$0xff]
    %v178 = vld [vmem:[#allocation5] sm:$0xff]
    %v179 = vld [vmem:[#allocation5 + $0x8] sm:$0xff]
    %v180 = vld [vmem:[#allocation5 + $0x10] sm:$0xff]
    %v181 = vld [vmem:[#allocation5 + $0x18] sm:$0xff]
    %v182 = vld [vmem:[#allocation5 + $0x20] sm:$0xff]
    %v183 = vld [vmem:[#allocation5 + $0x28] sm:$0xff]
    %v184 = vld [vmem:[#allocation5 + $0x30] sm:$0xff]
    %v185 = vld [vmem:[#allocation5 + $0x38] sm:$0xff]
    %v186 = vld [vmem:[#allocation5 + $0x40] sm:$0xff]
    %v187 = vld [vmem:[#allocation5 + $0x48] sm:$0xff]
    %v188 = vld [vmem:[#allocation5 + $0x50] sm:$0xff]
    %v189 = vld [vmem:[#allocation5 + $0x58] sm:$0xff]
    %v190 = vld [vmem:[#allocation5 + $0x60] sm:$0xff]
    %v191 = vld [vmem:[#allocation5 + $0x68] sm:$0xff]
    %v192 = vld [vmem:[#allocation5 + $0x70] sm:$0xff]
    %v193 = vld [vmem:[#allocation5 + $0x78] sm:$0xff]
    %v194 = vld [vmem:[#allocation5 + $0x80] sm:$0xff]
    %v195 = vld [vmem:[#allocation5 + $0x88] sm:$0xff]
    %v196 = vld [vmem:[#allocation5 + $0x90] sm:$0xff]
    %v197 = vld [vmem:[#allocation5 + $0x98] sm:$0xff]
    %v198 = vld [vmem:[#allocation5 + $0xa0] sm:$0xff]
    %v199 = vld [vmem:[#allocation5 + $0xa8] sm:$0xff]
    %v200 = vld [vmem:[#allocation5 + $0xb0] sm:$0xff]
    %v201 = vld [vmem:[#allocation5 + $0xb8] sm:$0xff]
    %v202 = vld [vmem:[#allocation5 + $0xc0] sm:$0xff]
    %v203 = vld [vmem:[#allocation5 + $0xc8] sm:$0xff]
    %v204 = vld [vmem:[#allocation5 + $0xd0] sm:$0xff]
    %v205 = vld [vmem:[#allocation5 + $0xd8] sm:$0xff]
    %v206 = vld [vmem:[#allocation5 + $0xe0] sm:$0xff]
    %v207 = vld [vmem:[#allocation5 + $0xe8] sm:$0xff]
    %v208 = vld [vmem:[#allocation5 + $0xf0] sm:$0xff]
    %v209 = vld [vmem:[#allocation5 + $0xf8] sm:$0xff]
    %v210 = vld [vmem:[#allocation5 + $0x100] sm:$0xff]
    %v211 = vld [vmem:[#allocation5 + $0x108] sm:$0xff]
    %v212 = vld [vmem:[#allocation5 + $0x110] sm:$0xff]
    %v213 = vld [vmem:[#allocation5 + $0x118] sm:$0xff]
    %v214 = vld [vmem:[#allocation5 + $0x120] sm:$0xff]
    %v215 = vld [vmem:[#allocation5 + $0x128] sm:$0xff]
    %v216 = vld [vmem:[#allocation5 + $0x130] sm:$0xff]
    %v217 = vld [vmem:[#allocation5 + $0x138] sm:$0xff]
    %v218 = vld [vmem:[#allocation5 + $0x140] sm:$0xff]
    %v219 = vld [vmem:[#allocation5 + $0x148] sm:$0xff]
    %v220 = vld [vmem:[#allocation5 + $0x150] sm:$0xff]
    %v221 = vld [vmem:[#allocation5 + $0x158] sm:$0xff]
    %v222 = vld [vmem:[#allocation5 + $0x160] sm:$0xff]
    %v223 = vld [vmem:[#allocation5 + $0x168] sm:$0xff]
    %v224 = vld [vmem:[#allocation5 + $0x170] sm:$0xff]
    %v225 = vld [vmem:[#allocation5 + $0x178] sm:$0xff]
    %v226 = vld [vmem:[#allocation5 + $0x180] sm:$0xff]
    %v227 = vld [vmem:[#allocation5 + $0x188] sm:$0xff]
    %v228 = vld [vmem:[#allocation5 + $0x190] sm:$0xff]
    %v229 = vld [vmem:[#allocation5 + $0x198] sm:$0xff]
    %v230 = vld [vmem:[#allocation5 + $0x1a0] sm:$0xff]
    %v231 = vld [vmem:[#allocation5 + $0x1a8] sm:$0xff]
    %v232 = vld [vmem:[#allocation5 + $0x1b0] sm:$0xff]
    %v233 = vld [vmem:[#allocation5 + $0x1b8] sm:$0xff]
    %v234 = vld [vmem:[#allocation5 + $0x1c0] sm:$0xff]
    %v235 = vld [vmem:[#allocation5 + $0x1c8] sm:$0xff]
    %v236 = vld [vmem:[#allocation5 + $0x1d0] sm:$0xff]
    %v237 = vld [vmem:[#allocation5 + $0x1d8] sm:$0xff]
    %v238 = vld [vmem:[#allocation5 + $0x1e0] sm:$0xff]
    %v239 = vld [vmem:[#allocation5 + $0x1e8] sm:$0xff]
    %v240 = vld [vmem:[#allocation5 + $0x1f0] sm:$0xff]
    %v241 = vld [vmem:[#allocation5 + $0x1f8] sm:$0xff]
    %v242 = vld [vmem:[#allocation5 + $0x200] sm:$0xff]
    %v243 = vld [vmem:[#allocation5 + $0x208] sm:$0xff]
    %v244 = vld [vmem:[#allocation5 + $0x210] sm:$0xff]
    %v245 = vld [vmem:[#allocation5 + $0x218] sm:$0xff]
    %v246 = vld [vmem:[#allocation5 + $0x220] sm:$0xff]
    %v247 = vld [vmem:[#allocation5 + $0x228] sm:$0xff]
    %v248 = vld [vmem:[#allocation5 + $0x230] sm:$0xff]
    %v249 = vld [vmem:[#allocation5 + $0x238] sm:$0xff]
    %v250 = vld [vmem:[#allocation5 + $0x240] sm:$0xff]
    %v251 = vld [vmem:[#allocation5 + $0x248] sm:$0xff]
    %v252 = vld [vmem:[#allocation5 + $0x250] sm:$0xff]
    %v253 = vld [vmem:[#allocation5 + $0x258] sm:$0xff]
    %v254 = vld [vmem:[#allocation5 + $0x260] sm:$0xff]
    %v255 = vld [vmem:[#allocation5 + $0x268] sm:$0xff]
    %v256 = vld [vmem:[#allocation5 + $0x270] sm:$0xff]
    %v257 = vld [vmem:[#allocation5 + $0x278] sm:$0xff]
    %v258 = vld [vmem:[#allocation5 + $0x280] sm:$0xff]
    %v259 = vld [vmem:[#allocation5 + $0x288] sm:$0xff]
    %v260 = vld [vmem:[#allocation5 + $0x290] sm:$0xff]
    %v261 = vld [vmem:[#allocation5 + $0x298] sm:$0xff]
    %v262 = vld [vmem:[#allocation5 + $0x2a0] sm:$0xff]
    %v263 = vld [vmem:[#allocation5 + $0x2a8] sm:$0xff]
    %v264 = vld [vmem:[#allocation5 + $0x2b0] sm:$0xff]
    %v265 = vld [vmem:[#allocation5 + $0x2b8] sm:$0xff]
    %v266 = vld [vmem:[#allocation5 + $0x2c0] sm:$0xff]
    %v267 = vld [vmem:[#allocation5 + $0x2c8] sm:$0xff]
    %v268 = vld [vmem:[#allocation5 + $0x2d0] sm:$0xff]
    %v269 = vld [vmem:[#allocation5 + $0x2d8] sm:$0xff]
    %v270 = vld [vmem:[#allocation5 + $0x2e0] sm:$0xff]
    %v271 = vld [vmem:[#allocation5 + $0x2e8] sm:$0xff]
    %v272 = vld [vmem:[#allocation5 + $0x2f0] sm:$0xff]
    %v273 = vld [vmem:[#allocation5 + $0x2f8] sm:$0xff]
    %v274 = vld [vmem:[#allocation5 + $0x300] sm:$0xff]
    %v275 = vld [vmem:[#allocation5 + $0x308] sm:$0xff]
    %v276 = vld [vmem:[#allocation5 + $0x310] sm:$0xff]
    %v277 = vld [vmem:[#allocation5 + $0x318] sm:$0xff]
    %v278 = vld [vmem:[#allocation5 + $0x320] sm:$0xff]
    %v279 = vld [vmem:[#allocation5 + $0x328] sm:$0xff]
    %v280 = vld [vmem:[#allocation5 + $0x330] sm:$0xff]
    %v281 = vld [vmem:[#allocation5 + $0x338] sm:$0xff]
    %v282 = vld [vmem:[#allocation5 + $0x340] sm:$0xff]
    %v283 = vld [vmem:[#allocation5 + $0x348] sm:$0xff]
    %v284 = vld [vmem:[#allocation5 + $0x350] sm:$0xff]
    %v285 = vld [vmem:[#allocation5 + $0x358] sm:$0xff]
    %v286 = vld [vmem:[#allocation5 + $0x360] sm:$0xff]
    %v287 = vld [vmem:[#allocation5 + $0x368] sm:$0xff]
    %v288 = vld [vmem:[#allocation5 + $0x370] sm:$0xff]
    %v289 = vld [vmem:[#allocation5 + $0x378] sm:$0xff]
    %v290 = vld [vmem:[#allocation5 + $0x380] sm:$0xff]
    %v291 = vld [vmem:[#allocation5 + $0x388] sm:$0xff]
    %v292 = vld [vmem:[#allocation5 + $0x390] sm:$0xff]
    %v293 = vld [vmem:[#allocation5 + $0x398] sm:$0xff]
    %v294 = vld [vmem:[#allocation5 + $0x3a0] sm:$0xff]
    %v295 = vld [vmem:[#allocation5 + $0x3a8] sm:$0xff]
    %v296 = vld [vmem:[#allocation5 + $0x3b0] sm:$0xff]
    %v297 = vld [vmem:[#allocation5 + $0x3b8] sm:$0xff]
    %v298 = vld [vmem:[#allocation5 + $0x3c0] sm:$0xff]
    %v299 = vld [vmem:[#allocation5 + $0x3c8] sm:$0xff]
    %v300 = vld [vmem:[#allocation5 + $0x3d0] sm:$0xff]
    %v301 = vld [vmem:[#allocation5 + $0x3d8] sm:$0xff]
    %v302 = vld [vmem:[#allocation5 + $0x3e0] sm:$0xff]
    %v303 = vld [vmem:[#allocation5 + $0x3e8] sm:$0xff]
    %v304 = vld [vmem:[#allocation5 + $0x3f0] sm:$0xff]
    %v305 = vld [vmem:[#allocation5 + $0x3f8] sm:$0xff]
    %v306 = vld [vmem:[#allocation5 + $0x400] sm:$0xff]
    %v307 = vld [vmem:[#allocation5 + $0x408] sm:$0xff]
    %v308 = vld [vmem:[#allocation5 + $0x410] sm:$0xff]
    %v309 = vld [vmem:[#allocation5 + $0x418] sm:$0xff]
    %v310 = vld [vmem:[#allocation5 + $0x420] sm:$0xff]
    %v311 = vld [vmem:[#allocation5 + $0x428] sm:$0xff]
    %v312 = vld [vmem:[#allocation5 + $0x430] sm:$0xff]
    %v313 = vld [vmem:[#allocation5 + $0x438] sm:$0xff]
    %v314 = vld [vmem:[#allocation5 + $0x440] sm:$0xff]
    %v315 = vld [vmem:[#allocation5 + $0x448] sm:$0xff]
    %v316 = vld [vmem:[#allocation5 + $0x450] sm:$0xff]
    %v317 = vld [vmem:[#allocation5 + $0x458] sm:$0xff]
    %v318 = vld [vmem:[#allocation5 + $0x460] sm:$0xff]
    %v319 = vld [vmem:[#allocation5 + $0x468] sm:$0xff]
    %v320 = vld [vmem:[#allocation5 + $0x470] sm:$0xff]
    %v321 = vld [vmem:[#allocation5 + $0x478] sm:$0xff]
    %v322 = vld [vmem:[#allocation5 + $0x480] sm:$0xff]
    %v323 = vld [vmem:[#allocation5 + $0x488] sm:$0xff]
    %v324 = vld [vmem:[#allocation5 + $0x490] sm:$0xff]
    %v325 = vld [vmem:[#allocation5 + $0x498] sm:$0xff]
    %v326 = vld [vmem:[#allocation5 + $0x4a0] sm:$0xff]
    %v327 = vld [vmem:[#allocation5 + $0x4a8] sm:$0xff]
    %v328 = vld [vmem:[#allocation5 + $0x4b0] sm:$0xff]
    %v329 = vld [vmem:[#allocation5 + $0x4b8] sm:$0xff]
    %v330 = vld [vmem:[#allocation5 + $0x4c0] sm:$0xff]
    %v331 = vld [vmem:[#allocation5 + $0x4c8] sm:$0xff]
    %v332 = vld [vmem:[#allocation5 + $0x4d0] sm:$0xff]
    %v333 = vld [vmem:[#allocation5 + $0x4d8] sm:$0xff]
    %v334 = vld [vmem:[#allocation5 + $0x4e0] sm:$0xff]
    %v335 = vld [vmem:[#allocation5 + $0x4e8] sm:$0xff]
    %v336 = vld [vmem:[#allocation5 + $0x4f0] sm:$0xff]
    %v337 = vld [vmem:[#allocation5 + $0x4f8] sm:$0xff]
    %v338 = vld [vmem:[#allocation5 + $0x500] sm:$0xff]
    %v339 = vld [vmem:[#allocation5 + $0x508] sm:$0xff]
    %v340 = vld [vmem:[#allocation5 + $0x510] sm:$0xff]
    %v341 = vld [vmem:[#allocation5 + $0x518] sm:$0xff]
    %v342 = vld [vmem:[#allocation5 + $0x520] sm:$0xff]
    %v343 = vld [vmem:[#allocation5 + $0x528] sm:$0xff]
    %v344 = vld [vmem:[#allocation5 + $0x530] sm:$0xff]
    %v345 = vld [vmem:[#allocation5 + $0x538] sm:$0xff]
    %v346 = vld [vmem:[#allocation5 + $0x540] sm:$0xff]
    %v347 = vld [vmem:[#allocation5 + $0x548] sm:$0xff]
    %v348 = vld [vmem:[#allocation5 + $0x550] sm:$0xff]
    %v349 = vld [vmem:[#allocation5 + $0x558] sm:$0xff]
    %v350 = vld [vmem:[#allocation5 + $0x560] sm:$0xff]
    %v351 = vld [vmem:[#allocation5 + $0x568] sm:$0xff]
    %v352 = vld [vmem:[#allocation5 + $0x570] sm:$0xff]
    %v353 = vld [vmem:[#allocation5 + $0x578] sm:$0xff]
    %v354 = vld [vmem:[#allocation5 + $0x580] sm:$0xff]
    %v355 = vld [vmem:[#allocation5 + $0x588] sm:$0xff]
    %v356 = vld [vmem:[#allocation5 + $0x590] sm:$0xff]
    %v357 = vld [vmem:[#allocation5 + $0x598] sm:$0xff]
    %v358 = vld [vmem:[#allocation5 + $0x5a0] sm:$0xff]
    %v359 = vld [vmem:[#allocation5 + $0x5a8] sm:$0xff]
    %v360 = vld [vmem:[#allocation5 + $0x5b0] sm:$0xff]
    %v361 = vld [vmem:[#allocation5 + $0x5b8] sm:$0xff]
    %v362 = vld [vmem:[#allocation5 + $0x5c0] sm:$0xff]
    %v363 = vld [vmem:[#allocation5 + $0x5c8] sm:$0xff]
    %v364 = vld [vmem:[#allocation5 + $0x5d0] sm:$0xff]
    %v365 = vld [vmem:[#allocation5 + $0x5d8] sm:$0xff]
    %v366 = vld [vmem:[#allocation5 + $0x5e0] sm:$0xff]
    %v367 = vld [vmem:[#allocation5 + $0x5e8] sm:$0xff]
    %v368 = vld [vmem:[#allocation5 + $0x5f0] sm:$0xff]
    %v369 = vld [vmem:[#allocation5 + $0x5f8] sm:$0xff]
    %v370 = vld [vmem:[#allocation5 + $0x600] sm:$0xff]
    %v371 = vld [vmem:[#allocation5 + $0x608] sm:$0xff]
    %v372 = vld [vmem:[#allocation5 + $0x610] sm:$0xff]
    %v373 = vld [vmem:[#allocation5 + $0x618] sm:$0xff]
    %v374 = vld [vmem:[#allocation5 + $0x620] sm:$0xff]
    %v375 = vld [vmem:[#allocation5 + $0x628] sm:$0xff]
    %v376 = vld [vmem:[#allocation5 + $0x630] sm:$0xff]
    %v377 = vld [vmem:[#allocation5 + $0x638] sm:$0xff]
    %v378 = vld [vmem:[#allocation5 + $0x640] sm:$0xff]
    %v379 = vld [vmem:[#allocation5 + $0x648] sm:$0xff]
    %v380 = vld [vmem:[#allocation5 + $0x650] sm:$0xff]
    %v381 = vld [vmem:[#allocation5 + $0x658] sm:$0xff]
    %v382 = vld [vmem:[#allocation5 + $0x660] sm:$0xff]
    %v383 = vld [vmem:[#allocation5 + $0x668] sm:$0xff]
    %v384 = vld [vmem:[#allocation5 + $0x670] sm:$0xff]
    %v385 = vld [vmem:[#allocation5 + $0x678] sm:$0xff]
    %v386 = vld [vmem:[#allocation5 + $0x680] sm:$0xff]
    %v387 = vld [vmem:[#allocation5 + $0x688] sm:$0xff]
    %v388 = vld [vmem:[#allocation5 + $0x690] sm:$0xff]
    %v389 = vld [vmem:[#allocation5 + $0x698] sm:$0xff]
    %v390 = vld [vmem:[#allocation5 + $0x6a0] sm:$0xff]
    %v391 = vld [vmem:[#allocation5 + $0x6a8] sm:$0xff]
    %v392 = vld [vmem:[#allocation5 + $0x6b0] sm:$0xff]
    %v393 = vld [vmem:[#allocation5 + $0x6b8] sm:$0xff]
    %v394 = vld [vmem:[#allocation5 + $0x6c0] sm:$0xff]
    %v395 = vld [vmem:[#allocation5 + $0x6c8] sm:$0xff]
    %v396 = vld [vmem:[#allocation5 + $0x6d0] sm:$0xff]
    %v397 = vld [vmem:[#allocation5 + $0x6d8] sm:$0xff]
    %v398 = vld [vmem:[#allocation5 + $0x6e0] sm:$0xff]
    %v399 = vld [vmem:[#allocation5 + $0x6e8] sm:$0xff]
    %v400 = vld [vmem:[#allocation5 + $0x6f0] sm:$0xff]
    %v401 = vld [vmem:[#allocation5 + $0x6f8] sm:$0xff]
    %v402 = vld [vmem:[#allocation5 + $0x700] sm:$0xff]
    %v403 = vld [vmem:[#allocation5 + $0x708] sm:$0xff]
    %v404 = vld [vmem:[#allocation5 + $0x710] sm:$0xff]
    %v405 = vld [vmem:[#allocation5 + $0x718] sm:$0xff]
    %v406 = vld [vmem:[#allocation5 + $0x720] sm:$0xff]
    %v407 = vld [vmem:[#allocation5 + $0x728] sm:$0xff]
    %v408 = vld [vmem:[#allocation5 + $0x730] sm:$0xff]
    %v409 = vld [vmem:[#allocation5 + $0x738] sm:$0xff]
    %v410 = vld [vmem:[#allocation5 + $0x740] sm:$0xff]
    %v411 = vld [vmem:[#allocation5 + $0x748] sm:$0xff]
    %v412 = vld [vmem:[#allocation5 + $0x750] sm:$0xff]
    %v413 = vld [vmem:[#allocation5 + $0x758] sm:$0xff]
    %v414 = vld [vmem:[#allocation5 + $0x760] sm:$0xff]
    %v415 = vld [vmem:[#allocation5 + $0x768] sm:$0xff]
    %v416 = vld [vmem:[#allocation5 + $0x770] sm:$0xff]
    %v417 = vld [vmem:[#allocation5 + $0x778] sm:$0xff]
    %v418 = vld [vmem:[#allocation5 + $0x780] sm:$0xff]
    %v419 = vld [vmem:[#allocation5 + $0x788] sm:$0xff]
    %v420 = vld [vmem:[#allocation5 + $0x790] sm:$0xff]
    %v421 = vld [vmem:[#allocation5 + $0x798] sm:$0xff]
    %v422 = vld [vmem:[#allocation5 + $0x7a0] sm:$0xff]
    %v423 = vld [vmem:[#allocation5 + $0x7a8] sm:$0xff]
    %v424 = vld [vmem:[#allocation5 + $0x7b0] sm:$0xff]
    %v425 = vld [vmem:[#allocation5 + $0x7b8] sm:$0xff]
    %v426 = vld [vmem:[#allocation5 + $0x7c0] sm:$0xff]
    %v427 = vld [vmem:[#allocation5 + $0x7c8] sm:$0xff]
    %v428 = vld [vmem:[#allocation5 + $0x7d0] sm:$0xff]
    %v429 = vld [vmem:[#allocation5 + $0x7d8] sm:$0xff]
    %v430 = vld [vmem:[#allocation5 + $0x7e0] sm:$0xff]
    %v431 = vld [vmem:[#allocation5 + $0x7e8] sm:$0xff]
    %v432 = vld [vmem:[#allocation5 + $0x7f0] sm:$0xff]
    %v433 = vld [vmem:[#allocation5 + $0x7f8] sm:$0xff]
    %v434 = vld [vmem:[#allocation5 + $0x800] sm:$0xff]
    %v435 = vld [vmem:[#allocation5 + $0x808] sm:$0xff]
    %v436 = vld [vmem:[#allocation5 + $0x810] sm:$0xff]
    %v437 = vld [vmem:[#allocation5 + $0x818] sm:$0xff]
    %v438 = vld [vmem:[#allocation5 + $0x820] sm:$0xff]
    %v439 = vld [vmem:[#allocation5 + $0x828] sm:$0xff]
    %v440 = vld [vmem:[#allocation5 + $0x830] sm:$0xff]
    %v441 = vld [vmem:[#allocation5 + $0x838] sm:$0xff]
    %v442 = vld [vmem:[#allocation5 + $0x840] sm:$0xff]
    %v443 = vld [vmem:[#allocation5 + $0x848] sm:$0xff]
    %v444 = vld [vmem:[#allocation5 + $0x850] sm:$0xff]
    %v445 = vld [vmem:[#allocation5 + $0x858] sm:$0xff]
    %v446 = vld [vmem:[#allocation5 + $0x860] sm:$0xff]
    %v447 = vld [vmem:[#allocation5 + $0x868] sm:$0xff]
    %v448 = vld [vmem:[#allocation5 + $0x870] sm:$0xff]
    %v449 = vld [vmem:[#allocation5 + $0x878] sm:$0xff]
    %v450 = vld [vmem:[#allocation5 + $0x880] sm:$0xff]
    %v451 = vld [vmem:[#allocation5 + $0x888] sm:$0xff]
    %v452 = vld [vmem:[#allocation5 + $0x890] sm:$0xff]
    %v453 = vld [vmem:[#allocation5 + $0x898] sm:$0xff]
    %v454 = vld [vmem:[#allocation5 + $0x8a0] sm:$0xff]
    %v455 = vld [vmem:[#allocation5 + $0x8a8] sm:$0xff]
    %v456 = vld [vmem:[#allocation5 + $0x8b0] sm:$0xff]
    %v457 = vld [vmem:[#allocation5 + $0x8b8] sm:$0xff]
    %v458 = vld [vmem:[#allocation5 + $0x8c0] sm:$0xff]
    %v459 = vld [vmem:[#allocation5 + $0x8c8] sm:$0xff]
    %v460 = vld [vmem:[#allocation5 + $0x8d0] sm:$0xff]
    %v461 = vld [vmem:[#allocation5 + $0x8d8] sm:$0xff]
    %v462 = vld [vmem:[#allocation5 + $0x8e0] sm:$0xff]
    %v463 = vld [vmem:[#allocation5 + $0x8e8] sm:$0xff]
    %v464 = vld [vmem:[#allocation5 + $0x8f0] sm:$0xff]
    %v465 = vld [vmem:[#allocation5 + $0x8f8] sm:$0xff]
    %v466 = vld [vmem:[#allocation7] sm:$0x3f]
    %v468 = vperm.slane %v466, 0
    %v469 = vperm.slane %v466, 1
    %v470 = vperm.slane %v466, 2
    %v471 = vperm.slane %v466, 3
    %v472 = vperm.slane %v466, 4
    %v473 = vperm.slane %v466, 5
    %v528 = vunpack.c.l.b16 %v130
    %v529 = vunpack.c.h.b16 %v130
    %v530 = vunpack.c.l.b16 %v131
    %v531 = vunpack.c.h.b16 %v131
    %v532 = vunpack.c.l.b16 %v132
    %v533 = vunpack.c.h.b16 %v132
    %v534 = vunpack.c.l.b16 %v133
    %v535 = vunpack.c.h.b16 %v133
    %v536 = vunpack.c.l.b16 %v134
    %v537 = vunpack.c.h.b16 %v134
    %v538 = vunpack.c.l.b16 %v135
    %v539 = vunpack.c.h.b16 %v135
    %v540 = vunpack.c.l.b16 %v136
    %v541 = vunpack.c.h.b16 %v136
    %v542 = vunpack.c.l.b16 %v137
    %v543 = vunpack.c.h.b16 %v137
    %v544 = vunpack.c.l.b16 %v138
    %v545 = vunpack.c.h.b16 %v138
    %v546 = vunpack.c.l.b16 %v139
    %v547 = vunpack.c.h.b16 %v139
    %v548 = vunpack.c.l.b16 %v140
    %v549 = vunpack.c.h.b16 %v140
    %v550 = vunpack.c.l.b16 %v141
    %v551 = vunpack.c.h.b16 %v141
    %v552 = vunpack.c.l.b16 %v142
    %v553 = vunpack.c.h.b16 %v142
    %v554 = vunpack.c.l.b16 %v143
    %v555 = vunpack.c.h.b16 %v143
    %v556 = vunpack.c.l.b16 %v144
    %v557 = vunpack.c.h.b16 %v144
    %v558 = vunpack.c.l.b16 %v145
    %v559 = vunpack.c.h.b16 %v145
    %v560 = vunpack.c.l.b16 %v146
    %v561 = vunpack.c.h.b16 %v146
    %v562 = vunpack.c.l.b16 %v147
    %v563 = vunpack.c.h.b16 %v147
    %v564 = vunpack.c.l.b16 %v148
    %v565 = vunpack.c.h.b16 %v148
    %v566 = vunpack.c.l.b16 %v149
    %v567 = vunpack.c.h.b16 %v149
    %v568 = vunpack.c.l.b16 %v150
    %v569 = vunpack.c.h.b16 %v150
    %v570 = vunpack.c.l.b16 %v151
    %v571 = vunpack.c.h.b16 %v151
    %v572 = vunpack.c.l.b16 %v152
    %v573 = vunpack.c.h.b16 %v152
    %v574 = vunpack.c.l.b16 %v153
    %v575 = vunpack.c.h.b16 %v153
    %v576 = vunpack.c.l.b16 %v154
    %v577 = vunpack.c.h.b16 %v154
    %v578 = vunpack.c.l.b16 %v155
    %v579 = vunpack.c.h.b16 %v155
    %v580 = vunpack.c.l.b16 %v156
    %v581 = vunpack.c.h.b16 %v156
    %v582 = vunpack.c.l.b16 %v157
    %v583 = vunpack.c.h.b16 %v157
    %v584 = vunpack.c.l.b16 %v158
    %v585 = vunpack.c.h.b16 %v158
    %v586 = vunpack.c.l.b16 %v159
    %v587 = vunpack.c.h.b16 %v159
    %v588 = vunpack.c.l.b16 %v160
    %v589 = vunpack.c.h.b16 %v160
    %v590 = vunpack.c.l.b16 %v161
    %v591 = vunpack.c.h.b16 %v161
    %v592 = vunpack.c.l.b16 %v162
    %v593 = vunpack.c.h.b16 %v162
    %v594 = vunpack.c.l.b16 %v163
    %v595 = vunpack.c.h.b16 %v163
    %v596 = vunpack.c.l.b16 %v164
    %v597 = vunpack.c.h.b16 %v164
    %v598 = vunpack.c.l.b16 %v165
    %v599 = vunpack.c.h.b16 %v165
    %v600 = vunpack.c.l.b16 %v166
    %v601 = vunpack.c.h.b16 %v166
    %v602 = vunpack.c.l.b16 %v167
    %v603 = vunpack.c.h.b16 %v167
    %v604 = vunpack.c.l.b16 %v168
    %v605 = vunpack.c.h.b16 %v168
    %v606 = vunpack.c.l.b16 %v169
    %v607 = vunpack.c.h.b16 %v169
    %v608 = vunpack.c.l.b16 %v170
    %v609 = vunpack.c.h.b16 %v170
    %v610 = vunpack.c.l.b16 %v171
    %v611 = vunpack.c.h.b16 %v171
    %v612 = vunpack.c.l.b16 %v172
    %v613 = vunpack.c.h.b16 %v172
    %v614 = vunpack.c.l.b16 %v173
    %v615 = vunpack.c.h.b16 %v173
    %v616 = vunpack.c.l.b16 %v174
    %v617 = vunpack.c.h.b16 %v174
    %v618 = vunpack.c.l.b16 %v175
    %v619 = vunpack.c.h.b16 %v175
    %v620 = vunpack.c.l.b16 %v176
    %v621 = vunpack.c.h.b16 %v176
    %v622 = vunpack.c.l.b16 %v177
    %v623 = vunpack.c.h.b16 %v177
    %v624 = vpack.c.b16 %v534, %v528
    %v625 = vpack.c.b16 %v535, %v529
    %v626 = vpack.c.b16 %v536, %v530
    %v627 = vpack.c.b16 %v537, %v531
    %v628 = vpack.c.b16 %v538, %v532
    %v629 = vpack.c.b16 %v539, %v533
    %v630 = vpack.c.b16 %v546, %v540
    %v631 = vpack.c.b16 %v547, %v541
    %v632 = vpack.c.b16 %v548, %v542
    %v633 = vpack.c.b16 %v549, %v543
    %v634 = vpack.c.b16 %v550, %v544
    %v635 = vpack.c.b16 %v551, %v545
    %v636 = vpack.c.b16 %v558, %v552
    %v637 = vpack.c.b16 %v559, %v553
    %v638 = vpack.c.b16 %v560, %v554
    %v639 = vpack.c.b16 %v561, %v555
    %v640 = vpack.c.b16 %v562, %v556
    %v641 = vpack.c.b16 %v563, %v557
    %v642 = vpack.c.b16 %v570, %v564
    %v643 = vpack.c.b16 %v571, %v565
    %v644 = vpack.c.b16 %v572, %v566
    %v645 = vpack.c.b16 %v573, %v567
    %v646 = vpack.c.b16 %v574, %v568
    %v647 = vpack.c.b16 %v575, %v569
    %v648 = vpack.c.b16 %v582, %v576
    %v649 = vpack.c.b16 %v583, %v577
    %v650 = vpack.c.b16 %v584, %v578
    %v651 = vpack.c.b16 %v585, %v579
    %v652 = vpack.c.b16 %v586, %v580
    %v653 = vpack.c.b16 %v587, %v581
    %v654 = vpack.c.b16 %v594, %v588
    %v655 = vpack.c.b16 %v595, %v589
    %v656 = vpack.c.b16 %v596, %v590
    %v657 = vpack.c.b16 %v597, %v591
    %v658 = vpack.c.b16 %v598, %v592
    %v659 = vpack.c.b16 %v599, %v593
    %v660 = vpack.c.b16 %v606, %v600
    %v661 = vpack.c.b16 %v607, %v601
    %v662 = vpack.c.b16 %v608, %v602
    %v663 = vpack.c.b16 %v609, %v603
    %v664 = vpack.c.b16 %v610, %v604
    %v665 = vpack.c.b16 %v611, %v605
    %v666 = vpack.c.b16 %v618, %v612
    %v667 = vpack.c.b16 %v619, %v613
    %v668 = vpack.c.b16 %v620, %v614
    %v669 = vpack.c.b16 %v621, %v615
    %v670 = vpack.c.b16 %v622, %v616
    %v671 = vpack.c.b16 %v623, %v617
    %v1008 = vunpack.c.l.b16 %v178
    %v1009 = vunpack.c.h.b16 %v178
    %v1010 = vunpack.c.l.b16 %v179
    %v1011 = vunpack.c.h.b16 %v179
    %v1012 = vunpack.c.l.b16 %v180
    %v1013 = vunpack.c.h.b16 %v180
    %v1014 = vunpack.c.l.b16 %v181
    %v1015 = vunpack.c.h.b16 %v181
    %v1016 = vunpack.c.l.b16 %v182
    %v1017 = vunpack.c.h.b16 %v182
    %v1018 = vunpack.c.l.b16 %v183
    %v1019 = vunpack.c.h.b16 %v183
    %v1020 = vunpack.c.l.b16 %v184
    %v1021 = vunpack.c.h.b16 %v184
    %v1022 = vunpack.c.l.b16 %v185
    %v1023 = vunpack.c.h.b16 %v185
    %v1024 = vunpack.c.l.b16 %v186
    %v1025 = vunpack.c.h.b16 %v186
    %v1026 = vunpack.c.l.b16 %v187
    %v1027 = vunpack.c.h.b16 %v187
    %v1028 = vunpack.c.l.b16 %v188
    %v1029 = vunpack.c.h.b16 %v188
    %v1030 = vunpack.c.l.b16 %v189
    %v1031 = vunpack.c.h.b16 %v189
    %v1032 = vunpack.c.l.b16 %v190
    %v1033 = vunpack.c.h.b16 %v190
    %v1034 = vunpack.c.l.b16 %v191
    %v1035 = vunpack.c.h.b16 %v191
    %v1036 = vunpack.c.l.b16 %v192
    %v1037 = vunpack.c.h.b16 %v192
    %v1038 = vunpack.c.l.b16 %v193
    %v1039 = vunpack.c.h.b16 %v193
    %v1040 = vunpack.c.l.b16 %v194
    %v1041 = vunpack.c.h.b16 %v194
    %v1042 = vunpack.c.l.b16 %v195
    %v1043 = vunpack.c.h.b16 %v195
    %v1044 = vunpack.c.l.b16 %v196
    %v1045 = vunpack.c.h.b16 %v196
    %v1046 = vunpack.c.l.b16 %v197
    %v1047 = vunpack.c.h.b16 %v197
    %v1048 = vunpack.c.l.b16 %v198
    %v1049 = vunpack.c.h.b16 %v198
    %v1050 = vunpack.c.l.b16 %v199
    %v1051 = vunpack.c.h.b16 %v199
    %v1052 = vunpack.c.l.b16 %v200
    %v1053 = vunpack.c.h.b16 %v200
    %v1054 = vunpack.c.l.b16 %v201
    %v1055 = vunpack.c.h.b16 %v201
    %v1056 = vunpack.c.l.b16 %v202
    %v1057 = vunpack.c.h.b16 %v202
    %v1058 = vunpack.c.l.b16 %v203
    %v1059 = vunpack.c.h.b16 %v203
    %v1060 = vunpack.c.l.b16 %v204
    %v1061 = vunpack.c.h.b16 %v204
    %v1062 = vunpack.c.l.b16 %v205
    %v1063 = vunpack.c.h.b16 %v205
    %v1064 = vunpack.c.l.b16 %v206
    %v1065 = vunpack.c.h.b16 %v206
    %v1066 = vunpack.c.l.b16 %v207
    %v1067 = vunpack.c.h.b16 %v207
    %v1068 = vunpack.c.l.b16 %v208
    %v1069 = vunpack.c.h.b16 %v208
    %v1070 = vunpack.c.l.b16 %v209
    %v1071 = vunpack.c.h.b16 %v209
    %v1072 = vunpack.c.l.b16 %v210
    %v1073 = vunpack.c.h.b16 %v210
    %v1074 = vunpack.c.l.b16 %v211
    %v1075 = vunpack.c.h.b16 %v211
    %v1076 = vunpack.c.l.b16 %v212
    %v1077 = vunpack.c.h.b16 %v212
    %v1078 = vunpack.c.l.b16 %v213
    %v1079 = vunpack.c.h.b16 %v213
    %v1080 = vunpack.c.l.b16 %v214
    %v1081 = vunpack.c.h.b16 %v214
    %v1082 = vunpack.c.l.b16 %v215
    %v1083 = vunpack.c.h.b16 %v215
    %v1084 = vunpack.c.l.b16 %v216
    %v1085 = vunpack.c.h.b16 %v216
    %v1086 = vunpack.c.l.b16 %v217
    %v1087 = vunpack.c.h.b16 %v217
    %v1088 = vunpack.c.l.b16 %v218
    %v1089 = vunpack.c.h.b16 %v218
    %v1090 = vunpack.c.l.b16 %v219
    %v1091 = vunpack.c.h.b16 %v219
    %v1092 = vunpack.c.l.b16 %v220
    %v1093 = vunpack.c.h.b16 %v220
    %v1094 = vunpack.c.l.b16 %v221
    %v1095 = vunpack.c.h.b16 %v221
    %v1096 = vunpack.c.l.b16 %v222
    %v1097 = vunpack.c.h.b16 %v222
    %v1098 = vunpack.c.l.b16 %v223
    %v1099 = vunpack.c.h.b16 %v223
    %v1100 = vunpack.c.l.b16 %v224
    %v1101 = vunpack.c.h.b16 %v224
    %v1102 = vunpack.c.l.b16 %v225
    %v1103 = vunpack.c.h.b16 %v225
    %v1104 = vunpack.c.l.b16 %v226
    %v1105 = vunpack.c.h.b16 %v226
    %v1106 = vunpack.c.l.b16 %v227
    %v1107 = vunpack.c.h.b16 %v227
    %v1108 = vunpack.c.l.b16 %v228
    %v1109 = vunpack.c.h.b16 %v228
    %v1110 = vunpack.c.l.b16 %v229
    %v1111 = vunpack.c.h.b16 %v229
    %v1112 = vunpack.c.l.b16 %v230
    %v1113 = vunpack.c.h.b16 %v230
    %v1114 = vunpack.c.l.b16 %v231
    %v1115 = vunpack.c.h.b16 %v231
    %v1116 = vunpack.c.l.b16 %v232
    %v1117 = vunpack.c.h.b16 %v232
    %v1118 = vunpack.c.l.b16 %v233
    %v1119 = vunpack.c.h.b16 %v233
    %v1120 = vunpack.c.l.b16 %v234
    %v1121 = vunpack.c.h.b16 %v234
    %v1122 = vunpack.c.l.b16 %v235
    %v1123 = vunpack.c.h.b16 %v235
    %v1124 = vunpack.c.l.b16 %v236
    %v1125 = vunpack.c.h.b16 %v236
    %v1126 = vunpack.c.l.b16 %v237
    %v1127 = vunpack.c.h.b16 %v237
    %v1128 = vunpack.c.l.b16 %v238
    %v1129 = vunpack.c.h.b16 %v238
    %v1130 = vunpack.c.l.b16 %v239
    %v1131 = vunpack.c.h.b16 %v239
    %v1132 = vunpack.c.l.b16 %v240
    %v1133 = vunpack.c.h.b16 %v240
    %v1134 = vunpack.c.l.b16 %v241
    %v1135 = vunpack.c.h.b16 %v241
    %v1136 = vunpack.c.l.b16 %v242
    %v1137 = vunpack.c.h.b16 %v242
    %v1138 = vunpack.c.l.b16 %v243
    %v1139 = vunpack.c.h.b16 %v243
    %v1140 = vunpack.c.l.b16 %v244
    %v1141 = vunpack.c.h.b16 %v244
    %v1142 = vunpack.c.l.b16 %v245
    %v1143 = vunpack.c.h.b16 %v245
    %v1144 = vunpack.c.l.b16 %v246
    %v1145 = vunpack.c.h.b16 %v246
    %v1146 = vunpack.c.l.b16 %v247
    %v1147 = vunpack.c.h.b16 %v247
    %v1148 = vunpack.c.l.b16 %v248
    %v1149 = vunpack.c.h.b16 %v248
    %v1150 = vunpack.c.l.b16 %v249
    %v1151 = vunpack.c.h.b16 %v249
    %v1152 = vunpack.c.l.b16 %v250
    %v1153 = vunpack.c.h.b16 %v250
    %v1154 = vunpack.c.l.b16 %v251
    %v1155 = vunpack.c.h.b16 %v251
    %v1156 = vunpack.c.l.b16 %v252
    %v1157 = vunpack.c.h.b16 %v252
    %v1158 = vunpack.c.l.b16 %v253
    %v1159 = vunpack.c.h.b16 %v253
    %v1160 = vunpack.c.l.b16 %v254
    %v1161 = vunpack.c.h.b16 %v254
    %v1162 = vunpack.c.l.b16 %v255
    %v1163 = vunpack.c.h.b16 %v255
    %v1164 = vunpack.c.l.b16 %v256
    %v1165 = vunpack.c.h.b16 %v256
    %v1166 = vunpack.c.l.b16 %v257
    %v1167 = vunpack.c.h.b16 %v257
    %v1168 = vunpack.c.l.b16 %v258
    %v1169 = vunpack.c.h.b16 %v258
    %v1170 = vunpack.c.l.b16 %v259
    %v1171 = vunpack.c.h.b16 %v259
    %v1172 = vunpack.c.l.b16 %v260
    %v1173 = vunpack.c.h.b16 %v260
    %v1174 = vunpack.c.l.b16 %v261
    %v1175 = vunpack.c.h.b16 %v261
    %v1176 = vunpack.c.l.b16 %v262
    %v1177 = vunpack.c.h.b16 %v262
    %v1178 = vunpack.c.l.b16 %v263
    %v1179 = vunpack.c.h.b16 %v263
    %v1180 = vunpack.c.l.b16 %v264
    %v1181 = vunpack.c.h.b16 %v264
    %v1182 = vunpack.c.l.b16 %v265
    %v1183 = vunpack.c.h.b16 %v265
    %v1184 = vunpack.c.l.b16 %v266
    %v1185 = vunpack.c.h.b16 %v266
    %v1186 = vunpack.c.l.b16 %v267
    %v1187 = vunpack.c.h.b16 %v267
    %v1188 = vunpack.c.l.b16 %v268
    %v1189 = vunpack.c.h.b16 %v268
    %v1190 = vunpack.c.l.b16 %v269
    %v1191 = vunpack.c.h.b16 %v269
    %v1192 = vunpack.c.l.b16 %v270
    %v1193 = vunpack.c.h.b16 %v270
    %v1194 = vunpack.c.l.b16 %v271
    %v1195 = vunpack.c.h.b16 %v271
    %v1196 = vunpack.c.l.b16 %v272
    %v1197 = vunpack.c.h.b16 %v272
    %v1198 = vunpack.c.l.b16 %v273
    %v1199 = vunpack.c.h.b16 %v273
    %v1200 = vunpack.c.l.b16 %v274
    %v1201 = vunpack.c.h.b16 %v274
    %v1202 = vunpack.c.l.b16 %v275
    %v1203 = vunpack.c.h.b16 %v275
    %v1204 = vunpack.c.l.b16 %v276
    %v1205 = vunpack.c.h.b16 %v276
    %v1206 = vunpack.c.l.b16 %v277
    %v1207 = vunpack.c.h.b16 %v277
    %v1208 = vunpack.c.l.b16 %v278
    %v1209 = vunpack.c.h.b16 %v278
    %v1210 = vunpack.c.l.b16 %v279
    %v1211 = vunpack.c.h.b16 %v279
    %v1212 = vunpack.c.l.b16 %v280
    %v1213 = vunpack.c.h.b16 %v280
    %v1214 = vunpack.c.l.b16 %v281
    %v1215 = vunpack.c.h.b16 %v281
    %v1216 = vunpack.c.l.b16 %v282
    %v1217 = vunpack.c.h.b16 %v282
    %v1218 = vunpack.c.l.b16 %v283
    %v1219 = vunpack.c.h.b16 %v283
    %v1220 = vunpack.c.l.b16 %v284
    %v1221 = vunpack.c.h.b16 %v284
    %v1222 = vunpack.c.l.b16 %v285
    %v1223 = vunpack.c.h.b16 %v285
    %v1224 = vunpack.c.l.b16 %v286
    %v1225 = vunpack.c.h.b16 %v286
    %v1226 = vunpack.c.l.b16 %v287
    %v1227 = vunpack.c.h.b16 %v287
    %v1228 = vunpack.c.l.b16 %v288
    %v1229 = vunpack.c.h.b16 %v288
    %v1230 = vunpack.c.l.b16 %v289
    %v1231 = vunpack.c.h.b16 %v289
    %v1232 = vunpack.c.l.b16 %v290
    %v1233 = vunpack.c.h.b16 %v290
    %v1234 = vunpack.c.l.b16 %v291
    %v1235 = vunpack.c.h.b16 %v291
    %v1236 = vunpack.c.l.b16 %v292
    %v1237 = vunpack.c.h.b16 %v292
    %v1238 = vunpack.c.l.b16 %v293
    %v1239 = vunpack.c.h.b16 %v293
    %v1240 = vunpack.c.l.b16 %v294
    %v1241 = vunpack.c.h.b16 %v294
    %v1242 = vunpack.c.l.b16 %v295
    %v1243 = vunpack.c.h.b16 %v295
    %v1244 = vunpack.c.l.b16 %v296
    %v1245 = vunpack.c.h.b16 %v296
    %v1246 = vunpack.c.l.b16 %v297
    %v1247 = vunpack.c.h.b16 %v297
    %v1248 = vunpack.c.l.b16 %v298
    %v1249 = vunpack.c.h.b16 %v298
    %v1250 = vunpack.c.l.b16 %v299
    %v1251 = vunpack.c.h.b16 %v299
    %v1252 = vunpack.c.l.b16 %v300
    %v1253 = vunpack.c.h.b16 %v300
    %v1254 = vunpack.c.l.b16 %v301
    %v1255 = vunpack.c.h.b16 %v301
    %v1256 = vunpack.c.l.b16 %v302
    %v1257 = vunpack.c.h.b16 %v302
    %v1258 = vunpack.c.l.b16 %v303
    %v1259 = vunpack.c.h.b16 %v303
    %v1260 = vunpack.c.l.b16 %v304
    %v1261 = vunpack.c.h.b16 %v304
    %v1262 = vunpack.c.l.b16 %v305
    %v1263 = vunpack.c.h.b16 %v305
    %v1264 = vunpack.c.l.b16 %v306
    %v1265 = vunpack.c.h.b16 %v306
    %v1266 = vunpack.c.l.b16 %v307
    %v1267 = vunpack.c.h.b16 %v307
    %v1268 = vunpack.c.l.b16 %v308
    %v1269 = vunpack.c.h.b16 %v308
    %v1270 = vunpack.c.l.b16 %v309
    %v1271 = vunpack.c.h.b16 %v309
    %v1272 = vunpack.c.l.b16 %v310
    %v1273 = vunpack.c.h.b16 %v310
    %v1274 = vunpack.c.l.b16 %v311
    %v1275 = vunpack.c.h.b16 %v311
    %v1276 = vunpack.c.l.b16 %v312
    %v1277 = vunpack.c.h.b16 %v312
    %v1278 = vunpack.c.l.b16 %v313
    %v1279 = vunpack.c.h.b16 %v313
    %v1280 = vunpack.c.l.b16 %v314
    %v1281 = vunpack.c.h.b16 %v314
    %v1282 = vunpack.c.l.b16 %v315
    %v1283 = vunpack.c.h.b16 %v315
    %v1284 = vunpack.c.l.b16 %v316
    %v1285 = vunpack.c.h.b16 %v316
    %v1286 = vunpack.c.l.b16 %v317
    %v1287 = vunpack.c.h.b16 %v317
    %v1288 = vunpack.c.l.b16 %v318
    %v1289 = vunpack.c.h.b16 %v318
    %v1290 = vunpack.c.l.b16 %v319
    %v1291 = vunpack.c.h.b16 %v319
    %v1292 = vunpack.c.l.b16 %v320
    %v1293 = vunpack.c.h.b16 %v320
    %v1294 = vunpack.c.l.b16 %v321
    %v1295 = vunpack.c.h.b16 %v321
    %v1296 = vunpack.c.l.b16 %v322
    %v1297 = vunpack.c.h.b16 %v322
    %v1298 = vunpack.c.l.b16 %v323
    %v1299 = vunpack.c.h.b16 %v323
    %v1300 = vunpack.c.l.b16 %v324
    %v1301 = vunpack.c.h.b16 %v324
    %v1302 = vunpack.c.l.b16 %v325
    %v1303 = vunpack.c.h.b16 %v325
    %v1304 = vunpack.c.l.b16 %v326
    %v1305 = vunpack.c.h.b16 %v326
    %v1306 = vunpack.c.l.b16 %v327
    %v1307 = vunpack.c.h.b16 %v327
    %v1308 = vunpack.c.l.b16 %v328
    %v1309 = vunpack.c.h.b16 %v328
    %v1310 = vunpack.c.l.b16 %v329
    %v1311 = vunpack.c.h.b16 %v329
    %v1312 = vunpack.c.l.b16 %v330
    %v1313 = vunpack.c.h.b16 %v330
    %v1314 = vunpack.c.l.b16 %v331
    %v1315 = vunpack.c.h.b16 %v331
    %v1316 = vunpack.c.l.b16 %v332
    %v1317 = vunpack.c.h.b16 %v332
    %v1318 = vunpack.c.l.b16 %v333
    %v1319 = vunpack.c.h.b16 %v333
    %v1320 = vunpack.c.l.b16 %v334
    %v1321 = vunpack.c.h.b16 %v334
    %v1322 = vunpack.c.l.b16 %v335
    %v1323 = vunpack.c.h.b16 %v335
    %v1324 = vunpack.c.l.b16 %v336
    %v1325 = vunpack.c.h.b16 %v336
    %v1326 = vunpack.c.l.b16 %v337
    %v1327 = vunpack.c.h.b16 %v337
    %v1328 = vunpack.c.l.b16 %v338
    %v1329 = vunpack.c.h.b16 %v338
    %v1330 = vunpack.c.l.b16 %v339
    %v1331 = vunpack.c.h.b16 %v339
    %v1332 = vunpack.c.l.b16 %v340
    %v1333 = vunpack.c.h.b16 %v340
    %v1334 = vunpack.c.l.b16 %v341
    %v1335 = vunpack.c.h.b16 %v341
    %v1336 = vunpack.c.l.b16 %v342
    %v1337 = vunpack.c.h.b16 %v342
    %v1338 = vunpack.c.l.b16 %v343
    %v1339 = vunpack.c.h.b16 %v343
    %v1340 = vunpack.c.l.b16 %v344
    %v1341 = vunpack.c.h.b16 %v344
    %v1342 = vunpack.c.l.b16 %v345
    %v1343 = vunpack.c.h.b16 %v345
    %v1344 = vunpack.c.l.b16 %v346
    %v1345 = vunpack.c.h.b16 %v346
    %v1346 = vunpack.c.l.b16 %v347
    %v1347 = vunpack.c.h.b16 %v347
    %v1348 = vunpack.c.l.b16 %v348
    %v1349 = vunpack.c.h.b16 %v348
    %v1350 = vunpack.c.l.b16 %v349
    %v1351 = vunpack.c.h.b16 %v349
    %v1352 = vunpack.c.l.b16 %v350
    %v1353 = vunpack.c.h.b16 %v350
    %v1354 = vunpack.c.l.b16 %v351
    %v1355 = vunpack.c.h.b16 %v351
    %v1356 = vunpack.c.l.b16 %v352
    %v1357 = vunpack.c.h.b16 %v352
    %v1358 = vunpack.c.l.b16 %v353
    %v1359 = vunpack.c.h.b16 %v353
    %v1360 = vunpack.c.l.b16 %v354
    %v1361 = vunpack.c.h.b16 %v354
    %v1362 = vunpack.c.l.b16 %v355
    %v1363 = vunpack.c.h.b16 %v355
    %v1364 = vunpack.c.l.b16 %v356
    %v1365 = vunpack.c.h.b16 %v356
    %v1366 = vunpack.c.l.b16 %v357
    %v1367 = vunpack.c.h.b16 %v357
    %v1368 = vunpack.c.l.b16 %v358
    %v1369 = vunpack.c.h.b16 %v358
    %v1370 = vunpack.c.l.b16 %v359
    %v1371 = vunpack.c.h.b16 %v359
    %v1372 = vunpack.c.l.b16 %v360
    %v1373 = vunpack.c.h.b16 %v360
    %v1374 = vunpack.c.l.b16 %v361
    %v1375 = vunpack.c.h.b16 %v361
    %v1376 = vunpack.c.l.b16 %v362
    %v1377 = vunpack.c.h.b16 %v362
    %v1378 = vunpack.c.l.b16 %v363
    %v1379 = vunpack.c.h.b16 %v363
    %v1380 = vunpack.c.l.b16 %v364
    %v1381 = vunpack.c.h.b16 %v364
    %v1382 = vunpack.c.l.b16 %v365
    %v1383 = vunpack.c.h.b16 %v365
    %v1384 = vunpack.c.l.b16 %v366
    %v1385 = vunpack.c.h.b16 %v366
    %v1386 = vunpack.c.l.b16 %v367
    %v1387 = vunpack.c.h.b16 %v367
    %v1388 = vunpack.c.l.b16 %v368
    %v1389 = vunpack.c.h.b16 %v368
    %v1390 = vunpack.c.l.b16 %v369
    %v1391 = vunpack.c.h.b16 %v369
    %v1392 = vunpack.c.l.b16 %v370
    %v1393 = vunpack.c.h.b16 %v370
    %v1394 = vunpack.c.l.b16 %v371
    %v1395 = vunpack.c.h.b16 %v371
    %v1396 = vunpack.c.l.b16 %v372
    %v1397 = vunpack.c.h.b16 %v372
    %v1398 = vunpack.c.l.b16 %v373
    %v1399 = vunpack.c.h.b16 %v373
    %v1400 = vunpack.c.l.b16 %v374
    %v1401 = vunpack.c.h.b16 %v374
    %v1402 = vunpack.c.l.b16 %v375
    %v1403 = vunpack.c.h.b16 %v375
    %v1404 = vunpack.c.l.b16 %v376
    %v1405 = vunpack.c.h.b16 %v376
    %v1406 = vunpack.c.l.b16 %v377
    %v1407 = vunpack.c.h.b16 %v377
    %v1408 = vunpack.c.l.b16 %v378
    %v1409 = vunpack.c.h.b16 %v378
    %v1410 = vunpack.c.l.b16 %v379
    %v1411 = vunpack.c.h.b16 %v379
    %v1412 = vunpack.c.l.b16 %v380
    %v1413 = vunpack.c.h.b16 %v380
    %v1414 = vunpack.c.l.b16 %v381
    %v1415 = vunpack.c.h.b16 %v381
    %v1416 = vunpack.c.l.b16 %v382
    %v1417 = vunpack.c.h.b16 %v382
    %v1418 = vunpack.c.l.b16 %v383
    %v1419 = vunpack.c.h.b16 %v383
    %v1420 = vunpack.c.l.b16 %v384
    %v1421 = vunpack.c.h.b16 %v384
    %v1422 = vunpack.c.l.b16 %v385
    %v1423 = vunpack.c.h.b16 %v385
    %v1424 = vunpack.c.l.b16 %v386
    %v1425 = vunpack.c.h.b16 %v386
    %v1426 = vunpack.c.l.b16 %v387
    %v1427 = vunpack.c.h.b16 %v387
    %v1428 = vunpack.c.l.b16 %v388
    %v1429 = vunpack.c.h.b16 %v388
    %v1430 = vunpack.c.l.b16 %v389
    %v1431 = vunpack.c.h.b16 %v389
    %v1432 = vunpack.c.l.b16 %v390
    %v1433 = vunpack.c.h.b16 %v390
    %v1434 = vunpack.c.l.b16 %v391
    %v1435 = vunpack.c.h.b16 %v391
    %v1436 = vunpack.c.l.b16 %v392
    %v1437 = vunpack.c.h.b16 %v392
    %v1438 = vunpack.c.l.b16 %v393
    %v1439 = vunpack.c.h.b16 %v393
    %v1440 = vunpack.c.l.b16 %v394
    %v1441 = vunpack.c.h.b16 %v394
    %v1442 = vunpack.c.l.b16 %v395
    %v1443 = vunpack.c.h.b16 %v395
    %v1444 = vunpack.c.l.b16 %v396
    %v1445 = vunpack.c.h.b16 %v396
    %v1446 = vunpack.c.l.b16 %v397
    %v1447 = vunpack.c.h.b16 %v397
    %v1448 = vunpack.c.l.b16 %v398
    %v1449 = vunpack.c.h.b16 %v398
    %v1450 = vunpack.c.l.b16 %v399
    %v1451 = vunpack.c.h.b16 %v399
    %v1452 = vunpack.c.l.b16 %v400
    %v1453 = vunpack.c.h.b16 %v400
    %v1454 = vunpack.c.l.b16 %v401
    %v1455 = vunpack.c.h.b16 %v401
    %v1456 = vunpack.c.l.b16 %v402
    %v1457 = vunpack.c.h.b16 %v402
    %v1458 = vunpack.c.l.b16 %v403
    %v1459 = vunpack.c.h.b16 %v403
    %v1460 = vunpack.c.l.b16 %v404
    %v1461 = vunpack.c.h.b16 %v404
    %v1462 = vunpack.c.l.b16 %v405
    %v1463 = vunpack.c.h.b16 %v405
    %v1464 = vunpack.c.l.b16 %v406
    %v1465 = vunpack.c.h.b16 %v406
    %v1466 = vunpack.c.l.b16 %v407
    %v1467 = vunpack.c.h.b16 %v407
    %v1468 = vunpack.c.l.b16 %v408
    %v1469 = vunpack.c.h.b16 %v408
    %v1470 = vunpack.c.l.b16 %v409
    %v1471 = vunpack.c.h.b16 %v409
    %v1472 = vunpack.c.l.b16 %v410
    %v1473 = vunpack.c.h.b16 %v410
    %v1474 = vunpack.c.l.b16 %v411
    %v1475 = vunpack.c.h.b16 %v411
    %v1476 = vunpack.c.l.b16 %v412
    %v1477 = vunpack.c.h.b16 %v412
    %v1478 = vunpack.c.l.b16 %v413
    %v1479 = vunpack.c.h.b16 %v413
    %v1480 = vunpack.c.l.b16 %v414
    %v1481 = vunpack.c.h.b16 %v414
    %v1482 = vunpack.c.l.b16 %v415
    %v1483 = vunpack.c.h.b16 %v415
    %v1484 = vunpack.c.l.b16 %v416
    %v1485 = vunpack.c.h.b16 %v416
    %v1486 = vunpack.c.l.b16 %v417
    %v1487 = vunpack.c.h.b16 %v417
    %v1488 = vunpack.c.l.b16 %v418
    %v1489 = vunpack.c.h.b16 %v418
    %v1490 = vunpack.c.l.b16 %v419
    %v1491 = vunpack.c.h.b16 %v419
    %v1492 = vunpack.c.l.b16 %v420
    %v1493 = vunpack.c.h.b16 %v420
    %v1494 = vunpack.c.l.b16 %v421
    %v1495 = vunpack.c.h.b16 %v421
    %v1496 = vunpack.c.l.b16 %v422
    %v1497 = vunpack.c.h.b16 %v422
    %v1498 = vunpack.c.l.b16 %v423
    %v1499 = vunpack.c.h.b16 %v423
    %v1500 = vunpack.c.l.b16 %v424
    %v1501 = vunpack.c.h.b16 %v424
    %v1502 = vunpack.c.l.b16 %v425
    %v1503 = vunpack.c.h.b16 %v425
    %v1504 = vunpack.c.l.b16 %v426
    %v1505 = vunpack.c.h.b16 %v426
    %v1506 = vunpack.c.l.b16 %v427
    %v1507 = vunpack.c.h.b16 %v427
    %v1508 = vunpack.c.l.b16 %v428
    %v1509 = vunpack.c.h.b16 %v428
    %v1510 = vunpack.c.l.b16 %v429
    %v1511 = vunpack.c.h.b16 %v429
    %v1512 = vunpack.c.l.b16 %v430
    %v1513 = vunpack.c.h.b16 %v430
    %v1514 = vunpack.c.l.b16 %v431
    %v1515 = vunpack.c.h.b16 %v431
    %v1516 = vunpack.c.l.b16 %v432
    %v1517 = vunpack.c.h.b16 %v432
    %v1518 = vunpack.c.l.b16 %v433
    %v1519 = vunpack.c.h.b16 %v433
    %v1520 = vunpack.c.l.b16 %v434
    %v1521 = vunpack.c.h.b16 %v434
    %v1522 = vunpack.c.l.b16 %v435
    %v1523 = vunpack.c.h.b16 %v435
    %v1524 = vunpack.c.l.b16 %v436
    %v1525 = vunpack.c.h.b16 %v436
    %v1526 = vunpack.c.l.b16 %v437
    %v1527 = vunpack.c.h.b16 %v437
    %v1528 = vunpack.c.l.b16 %v438
    %v1529 = vunpack.c.h.b16 %v438
    %v1530 = vunpack.c.l.b16 %v439
    %v1531 = vunpack.c.h.b16 %v439
    %v1532 = vunpack.c.l.b16 %v440
    %v1533 = vunpack.c.h.b16 %v440
    %v1534 = vunpack.c.l.b16 %v441
    %v1535 = vunpack.c.h.b16 %v441
    %v1536 = vunpack.c.l.b16 %v442
    %v1537 = vunpack.c.h.b16 %v442
    %v1538 = vunpack.c.l.b16 %v443
    %v1539 = vunpack.c.h.b16 %v443
    %v1540 = vunpack.c.l.b16 %v444
    %v1541 = vunpack.c.h.b16 %v444
    %v1542 = vunpack.c.l.b16 %v445
    %v1543 = vunpack.c.h.b16 %v445
    %v1544 = vunpack.c.l.b16 %v446
    %v1545 = vunpack.c.h.b16 %v446
    %v1546 = vunpack.c.l.b16 %v447
    %v1547 = vunpack.c.h.b16 %v447
    %v1548 = vunpack.c.l.b16 %v448
    %v1549 = vunpack.c.h.b16 %v448
    %v1550 = vunpack.c.l.b16 %v449
    %v1551 = vunpack.c.h.b16 %v449
    %v1552 = vunpack.c.l.b16 %v450
    %v1553 = vunpack.c.h.b16 %v450
    %v1554 = vunpack.c.l.b16 %v451
    %v1555 = vunpack.c.h.b16 %v451
    %v1556 = vunpack.c.l.b16 %v452
    %v1557 = vunpack.c.h.b16 %v452
    %v1558 = vunpack.c.l.b16 %v453
    %v1559 = vunpack.c.h.b16 %v453
    %v1560 = vunpack.c.l.b16 %v454
    %v1561 = vunpack.c.h.b16 %v454
    %v1562 = vunpack.c.l.b16 %v455
    %v1563 = vunpack.c.h.b16 %v455
    %v1564 = vunpack.c.l.b16 %v456
    %v1565 = vunpack.c.h.b16 %v456
    %v1566 = vunpack.c.l.b16 %v457
    %v1567 = vunpack.c.h.b16 %v457
    %v1568 = vunpack.c.l.b16 %v458
    %v1569 = vunpack.c.h.b16 %v458
    %v1570 = vunpack.c.l.b16 %v459
    %v1571 = vunpack.c.h.b16 %v459
    %v1572 = vunpack.c.l.b16 %v460
    %v1573 = vunpack.c.h.b16 %v460
    %v1574 = vunpack.c.l.b16 %v461
    %v1575 = vunpack.c.h.b16 %v461
    %v1576 = vunpack.c.l.b16 %v462
    %v1577 = vunpack.c.h.b16 %v462
    %v1578 = vunpack.c.l.b16 %v463
    %v1579 = vunpack.c.h.b16 %v463
    %v1580 = vunpack.c.l.b16 %v464
    %v1581 = vunpack.c.h.b16 %v464
    %v1582 = vunpack.c.l.b16 %v465
    %v1583 = vunpack.c.h.b16 %v465
    %v1584 = vpack.c.b16 %v1014, %v1008
    %v1585 = vpack.c.b16 %v1015, %v1009
    %v1586 = vpack.c.b16 %v1016, %v1010
    %v1587 = vpack.c.b16 %v1017, %v1011
    %v1588 = vpack.c.b16 %v1018, %v1012
    %v1589 = vpack.c.b16 %v1019, %v1013
    %v1590 = vpack.c.b16 %v1026, %v1020
    %v1591 = vpack.c.b16 %v1027, %v1021
    %v1592 = vpack.c.b16 %v1028, %v1022
    %v1593 = vpack.c.b16 %v1029, %v1023
    %v1594 = vpack.c.b16 %v1030, %v1024
    %v1595 = vpack.c.b16 %v1031, %v1025
    %v1596 = vpack.c.b16 %v1038, %v1032
    %v1597 = vpack.c.b16 %v1039, %v1033
    %v1598 = vpack.c.b16 %v1040, %v1034
    %v1599 = vpack.c.b16 %v1041, %v1035
    %v1600 = vpack.c.b16 %v1042, %v1036
    %v1601 = vpack.c.b16 %v1043, %v1037
    %v1602 = vpack.c.b16 %v1050, %v1044
    %v1603 = vpack.c.b16 %v1051, %v1045
    %v1604 = vpack.c.b16 %v1052, %v1046
    %v1605 = vpack.c.b16 %v1053, %v1047
    %v1606 = vpack.c.b16 %v1054, %v1048
    %v1607 = vpack.c.b16 %v1055, %v1049
    %v1608 = vpack.c.b16 %v1062, %v1056
    %v1609 = vpack.c.b16 %v1063, %v1057
    %v1610 = vpack.c.b16 %v1064, %v1058
    %v1611 = vpack.c.b16 %v1065, %v1059
    %v1612 = vpack.c.b16 %v1066, %v1060
    %v1613 = vpack.c.b16 %v1067, %v1061
    %v1614 = vpack.c.b16 %v1074, %v1068
    %v1615 = vpack.c.b16 %v1075, %v1069
    %v1616 = vpack.c.b16 %v1076, %v1070
    %v1617 = vpack.c.b16 %v1077, %v1071
    %v1618 = vpack.c.b16 %v1078, %v1072
    %v1619 = vpack.c.b16 %v1079, %v1073
    %v1620 = vpack.c.b16 %v1086, %v1080
    %v1621 = vpack.c.b16 %v1087, %v1081
    %v1622 = vpack.c.b16 %v1088, %v1082
    %v1623 = vpack.c.b16 %v1089, %v1083
    %v1624 = vpack.c.b16 %v1090, %v1084
    %v1625 = vpack.c.b16 %v1091, %v1085
    %v1626 = vpack.c.b16 %v1098, %v1092
    %v1627 = vpack.c.b16 %v1099, %v1093
    %v1628 = vpack.c.b16 %v1100, %v1094
    %v1629 = vpack.c.b16 %v1101, %v1095
    %v1630 = vpack.c.b16 %v1102, %v1096
    %v1631 = vpack.c.b16 %v1103, %v1097
    %v1632 = vpack.c.b16 %v1110, %v1104
    %v1633 = vpack.c.b16 %v1111, %v1105
    %v1634 = vpack.c.b16 %v1112, %v1106
    %v1635 = vpack.c.b16 %v1113, %v1107
    %v1636 = vpack.c.b16 %v1114, %v1108
    %v1637 = vpack.c.b16 %v1115, %v1109
    %v1638 = vpack.c.b16 %v1122, %v1116
    %v1639 = vpack.c.b16 %v1123, %v1117
    %v1640 = vpack.c.b16 %v1124, %v1118
    %v1641 = vpack.c.b16 %v1125, %v1119
    %v1642 = vpack.c.b16 %v1126, %v1120
    %v1643 = vpack.c.b16 %v1127, %v1121
    %v1644 = vpack.c.b16 %v1134, %v1128
    %v1645 = vpack.c.b16 %v1135, %v1129
    %v1646 = vpack.c.b16 %v1136, %v1130
    %v1647 = vpack.c.b16 %v1137, %v1131
    %v1648 = vpack.c.b16 %v1138, %v1132
    %v1649 = vpack.c.b16 %v1139, %v1133
    %v1650 = vpack.c.b16 %v1146, %v1140
    %v1651 = vpack.c.b16 %v1147, %v1141
    %v1652 = vpack.c.b16 %v1148, %v1142
    %v1653 = vpack.c.b16 %v1149, %v1143
    %v1654 = vpack.c.b16 %v1150, %v1144
    %v1655 = vpack.c.b16 %v1151, %v1145
    %v1656 = vpack.c.b16 %v1158, %v1152
    %v1657 = vpack.c.b16 %v1159, %v1153
    %v1658 = vpack.c.b16 %v1160, %v1154
    %v1659 = vpack.c.b16 %v1161, %v1155
    %v1660 = vpack.c.b16 %v1162, %v1156
    %v1661 = vpack.c.b16 %v1163, %v1157
    %v1662 = vpack.c.b16 %v1170, %v1164
    %v1663 = vpack.c.b16 %v1171, %v1165
    %v1664 = vpack.c.b16 %v1172, %v1166
    %v1665 = vpack.c.b16 %v1173, %v1167
    %v1666 = vpack.c.b16 %v1174, %v1168
    %v1667 = vpack.c.b16 %v1175, %v1169
    %v1668 = vpack.c.b16 %v1182, %v1176
    %v1669 = vpack.c.b16 %v1183, %v1177
    %v1670 = vpack.c.b16 %v1184, %v1178
    %v1671 = vpack.c.b16 %v1185, %v1179
    %v1672 = vpack.c.b16 %v1186, %v1180
    %v1673 = vpack.c.b16 %v1187, %v1181
    %v1674 = vpack.c.b16 %v1194, %v1188
    %v1675 = vpack.c.b16 %v1195, %v1189
    %v1676 = vpack.c.b16 %v1196, %v1190
    %v1677 = vpack.c.b16 %v1197, %v1191
    %v1678 = vpack.c.b16 %v1198, %v1192
    %v1679 = vpack.c.b16 %v1199, %v1193
    %v1680 = vpack.c.b16 %v1206, %v1200
    %v1681 = vpack.c.b16 %v1207, %v1201
    %v1682 = vpack.c.b16 %v1208, %v1202
    %v1683 = vpack.c.b16 %v1209, %v1203
    %v1684 = vpack.c.b16 %v1210, %v1204
    %v1685 = vpack.c.b16 %v1211, %v1205
    %v1686 = vpack.c.b16 %v1218, %v1212
    %v1687 = vpack.c.b16 %v1219, %v1213
    %v1688 = vpack.c.b16 %v1220, %v1214
    %v1689 = vpack.c.b16 %v1221, %v1215
    %v1690 = vpack.c.b16 %v1222, %v1216
    %v1691 = vpack.c.b16 %v1223, %v1217
    %v1692 = vpack.c.b16 %v1230, %v1224
    %v1693 = vpack.c.b16 %v1231, %v1225
    %v1694 = vpack.c.b16 %v1232, %v1226
    %v1695 = vpack.c.b16 %v1233, %v1227
    %v1696 = vpack.c.b16 %v1234, %v1228
    %v1697 = vpack.c.b16 %v1235, %v1229
    %v1698 = vpack.c.b16 %v1242, %v1236
    %v1699 = vpack.c.b16 %v1243, %v1237
    %v1700 = vpack.c.b16 %v1244, %v1238
    %v1701 = vpack.c.b16 %v1245, %v1239
    %v1702 = vpack.c.b16 %v1246, %v1240
    %v1703 = vpack.c.b16 %v1247, %v1241
    %v1704 = vpack.c.b16 %v1254, %v1248
    %v1705 = vpack.c.b16 %v1255, %v1249
    %v1706 = vpack.c.b16 %v1256, %v1250
    %v1707 = vpack.c.b16 %v1257, %v1251
    %v1708 = vpack.c.b16 %v1258, %v1252
    %v1709 = vpack.c.b16 %v1259, %v1253
    %v1710 = vpack.c.b16 %v1266, %v1260
    %v1711 = vpack.c.b16 %v1267, %v1261
    %v1712 = vpack.c.b16 %v1268, %v1262
    %v1713 = vpack.c.b16 %v1269, %v1263
    %v1714 = vpack.c.b16 %v1270, %v1264
    %v1715 = vpack.c.b16 %v1271, %v1265
    %v1716 = vpack.c.b16 %v1278, %v1272
    %v1717 = vpack.c.b16 %v1279, %v1273
    %v1718 = vpack.c.b16 %v1280, %v1274
    %v1719 = vpack.c.b16 %v1281, %v1275
    %v1720 = vpack.c.b16 %v1282, %v1276
    %v1721 = vpack.c.b16 %v1283, %v1277
    %v1722 = vpack.c.b16 %v1290, %v1284
    %v1723 = vpack.c.b16 %v1291, %v1285
    %v1724 = vpack.c.b16 %v1292, %v1286
    %v1725 = vpack.c.b16 %v1293, %v1287
    %v1726 = vpack.c.b16 %v1294, %v1288
    %v1727 = vpack.c.b16 %v1295, %v1289
    %v1728 = vpack.c.b16 %v1302, %v1296
    %v1729 = vpack.c.b16 %v1303, %v1297
    %v1730 = vpack.c.b16 %v1304, %v1298
    %v1731 = vpack.c.b16 %v1305, %v1299
    %v1732 = vpack.c.b16 %v1306, %v1300
    %v1733 = vpack.c.b16 %v1307, %v1301
    %v1734 = vpack.c.b16 %v1314, %v1308
    %v1735 = vpack.c.b16 %v1315, %v1309
    %v1736 = vpack.c.b16 %v1316, %v1310
    %v1737 = vpack.c.b16 %v1317, %v1311
    %v1738 = vpack.c.b16 %v1318, %v1312
    %v1739 = vpack.c.b16 %v1319, %v1313
    %v1740 = vpack.c.b16 %v1326, %v1320
    %v1741 = vpack.c.b16 %v1327, %v1321
    %v1742 = vpack.c.b16 %v1328, %v1322
    %v1743 = vpack.c.b16 %v1329, %v1323
    %v1744 = vpack.c.b16 %v1330, %v1324
    %v1745 = vpack.c.b16 %v1331, %v1325
    %v1746 = vpack.c.b16 %v1338, %v1332
    %v1747 = vpack.c.b16 %v1339, %v1333
    %v1748 = vpack.c.b16 %v1340, %v1334
    %v1749 = vpack.c.b16 %v1341, %v1335
    %v1750 = vpack.c.b16 %v1342, %v1336
    %v1751 = vpack.c.b16 %v1343, %v1337
    %v1752 = vpack.c.b16 %v1350, %v1344
    %v1753 = vpack.c.b16 %v1351, %v1345
    %v1754 = vpack.c.b16 %v1352, %v1346
    %v1755 = vpack.c.b16 %v1353, %v1347
    %v1756 = vpack.c.b16 %v1354, %v1348
    %v1757 = vpack.c.b16 %v1355, %v1349
    %v1758 = vpack.c.b16 %v1362, %v1356
    %v1759 = vpack.c.b16 %v1363, %v1357
    %v1760 = vpack.c.b16 %v1364, %v1358
    %v1761 = vpack.c.b16 %v1365, %v1359
    %v1762 = vpack.c.b16 %v1366, %v1360
    %v1763 = vpack.c.b16 %v1367, %v1361
    %v1764 = vpack.c.b16 %v1374, %v1368
    %v1765 = vpack.c.b16 %v1375, %v1369
    %v1766 = vpack.c.b16 %v1376, %v1370
    %v1767 = vpack.c.b16 %v1377, %v1371
    %v1768 = vpack.c.b16 %v1378, %v1372
    %v1769 = vpack.c.b16 %v1379, %v1373
    %v1770 = vpack.c.b16 %v1386, %v1380
    %v1771 = vpack.c.b16 %v1387, %v1381
    %v1772 = vpack.c.b16 %v1388, %v1382
    %v1773 = vpack.c.b16 %v1389, %v1383
    %v1774 = vpack.c.b16 %v1390, %v1384
    %v1775 = vpack.c.b16 %v1391, %v1385
    %v1776 = vpack.c.b16 %v1398, %v1392
    %v1777 = vpack.c.b16 %v1399, %v1393
    %v1778 = vpack.c.b16 %v1400, %v1394
    %v1779 = vpack.c.b16 %v1401, %v1395
    %v1780 = vpack.c.b16 %v1402, %v1396
    %v1781 = vpack.c.b16 %v1403, %v1397
    %v1782 = vpack.c.b16 %v1410, %v1404
    %v1783 = vpack.c.b16 %v1411, %v1405
    %v1784 = vpack.c.b16 %v1412, %v1406
    %v1785 = vpack.c.b16 %v1413, %v1407
    %v1786 = vpack.c.b16 %v1414, %v1408
    %v1787 = vpack.c.b16 %v1415, %v1409
    %v1788 = vpack.c.b16 %v1422, %v1416
    %v1789 = vpack.c.b16 %v1423, %v1417
    %v1790 = vpack.c.b16 %v1424, %v1418
    %v1791 = vpack.c.b16 %v1425, %v1419
    %v1792 = vpack.c.b16 %v1426, %v1420
    %v1793 = vpack.c.b16 %v1427, %v1421
    %v1794 = vpack.c.b16 %v1434, %v1428
    %v1795 = vpack.c.b16 %v1435, %v1429
    %v1796 = vpack.c.b16 %v1436, %v1430
    %v1797 = vpack.c.b16 %v1437, %v1431
    %v1798 = vpack.c.b16 %v1438, %v1432
    %v1799 = vpack.c.b16 %v1439, %v1433
    %v1800 = vpack.c.b16 %v1446, %v1440
    %v1801 = vpack.c.b16 %v1447, %v1441
    %v1802 = vpack.c.b16 %v1448, %v1442
    %v1803 = vpack.c.b16 %v1449, %v1443
    %v1804 = vpack.c.b16 %v1450, %v1444
    %v1805 = vpack.c.b16 %v1451, %v1445
    %v1806 = vpack.c.b16 %v1458, %v1452
    %v1807 = vpack.c.b16 %v1459, %v1453
    %v1808 = vpack.c.b16 %v1460, %v1454
    %v1809 = vpack.c.b16 %v1461, %v1455
    %v1810 = vpack.c.b16 %v1462, %v1456
    %v1811 = vpack.c.b16 %v1463, %v1457
    %v1812 = vpack.c.b16 %v1470, %v1464
    %v1813 = vpack.c.b16 %v1471, %v1465
    %v1814 = vpack.c.b16 %v1472, %v1466
    %v1815 = vpack.c.b16 %v1473, %v1467
    %v1816 = vpack.c.b16 %v1474, %v1468
    %v1817 = vpack.c.b16 %v1475, %v1469
    %v1818 = vpack.c.b16 %v1482, %v1476
    %v1819 = vpack.c.b16 %v1483, %v1477
    %v1820 = vpack.c.b16 %v1484, %v1478
    %v1821 = vpack.c.b16 %v1485, %v1479
    %v1822 = vpack.c.b16 %v1486, %v1480
    %v1823 = vpack.c.b16 %v1487, %v1481
    %v1824 = vpack.c.b16 %v1494, %v1488
    %v1825 = vpack.c.b16 %v1495, %v1489
    %v1826 = vpack.c.b16 %v1496, %v1490
    %v1827 = vpack.c.b16 %v1497, %v1491
    %v1828 = vpack.c.b16 %v1498, %v1492
    %v1829 = vpack.c.b16 %v1499, %v1493
    %v1830 = vpack.c.b16 %v1506, %v1500
    %v1831 = vpack.c.b16 %v1507, %v1501
    %v1832 = vpack.c.b16 %v1508, %v1502
    %v1833 = vpack.c.b16 %v1509, %v1503
    %v1834 = vpack.c.b16 %v1510, %v1504
    %v1835 = vpack.c.b16 %v1511, %v1505
    %v1836 = vpack.c.b16 %v1518, %v1512
    %v1837 = vpack.c.b16 %v1519, %v1513
    %v1838 = vpack.c.b16 %v1520, %v1514
    %v1839 = vpack.c.b16 %v1521, %v1515
    %v1840 = vpack.c.b16 %v1522, %v1516
    %v1841 = vpack.c.b16 %v1523, %v1517
    %v1842 = vpack.c.b16 %v1530, %v1524
    %v1843 = vpack.c.b16 %v1531, %v1525
    %v1844 = vpack.c.b16 %v1532, %v1526
    %v1845 = vpack.c.b16 %v1533, %v1527
    %v1846 = vpack.c.b16 %v1534, %v1528
    %v1847 = vpack.c.b16 %v1535, %v1529
    %v1848 = vpack.c.b16 %v1542, %v1536
    %v1849 = vpack.c.b16 %v1543, %v1537
    %v1850 = vpack.c.b16 %v1544, %v1538
    %v1851 = vpack.c.b16 %v1545, %v1539
    %v1852 = vpack.c.b16 %v1546, %v1540
    %v1853 = vpack.c.b16 %v1547, %v1541
    %v1854 = vpack.c.b16 %v1554, %v1548
    %v1855 = vpack.c.b16 %v1555, %v1549
    %v1856 = vpack.c.b16 %v1556, %v1550
    %v1857 = vpack.c.b16 %v1557, %v1551
    %v1858 = vpack.c.b16 %v1558, %v1552
    %v1859 = vpack.c.b16 %v1559, %v1553
    %v1860 = vpack.c.b16 %v1566, %v1560
    %v1861 = vpack.c.b16 %v1567, %v1561
    %v1862 = vpack.c.b16 %v1568, %v1562
    %v1863 = vpack.c.b16 %v1569, %v1563
    %v1864 = vpack.c.b16 %v1570, %v1564
    %v1865 = vpack.c.b16 %v1571, %v1565
    %v1866 = vpack.c.b16 %v1578, %v1572
    %v1867 = vpack.c.b16 %v1579, %v1573
    %v1868 = vpack.c.b16 %v1580, %v1574
    %v1869 = vpack.c.b16 %v1581, %v1575
    %v1870 = vpack.c.b16 %v1582, %v1576
    %v1871 = vpack.c.b16 %v1583, %v1577
    %2160 = vmatpush.bf16.msra.mxu0 %v1626
    %2161 = vmatpush.bf16.msra.mxu0 %v1620
    %2162 = vmatpush.bf16.msra.mxu0 %v1614
    %2163 = vmatpush.bf16.msra.mxu0 %v1608
    %2164 = vmatpush.bf16.msra.mxu0 %v1602
    %2165 = vmatpush.bf16.msra.mxu0 %v1596
    %2166 = vmatpush.bf16.msra.mxu0 %v1590
    %2167 = vmatpush.bf16.msra.mxu0 %v1584
    %2168 = vmatmul.bf16.gmra.mxu0 %v624
    %v2169 = vpop.f32.mrf.mxu0
    %v2170 = vadd.f32 %v468, %v2169
    %v2171 = vpop.f32.mrf.mxu0
    %v2172 = vadd.f32 %v468, %v2171
    %2173 = vmatmul.bf16.gmra.mxu0 %v630
    %v2174 = vpop.f32.mrf.mxu0
    %v2175 = vadd.f32 %v468, %v2174
    %v2176 = vpop.f32.mrf.mxu0
    %v2177 = vadd.f32 %v468, %v2176
    %2178 = vmatmul.bf16.gmra.mxu0 %v636
    %v2179 = vpop.f32.mrf.mxu0
    %v2180 = vadd.f32 %v468, %v2179
    %v2181 = vpop.f32.mrf.mxu0
    %v2182 = vadd.f32 %v468, %v2181
    %2183 = vmatmul.bf16.gmra.mxu0 %v642
    %v2184 = vpop.f32.mrf.mxu0
    %v2185 = vadd.f32 %v468, %v2184
    %v2186 = vpop.f32.mrf.mxu0
    %v2187 = vadd.f32 %v468, %v2186
    %2188 = vmatmul.bf16.gmra.mxu0 %v648
    %v2189 = vpop.f32.mrf.mxu0
    %v2190 = vadd.f32 %v468, %v2189
    %v2191 = vpop.f32.mrf.mxu0
    %v2192 = vadd.f32 %v468, %v2191
    %2193 = vmatmul.bf16.gmra.mxu0 %v654
    %v2194 = vpop.f32.mrf.mxu0
    %v2195 = vadd.f32 %v468, %v2194
    %v2196 = vpop.f32.mrf.mxu0
    %v2197 = vadd.f32 %v468, %v2196
    %2198 = vmatmul.bf16.gmra.mxu0 %v660
    %v2199 = vpop.f32.mrf.mxu0
    %v2200 = vadd.f32 %v468, %v2199
    %v2201 = vpop.f32.mrf.mxu0
    %v2202 = vadd.f32 %v468, %v2201
    %2203 = vmatmul.bf16.gmra.mxu0 %v666
    %v2204 = vpop.f32.mrf.mxu0
    %v2205 = vadd.f32 %v468, %v2204
    %v2206 = vpop.f32.mrf.mxu0
    %v2207 = vadd.f32 %v468, %v2206
    %2208 = vdwg.mxu0
    %2209 = vmatpush.bf16.msra.mxu0 %v1674
    %2210 = vmatpush.bf16.msra.mxu0 %v1668
    %2211 = vmatpush.bf16.msra.mxu0 %v1662
    %2212 = vmatpush.bf16.msra.mxu0 %v1656
    %2213 = vmatpush.bf16.msra.mxu0 %v1650
    %2214 = vmatpush.bf16.msra.mxu0 %v1644
    %2215 = vmatpush.bf16.msra.mxu0 %v1638
    %2216 = vmatpush.bf16.msra.mxu0 %v1632
    %2217 = vmatmul.bf16.gmra.mxu0 %v625
    %v2218 = vpop.f32.mrf.mxu0
    %v2219 = vadd.f32 %v2170, %v2218
    %v2220 = vpop.f32.mrf.mxu0
    %v2221 = vadd.f32 %v2172, %v2220
    %2222 = vmatmul.bf16.gmra.mxu0 %v631
    %v2223 = vpop.f32.mrf.mxu0
    %v2224 = vadd.f32 %v2175, %v2223
    %v2225 = vpop.f32.mrf.mxu0
    %v2226 = vadd.f32 %v2177, %v2225
    %2227 = vmatmul.bf16.gmra.mxu0 %v637
    %v2228 = vpop.f32.mrf.mxu0
    %v2229 = vadd.f32 %v2180, %v2228
    %v2230 = vpop.f32.mrf.mxu0
    %v2231 = vadd.f32 %v2182, %v2230
    %2232 = vmatmul.bf16.gmra.mxu0 %v643
    %v2233 = vpop.f32.mrf.mxu0
    %v2234 = vadd.f32 %v2185, %v2233
    %v2235 = vpop.f32.mrf.mxu0
    %v2236 = vadd.f32 %v2187, %v2235
    %2237 = vmatmul.bf16.gmra.mxu0 %v649
    %v2238 = vpop.f32.mrf.mxu0
    %v2239 = vadd.f32 %v2190, %v2238
    %v2240 = vpop.f32.mrf.mxu0
    %v2241 = vadd.f32 %v2192, %v2240
    %2242 = vmatmul.bf16.gmra.mxu0 %v655
    %v2243 = vpop.f32.mrf.mxu0
    %v2244 = vadd.f32 %v2195, %v2243
    %v2245 = vpop.f32.mrf.mxu0
    %v2246 = vadd.f32 %v2197, %v2245
    %2247 = vmatmul.bf16.gmra.mxu0 %v661
    %v2248 = vpop.f32.mrf.mxu0
    %v2249 = vadd.f32 %v2200, %v2248
    %v2250 = vpop.f32.mrf.mxu0
    %v2251 = vadd.f32 %v2202, %v2250
    %2252 = vmatmul.bf16.gmra.mxu0 %v667
    %v2253 = vpop.f32.mrf.mxu0
    %v2254 = vadd.f32 %v2205, %v2253
    %v2255 = vpop.f32.mrf.mxu0
    %v2256 = vadd.f32 %v2207, %v2255
    %2257 = vdwg.mxu0
    %2258 = vmatpush.bf16.msra.mxu0 %v1722
    %2259 = vmatpush.bf16.msra.mxu0 %v1716
    %2260 = vmatpush.bf16.msra.mxu0 %v1710
    %2261 = vmatpush.bf16.msra.mxu0 %v1704
    %2262 = vmatpush.bf16.msra.mxu0 %v1698
    %2263 = vmatpush.bf16.msra.mxu0 %v1692
    %2264 = vmatpush.bf16.msra.mxu0 %v1686
    %2265 = vmatpush.bf16.msra.mxu0 %v1680
    %2266 = vmatmul.bf16.gmra.mxu0 %v626
    %v2267 = vpop.f32.mrf.mxu0
    %v2268 = vadd.f32 %v2219, %v2267
    %v2269 = vpop.f32.mrf.mxu0
    %v2270 = vadd.f32 %v2221, %v2269
    %2271 = vmatmul.bf16.gmra.mxu0 %v632
    %v2272 = vpop.f32.mrf.mxu0
    %v2273 = vadd.f32 %v2224, %v2272
    %v2274 = vpop.f32.mrf.mxu0
    %v2275 = vadd.f32 %v2226, %v2274
    %2276 = vmatmul.bf16.gmra.mxu0 %v638
    %v2277 = vpop.f32.mrf.mxu0
    %v2278 = vadd.f32 %v2229, %v2277
    %v2279 = vpop.f32.mrf.mxu0
    %v2280 = vadd.f32 %v2231, %v2279
    %2281 = vmatmul.bf16.gmra.mxu0 %v644
    %v2282 = vpop.f32.mrf.mxu0
    %v2283 = vadd.f32 %v2234, %v2282
    %v2284 = vpop.f32.mrf.mxu0
    %v2285 = vadd.f32 %v2236, %v2284
    %2286 = vmatmul.bf16.gmra.mxu0 %v650
    %v2287 = vpop.f32.mrf.mxu0
    %v2288 = vadd.f32 %v2239, %v2287
    %v2289 = vpop.f32.mrf.mxu0
    %v2290 = vadd.f32 %v2241, %v2289
    %2291 = vmatmul.bf16.gmra.mxu0 %v656
    %v2292 = vpop.f32.mrf.mxu0
    %v2293 = vadd.f32 %v2244, %v2292
    %v2294 = vpop.f32.mrf.mxu0
    %v2295 = vadd.f32 %v2246, %v2294
    %2296 = vmatmul.bf16.gmra.mxu0 %v662
    %v2297 = vpop.f32.mrf.mxu0
    %v2298 = vadd.f32 %v2249, %v2297
    %v2299 = vpop.f32.mrf.mxu0
    %v2300 = vadd.f32 %v2251, %v2299
    %2301 = vmatmul.bf16.gmra.mxu0 %v668
    %v2302 = vpop.f32.mrf.mxu0
    %v2303 = vadd.f32 %v2254, %v2302
    %v2304 = vpop.f32.mrf.mxu0
    %v2305 = vadd.f32 %v2256, %v2304
    %2306 = vdwg.mxu0
    %2307 = vmatpush.bf16.msra.mxu0 %v1770
    %2308 = vmatpush.bf16.msra.mxu0 %v1764
    %2309 = vmatpush.bf16.msra.mxu0 %v1758
    %2310 = vmatpush.bf16.msra.mxu0 %v1752
    %2311 = vmatpush.bf16.msra.mxu0 %v1746
    %2312 = vmatpush.bf16.msra.mxu0 %v1740
    %2313 = vmatpush.bf16.msra.mxu0 %v1734
    %2314 = vmatpush.bf16.msra.mxu0 %v1728
    %2315 = vmatmul.bf16.gmra.mxu0 %v627
    %v2316 = vpop.f32.mrf.mxu0
    %v2317 = vadd.f32 %v2268, %v2316
    %v2318 = vpop.f32.mrf.mxu0
    %v2319 = vadd.f32 %v2270, %v2318
    %2320 = vmatmul.bf16.gmra.mxu0 %v633
    %v2321 = vpop.f32.mrf.mxu0
    %v2322 = vadd.f32 %v2273, %v2321
    %v2323 = vpop.f32.mrf.mxu0
    %v2324 = vadd.f32 %v2275, %v2323
    %2325 = vmatmul.bf16.gmra.mxu0 %v639
    %v2326 = vpop.f32.mrf.mxu0
    %v2327 = vadd.f32 %v2278, %v2326
    %v2328 = vpop.f32.mrf.mxu0
    %v2329 = vadd.f32 %v2280, %v2328
    %2330 = vmatmul.bf16.gmra.mxu0 %v645
    %v2331 = vpop.f32.mrf.mxu0
    %v2332 = vadd.f32 %v2283, %v2331
    %v2333 = vpop.f32.mrf.mxu0
    %v2334 = vadd.f32 %v2285, %v2333
    %2335 = vmatmul.bf16.gmra.mxu0 %v651
    %v2336 = vpop.f32.mrf.mxu0
    %v2337 = vadd.f32 %v2288, %v2336
    %v2338 = vpop.f32.mrf.mxu0
    %v2339 = vadd.f32 %v2290, %v2338
    %2340 = vmatmul.bf16.gmra.mxu0 %v657
    %v2341 = vpop.f32.mrf.mxu0
    %v2342 = vadd.f32 %v2293, %v2341
    %v2343 = vpop.f32.mrf.mxu0
    %v2344 = vadd.f32 %v2295, %v2343
    %2345 = vmatmul.bf16.gmra.mxu0 %v663
    %v2346 = vpop.f32.mrf.mxu0
    %v2347 = vadd.f32 %v2298, %v2346
    %v2348 = vpop.f32.mrf.mxu0
    %v2349 = vadd.f32 %v2300, %v2348
    %2350 = vmatmul.bf16.gmra.mxu0 %v669
    %v2351 = vpop.f32.mrf.mxu0
    %v2352 = vadd.f32 %v2303, %v2351
    %v2353 = vpop.f32.mrf.mxu0
    %v2354 = vadd.f32 %v2305, %v2353
    %2355 = vdwg.mxu0
    %2356 = vmatpush.bf16.msra.mxu0 %v1818
    %2357 = vmatpush.bf16.msra.mxu0 %v1812
    %2358 = vmatpush.bf16.msra.mxu0 %v1806
    %2359 = vmatpush.bf16.msra.mxu0 %v1800
    %2360 = vmatpush.bf16.msra.mxu0 %v1794
    %2361 = vmatpush.bf16.msra.mxu0 %v1788
    %2362 = vmatpush.bf16.msra.mxu0 %v1782
    %2363 = vmatpush.bf16.msra.mxu0 %v1776
    %2364 = vmatmul.bf16.gmra.mxu0 %v628
    %v2365 = vpop.f32.mrf.mxu0
    %v2366 = vadd.f32 %v2317, %v2365
    %v2367 = vpop.f32.mrf.mxu0
    %v2368 = vadd.f32 %v2319, %v2367
    %2369 = vmatmul.bf16.gmra.mxu0 %v634
    %v2370 = vpop.f32.mrf.mxu0
    %v2371 = vadd.f32 %v2322, %v2370
    %v2372 = vpop.f32.mrf.mxu0
    %v2373 = vadd.f32 %v2324, %v2372
    %2374 = vmatmul.bf16.gmra.mxu0 %v640
    %v2375 = vpop.f32.mrf.mxu0
    %v2376 = vadd.f32 %v2327, %v2375
    %v2377 = vpop.f32.mrf.mxu0
    %v2378 = vadd.f32 %v2329, %v2377
    %2379 = vmatmul.bf16.gmra.mxu0 %v646
    %v2380 = vpop.f32.mrf.mxu0
    %v2381 = vadd.f32 %v2332, %v2380
    %v2382 = vpop.f32.mrf.mxu0
    %v2383 = vadd.f32 %v2334, %v2382
    %2384 = vmatmul.bf16.gmra.mxu0 %v652
    %v2385 = vpop.f32.mrf.mxu0
    %v2386 = vadd.f32 %v2337, %v2385
    %v2387 = vpop.f32.mrf.mxu0
    %v2388 = vadd.f32 %v2339, %v2387
    %2389 = vmatmul.bf16.gmra.mxu0 %v658
    %v2390 = vpop.f32.mrf.mxu0
    %v2391 = vadd.f32 %v2342, %v2390
    %v2392 = vpop.f32.mrf.mxu0
    %v2393 = vadd.f32 %v2344, %v2392
    %2394 = vmatmul.bf16.gmra.mxu0 %v664
    %v2395 = vpop.f32.mrf.mxu0
    %v2396 = vadd.f32 %v2347, %v2395
    %v2397 = vpop.f32.mrf.mxu0
    %v2398 = vadd.f32 %v2349, %v2397
    %2399 = vmatmul.bf16.gmra.mxu0 %v670
    %v2400 = vpop.f32.mrf.mxu0
    %v2401 = vadd.f32 %v2352, %v2400
    %v2402 = vpop.f32.mrf.mxu0
    %v2403 = vadd.f32 %v2354, %v2402
    %2404 = vdwg.mxu0
    %2405 = vmatpush.bf16.msra.mxu0 %v1866
    %2406 = vmatpush.bf16.msra.mxu0 %v1860
    %2407 = vmatpush.bf16.msra.mxu0 %v1854
    %2408 = vmatpush.bf16.msra.mxu0 %v1848
    %2409 = vmatpush.bf16.msra.mxu0 %v1842
    %2410 = vmatpush.bf16.msra.mxu0 %v1836
    %2411 = vmatpush.bf16.msra.mxu0 %v1830
    %2412 = vmatpush.bf16.msra.mxu0 %v1824
    %2413 = vmatmul.bf16.gmra.mxu0 %v629
    %v2414 = vpop.f32.mrf.mxu0
    %v2415 = vadd.f32 %v2366, %v2414
    %v2416 = vpop.f32.mrf.mxu0
    %v2417 = vadd.f32 %v2368, %v2416
    %2418 = vmatmul.bf16.gmra.mxu0 %v635
    %v2419 = vpop.f32.mrf.mxu0
    %v2420 = vadd.f32 %v2371, %v2419
    %v2421 = vpop.f32.mrf.mxu0
    %v2422 = vadd.f32 %v2373, %v2421
    %2423 = vmatmul.bf16.gmra.mxu0 %v641
    %v2424 = vpop.f32.mrf.mxu0
    %v2425 = vadd.f32 %v2376, %v2424
    %v2426 = vpop.f32.mrf.mxu0
    %v2427 = vadd.f32 %v2378, %v2426
    %2428 = vmatmul.bf16.gmra.mxu0 %v647
    %v2429 = vpop.f32.mrf.mxu0
    %v2430 = vadd.f32 %v2381, %v2429
    %v2431 = vpop.f32.mrf.mxu0
    %v2432 = vadd.f32 %v2383, %v2431
    %2433 = vmatmul.bf16.gmra.mxu0 %v653
    %v2434 = vpop.f32.mrf.mxu0
    %v2435 = vadd.f32 %v2386, %v2434
    %v2436 = vpop.f32.mrf.mxu0
    %v2437 = vadd.f32 %v2388, %v2436
    %2438 = vmatmul.bf16.gmra.mxu0 %v659
    %v2439 = vpop.f32.mrf.mxu0
    %v2440 = vadd.f32 %v2391, %v2439
    %v2441 = vpop.f32.mrf.mxu0
    %v2442 = vadd.f32 %v2393, %v2441
    %2443 = vmatmul.bf16.gmra.mxu0 %v665
    %v2444 = vpop.f32.mrf.mxu0
    %v2445 = vadd.f32 %v2396, %v2444
    %v2446 = vpop.f32.mrf.mxu0
    %v2447 = vadd.f32 %v2398, %v2446
    %2448 = vmatmul.bf16.gmra.mxu0 %v671
    %v2449 = vpop.f32.mrf.mxu0
    %v2450 = vadd.f32 %v2401, %v2449
    %v2451 = vpop.f32.mrf.mxu0
    %v2452 = vadd.f32 %v2403, %v2451
    %2453 = vdwg.mxu0
    %2454 = vmatpush.bf16.msra.mxu0 %v1627
    %2455 = vmatpush.bf16.msra.mxu0 %v1621
    %2456 = vmatpush.bf16.msra.mxu0 %v1615
    %2457 = vmatpush.bf16.msra.mxu0 %v1609
    %2458 = vmatpush.bf16.msra.mxu0 %v1603
    %2459 = vmatpush.bf16.msra.mxu0 %v1597
    %2460 = vmatpush.bf16.msra.mxu0 %v1591
    %2461 = vmatpush.bf16.msra.mxu0 %v1585
    %2462 = vmatmul.bf16.gmra.mxu0 %v624
    %v2463 = vpop.f32.mrf.mxu0
    %v2464 = vadd.f32 %v469, %v2463
    %v2465 = vpop.f32.mrf.mxu0
    %v2466 = vadd.f32 %v469, %v2465
    %2467 = vmatmul.bf16.gmra.mxu0 %v630
    %v2468 = vpop.f32.mrf.mxu0
    %v2469 = vadd.f32 %v469, %v2468
    %v2470 = vpop.f32.mrf.mxu0
    %v2471 = vadd.f32 %v469, %v2470
    %2472 = vmatmul.bf16.gmra.mxu0 %v636
    %v2473 = vpop.f32.mrf.mxu0
    %v2474 = vadd.f32 %v469, %v2473
    %v2475 = vpop.f32.mrf.mxu0
    %v2476 = vadd.f32 %v469, %v2475
    %2477 = vmatmul.bf16.gmra.mxu0 %v642
    %v2478 = vpop.f32.mrf.mxu0
    %v2479 = vadd.f32 %v469, %v2478
    %v2480 = vpop.f32.mrf.mxu0
    %v2481 = vadd.f32 %v469, %v2480
    %2482 = vmatmul.bf16.gmra.mxu0 %v648
    %v2483 = vpop.f32.mrf.mxu0
    %v2484 = vadd.f32 %v469, %v2483
    %v2485 = vpop.f32.mrf.mxu0
    %v2486 = vadd.f32 %v469, %v2485
    %2487 = vmatmul.bf16.gmra.mxu0 %v654
    %v2488 = vpop.f32.mrf.mxu0
    %v2489 = vadd.f32 %v469, %v2488
    %v2490 = vpop.f32.mrf.mxu0
    %v2491 = vadd.f32 %v469, %v2490
    %2492 = vmatmul.bf16.gmra.mxu0 %v660
    %v2493 = vpop.f32.mrf.mxu0
    %v2494 = vadd.f32 %v469, %v2493
    %v2495 = vpop.f32.mrf.mxu0
    %v2496 = vadd.f32 %v469, %v2495
    %2497 = vmatmul.bf16.gmra.mxu0 %v666
    %v2498 = vpop.f32.mrf.mxu0
    %v2499 = vadd.f32 %v469, %v2498
    %v2500 = vpop.f32.mrf.mxu0
    %v2501 = vadd.f32 %v469, %v2500
    %2502 = vdwg.mxu0
    %2503 = vmatpush.bf16.msra.mxu0 %v1675
    %2504 = vmatpush.bf16.msra.mxu0 %v1669
    %2505 = vmatpush.bf16.msra.mxu0 %v1663
    %2506 = vmatpush.bf16.msra.mxu0 %v1657
    %2507 = vmatpush.bf16.msra.mxu0 %v1651
    %2508 = vmatpush.bf16.msra.mxu0 %v1645
    %2509 = vmatpush.bf16.msra.mxu0 %v1639
    %2510 = vmatpush.bf16.msra.mxu0 %v1633
    %2511 = vmatmul.bf16.gmra.mxu0 %v625
    %v2512 = vpop.f32.mrf.mxu0
    %v2513 = vadd.f32 %v2464, %v2512
    %v2514 = vpop.f32.mrf.mxu0
    %v2515 = vadd.f32 %v2466, %v2514
    %2516 = vmatmul.bf16.gmra.mxu0 %v631
    %v2517 = vpop.f32.mrf.mxu0
    %v2518 = vadd.f32 %v2469, %v2517
    %v2519 = vpop.f32.mrf.mxu0
    %v2520 = vadd.f32 %v2471, %v2519
    %2521 = vmatmul.bf16.gmra.mxu0 %v637
    %v2522 = vpop.f32.mrf.mxu0
    %v2523 = vadd.f32 %v2474, %v2522
    %v2524 = vpop.f32.mrf.mxu0
    %v2525 = vadd.f32 %v2476, %v2524
    %2526 = vmatmul.bf16.gmra.mxu0 %v643
    %v2527 = vpop.f32.mrf.mxu0
    %v2528 = vadd.f32 %v2479, %v2527
    %v2529 = vpop.f32.mrf.mxu0
    %v2530 = vadd.f32 %v2481, %v2529
    %2531 = vmatmul.bf16.gmra.mxu0 %v649
    %v2532 = vpop.f32.mrf.mxu0
    %v2533 = vadd.f32 %v2484, %v2532
    %v2534 = vpop.f32.mrf.mxu0
    %v2535 = vadd.f32 %v2486, %v2534
    %2536 = vmatmul.bf16.gmra.mxu0 %v655
    %v2537 = vpop.f32.mrf.mxu0
    %v2538 = vadd.f32 %v2489, %v2537
    %v2539 = vpop.f32.mrf.mxu0
    %v2540 = vadd.f32 %v2491, %v2539
    %2541 = vmatmul.bf16.gmra.mxu0 %v661
    %v2542 = vpop.f32.mrf.mxu0
    %v2543 = vadd.f32 %v2494, %v2542
    %v2544 = vpop.f32.mrf.mxu0
    %v2545 = vadd.f32 %v2496, %v2544
    %2546 = vmatmul.bf16.gmra.mxu0 %v667
    %v2547 = vpop.f32.mrf.mxu0
    %v2548 = vadd.f32 %v2499, %v2547
    %v2549 = vpop.f32.mrf.mxu0
    %v2550 = vadd.f32 %v2501, %v2549
    %2551 = vdwg.mxu0
    %2552 = vmatpush.bf16.msra.mxu0 %v1723
    %2553 = vmatpush.bf16.msra.mxu0 %v1717
    %2554 = vmatpush.bf16.msra.mxu0 %v1711
    %2555 = vmatpush.bf16.msra.mxu0 %v1705
    %2556 = vmatpush.bf16.msra.mxu0 %v1699
    %2557 = vmatpush.bf16.msra.mxu0 %v1693
    %2558 = vmatpush.bf16.msra.mxu0 %v1687
    %2559 = vmatpush.bf16.msra.mxu0 %v1681
    %2560 = vmatmul.bf16.gmra.mxu0 %v626
    %v2561 = vpop.f32.mrf.mxu0
    %v2562 = vadd.f32 %v2513, %v2561
    %v2563 = vpop.f32.mrf.mxu0
    %v2564 = vadd.f32 %v2515, %v2563
    %2565 = vmatmul.bf16.gmra.mxu0 %v632
    %v2566 = vpop.f32.mrf.mxu0
    %v2567 = vadd.f32 %v2518, %v2566
    %v2568 = vpop.f32.mrf.mxu0
    %v2569 = vadd.f32 %v2520, %v2568
    %2570 = vmatmul.bf16.gmra.mxu0 %v638
    %v2571 = vpop.f32.mrf.mxu0
    %v2572 = vadd.f32 %v2523, %v2571
    %v2573 = vpop.f32.mrf.mxu0
    %v2574 = vadd.f32 %v2525, %v2573
    %2575 = vmatmul.bf16.gmra.mxu0 %v644
    %v2576 = vpop.f32.mrf.mxu0
    %v2577 = vadd.f32 %v2528, %v2576
    %v2578 = vpop.f32.mrf.mxu0
    %v2579 = vadd.f32 %v2530, %v2578
    %2580 = vmatmul.bf16.gmra.mxu0 %v650
    %v2581 = vpop.f32.mrf.mxu0
    %v2582 = vadd.f32 %v2533, %v2581
    %v2583 = vpop.f32.mrf.mxu0
    %v2584 = vadd.f32 %v2535, %v2583
    %2585 = vmatmul.bf16.gmra.mxu0 %v656
    %v2586 = vpop.f32.mrf.mxu0
    %v2587 = vadd.f32 %v2538, %v2586
    %v2588 = vpop.f32.mrf.mxu0
    %v2589 = vadd.f32 %v2540, %v2588
    %2590 = vmatmul.bf16.gmra.mxu0 %v662
    %v2591 = vpop.f32.mrf.mxu0
    %v2592 = vadd.f32 %v2543, %v2591
    %v2593 = vpop.f32.mrf.mxu0
    %v2594 = vadd.f32 %v2545, %v2593
    %2595 = vmatmul.bf16.gmra.mxu0 %v668
    %v2596 = vpop.f32.mrf.mxu0
    %v2597 = vadd.f32 %v2548, %v2596
    %v2598 = vpop.f32.mrf.mxu0
    %v2599 = vadd.f32 %v2550, %v2598
    %2600 = vdwg.mxu0
    %2601 = vmatpush.bf16.msra.mxu0 %v1771
    %2602 = vmatpush.bf16.msra.mxu0 %v1765
    %2603 = vmatpush.bf16.msra.mxu0 %v1759
    %2604 = vmatpush.bf16.msra.mxu0 %v1753
    %2605 = vmatpush.bf16.msra.mxu0 %v1747
    %2606 = vmatpush.bf16.msra.mxu0 %v1741
    %2607 = vmatpush.bf16.msra.mxu0 %v1735
    %2608 = vmatpush.bf16.msra.mxu0 %v1729
    %2609 = vmatmul.bf16.gmra.mxu0 %v627
    %v2610 = vpop.f32.mrf.mxu0
    %v2611 = vadd.f32 %v2562, %v2610
    %v2612 = vpop.f32.mrf.mxu0
    %v2613 = vadd.f32 %v2564, %v2612
    %2614 = vmatmul.bf16.gmra.mxu0 %v633
    %v2615 = vpop.f32.mrf.mxu0
    %v2616 = vadd.f32 %v2567, %v2615
    %v2617 = vpop.f32.mrf.mxu0
    %v2618 = vadd.f32 %v2569, %v2617
    %2619 = vmatmul.bf16.gmra.mxu0 %v639
    %v2620 = vpop.f32.mrf.mxu0
    %v2621 = vadd.f32 %v2572, %v2620
    %v2622 = vpop.f32.mrf.mxu0
    %v2623 = vadd.f32 %v2574, %v2622
    %2624 = vmatmul.bf16.gmra.mxu0 %v645
    %v2625 = vpop.f32.mrf.mxu0
    %v2626 = vadd.f32 %v2577, %v2625
    %v2627 = vpop.f32.mrf.mxu0
    %v2628 = vadd.f32 %v2579, %v2627
    %2629 = vmatmul.bf16.gmra.mxu0 %v651
    %v2630 = vpop.f32.mrf.mxu0
    %v2631 = vadd.f32 %v2582, %v2630
    %v2632 = vpop.f32.mrf.mxu0
    %v2633 = vadd.f32 %v2584, %v2632
    %2634 = vmatmul.bf16.gmra.mxu0 %v657
    %v2635 = vpop.f32.mrf.mxu0
    %v2636 = vadd.f32 %v2587, %v2635
    %v2637 = vpop.f32.mrf.mxu0
    %v2638 = vadd.f32 %v2589, %v2637
    %2639 = vmatmul.bf16.gmra.mxu0 %v663
    %v2640 = vpop.f32.mrf.mxu0
    %v2641 = vadd.f32 %v2592, %v2640
    %v2642 = vpop.f32.mrf.mxu0
    %v2643 = vadd.f32 %v2594, %v2642
    %2644 = vmatmul.bf16.gmra.mxu0 %v669
    %v2645 = vpop.f32.mrf.mxu0
    %v2646 = vadd.f32 %v2597, %v2645
    %v2647 = vpop.f32.mrf.mxu0
    %v2648 = vadd.f32 %v2599, %v2647
    %2649 = vdwg.mxu0
    %2650 = vmatpush.bf16.msra.mxu0 %v1819
    %2651 = vmatpush.bf16.msra.mxu0 %v1813
    %2652 = vmatpush.bf16.msra.mxu0 %v1807
    %2653 = vmatpush.bf16.msra.mxu0 %v1801
    %2654 = vmatpush.bf16.msra.mxu0 %v1795
    %2655 = vmatpush.bf16.msra.mxu0 %v1789
    %2656 = vmatpush.bf16.msra.mxu0 %v1783
    %2657 = vmatpush.bf16.msra.mxu0 %v1777
    %2658 = vmatmul.bf16.gmra.mxu0 %v628
    %v2659 = vpop.f32.mrf.mxu0
    %v2660 = vadd.f32 %v2611, %v2659
    %v2661 = vpop.f32.mrf.mxu0
    %v2662 = vadd.f32 %v2613, %v2661
    %2663 = vmatmul.bf16.gmra.mxu0 %v634
    %v2664 = vpop.f32.mrf.mxu0
    %v2665 = vadd.f32 %v2616, %v2664
    %v2666 = vpop.f32.mrf.mxu0
    %v2667 = vadd.f32 %v2618, %v2666
    %2668 = vmatmul.bf16.gmra.mxu0 %v640
    %v2669 = vpop.f32.mrf.mxu0
    %v2670 = vadd.f32 %v2621, %v2669
    %v2671 = vpop.f32.mrf.mxu0
    %v2672 = vadd.f32 %v2623, %v2671
    %2673 = vmatmul.bf16.gmra.mxu0 %v646
    %v2674 = vpop.f32.mrf.mxu0
    %v2675 = vadd.f32 %v2626, %v2674
    %v2676 = vpop.f32.mrf.mxu0
    %v2677 = vadd.f32 %v2628, %v2676
    %2678 = vmatmul.bf16.gmra.mxu0 %v652
    %v2679 = vpop.f32.mrf.mxu0
    %v2680 = vadd.f32 %v2631, %v2679
    %v2681 = vpop.f32.mrf.mxu0
    %v2682 = vadd.f32 %v2633, %v2681
    %2683 = vmatmul.bf16.gmra.mxu0 %v658
    %v2684 = vpop.f32.mrf.mxu0
    %v2685 = vadd.f32 %v2636, %v2684
    %v2686 = vpop.f32.mrf.mxu0
    %v2687 = vadd.f32 %v2638, %v2686
    %2688 = vmatmul.bf16.gmra.mxu0 %v664
    %v2689 = vpop.f32.mrf.mxu0
    %v2690 = vadd.f32 %v2641, %v2689
    %v2691 = vpop.f32.mrf.mxu0
    %v2692 = vadd.f32 %v2643, %v2691
    %2693 = vmatmul.bf16.gmra.mxu0 %v670
    %v2694 = vpop.f32.mrf.mxu0
    %v2695 = vadd.f32 %v2646, %v2694
    %v2696 = vpop.f32.mrf.mxu0
    %v2697 = vadd.f32 %v2648, %v2696
    %2698 = vdwg.mxu0
    %2699 = vmatpush.bf16.msra.mxu0 %v1867
    %2700 = vmatpush.bf16.msra.mxu0 %v1861
    %2701 = vmatpush.bf16.msra.mxu0 %v1855
    %2702 = vmatpush.bf16.msra.mxu0 %v1849
    %2703 = vmatpush.bf16.msra.mxu0 %v1843
    %2704 = vmatpush.bf16.msra.mxu0 %v1837
    %2705 = vmatpush.bf16.msra.mxu0 %v1831
    %2706 = vmatpush.bf16.msra.mxu0 %v1825
    %2707 = vmatmul.bf16.gmra.mxu0 %v629
    %v2708 = vpop.f32.mrf.mxu0
    %v2709 = vadd.f32 %v2660, %v2708
    %v2710 = vpop.f32.mrf.mxu0
    %v2711 = vadd.f32 %v2662, %v2710
    %2712 = vmatmul.bf16.gmra.mxu0 %v635
    %v2713 = vpop.f32.mrf.mxu0
    %v2714 = vadd.f32 %v2665, %v2713
    %v2715 = vpop.f32.mrf.mxu0
    %v2716 = vadd.f32 %v2667, %v2715
    %2717 = vmatmul.bf16.gmra.mxu0 %v641
    %v2718 = vpop.f32.mrf.mxu0
    %v2719 = vadd.f32 %v2670, %v2718
    %v2720 = vpop.f32.mrf.mxu0
    %v2721 = vadd.f32 %v2672, %v2720
    %2722 = vmatmul.bf16.gmra.mxu0 %v647
    %v2723 = vpop.f32.mrf.mxu0
    %v2724 = vadd.f32 %v2675, %v2723
    %v2725 = vpop.f32.mrf.mxu0
    %v2726 = vadd.f32 %v2677, %v2725
    %2727 = vmatmul.bf16.gmra.mxu0 %v653
    %v2728 = vpop.f32.mrf.mxu0
    %v2729 = vadd.f32 %v2680, %v2728
    %v2730 = vpop.f32.mrf.mxu0
    %v2731 = vadd.f32 %v2682, %v2730
    %2732 = vmatmul.bf16.gmra.mxu0 %v659
    %v2733 = vpop.f32.mrf.mxu0
    %v2734 = vadd.f32 %v2685, %v2733
    %v2735 = vpop.f32.mrf.mxu0
    %v2736 = vadd.f32 %v2687, %v2735
    %2737 = vmatmul.bf16.gmra.mxu0 %v665
    %v2738 = vpop.f32.mrf.mxu0
    %v2739 = vadd.f32 %v2690, %v2738
    %v2740 = vpop.f32.mrf.mxu0
    %v2741 = vadd.f32 %v2692, %v2740
    %2742 = vmatmul.bf16.gmra.mxu0 %v671
    %v2743 = vpop.f32.mrf.mxu0
    %v2744 = vadd.f32 %v2695, %v2743
    %v2745 = vpop.f32.mrf.mxu0
    %v2746 = vadd.f32 %v2697, %v2745
    %2747 = vdwg.mxu0
    %2748 = vmatpush.bf16.msra.mxu0 %v1628
    %2749 = vmatpush.bf16.msra.mxu0 %v1622
    %2750 = vmatpush.bf16.msra.mxu0 %v1616
    %2751 = vmatpush.bf16.msra.mxu0 %v1610
    %2752 = vmatpush.bf16.msra.mxu0 %v1604
    %2753 = vmatpush.bf16.msra.mxu0 %v1598
    %2754 = vmatpush.bf16.msra.mxu0 %v1592
    %2755 = vmatpush.bf16.msra.mxu0 %v1586
    %2756 = vmatmul.bf16.gmra.mxu0 %v624
    %v2757 = vpop.f32.mrf.mxu0
    %v2758 = vadd.f32 %v470, %v2757
    %v2759 = vpop.f32.mrf.mxu0
    %v2760 = vadd.f32 %v470, %v2759
    %2761 = vmatmul.bf16.gmra.mxu0 %v630
    %v2762 = vpop.f32.mrf.mxu0
    %v2763 = vadd.f32 %v470, %v2762
    %v2764 = vpop.f32.mrf.mxu0
    %v2765 = vadd.f32 %v470, %v2764
    %2766 = vmatmul.bf16.gmra.mxu0 %v636
    %v2767 = vpop.f32.mrf.mxu0
    %v2768 = vadd.f32 %v470, %v2767
    %v2769 = vpop.f32.mrf.mxu0
    %v2770 = vadd.f32 %v470, %v2769
    %2771 = vmatmul.bf16.gmra.mxu0 %v642
    %v2772 = vpop.f32.mrf.mxu0
    %v2773 = vadd.f32 %v470, %v2772
    %v2774 = vpop.f32.mrf.mxu0
    %v2775 = vadd.f32 %v470, %v2774
    %2776 = vmatmul.bf16.gmra.mxu0 %v648
    %v2777 = vpop.f32.mrf.mxu0
    %v2778 = vadd.f32 %v470, %v2777
    %v2779 = vpop.f32.mrf.mxu0
    %v2780 = vadd.f32 %v470, %v2779
    %2781 = vmatmul.bf16.gmra.mxu0 %v654
    %v2782 = vpop.f32.mrf.mxu0
    %v2783 = vadd.f32 %v470, %v2782
    %v2784 = vpop.f32.mrf.mxu0
    %v2785 = vadd.f32 %v470, %v2784
    %2786 = vmatmul.bf16.gmra.mxu0 %v660
    %v2787 = vpop.f32.mrf.mxu0
    %v2788 = vadd.f32 %v470, %v2787
    %v2789 = vpop.f32.mrf.mxu0
    %v2790 = vadd.f32 %v470, %v2789
    %2791 = vmatmul.bf16.gmra.mxu0 %v666
    %v2792 = vpop.f32.mrf.mxu0
    %v2793 = vadd.f32 %v470, %v2792
    %v2794 = vpop.f32.mrf.mxu0
    %v2795 = vadd.f32 %v470, %v2794
    %2796 = vdwg.mxu0
    %2797 = vmatpush.bf16.msra.mxu0 %v1676
    %2798 = vmatpush.bf16.msra.mxu0 %v1670
    %2799 = vmatpush.bf16.msra.mxu0 %v1664
    %2800 = vmatpush.bf16.msra.mxu0 %v1658
    %2801 = vmatpush.bf16.msra.mxu0 %v1652
    %2802 = vmatpush.bf16.msra.mxu0 %v1646
    %2803 = vmatpush.bf16.msra.mxu0 %v1640
    %2804 = vmatpush.bf16.msra.mxu0 %v1634
    %2805 = vmatmul.bf16.gmra.mxu0 %v625
    %v2806 = vpop.f32.mrf.mxu0
    %v2807 = vadd.f32 %v2758, %v2806
    %v2808 = vpop.f32.mrf.mxu0
    %v2809 = vadd.f32 %v2760, %v2808
    %2810 = vmatmul.bf16.gmra.mxu0 %v631
    %v2811 = vpop.f32.mrf.mxu0
    %v2812 = vadd.f32 %v2763, %v2811
    %v2813 = vpop.f32.mrf.mxu0
    %v2814 = vadd.f32 %v2765, %v2813
    %2815 = vmatmul.bf16.gmra.mxu0 %v637
    %v2816 = vpop.f32.mrf.mxu0
    %v2817 = vadd.f32 %v2768, %v2816
    %v2818 = vpop.f32.mrf.mxu0
    %v2819 = vadd.f32 %v2770, %v2818
    %2820 = vmatmul.bf16.gmra.mxu0 %v643
    %v2821 = vpop.f32.mrf.mxu0
    %v2822 = vadd.f32 %v2773, %v2821
    %v2823 = vpop.f32.mrf.mxu0
    %v2824 = vadd.f32 %v2775, %v2823
    %2825 = vmatmul.bf16.gmra.mxu0 %v649
    %v2826 = vpop.f32.mrf.mxu0
    %v2827 = vadd.f32 %v2778, %v2826
    %v2828 = vpop.f32.mrf.mxu0
    %v2829 = vadd.f32 %v2780, %v2828
    %2830 = vmatmul.bf16.gmra.mxu0 %v655
    %v2831 = vpop.f32.mrf.mxu0
    %v2832 = vadd.f32 %v2783, %v2831
    %v2833 = vpop.f32.mrf.mxu0
    %v2834 = vadd.f32 %v2785, %v2833
    %2835 = vmatmul.bf16.gmra.mxu0 %v661
    %v2836 = vpop.f32.mrf.mxu0
    %v2837 = vadd.f32 %v2788, %v2836
    %v2838 = vpop.f32.mrf.mxu0
    %v2839 = vadd.f32 %v2790, %v2838
    %2840 = vmatmul.bf16.gmra.mxu0 %v667
    %v2841 = vpop.f32.mrf.mxu0
    %v2842 = vadd.f32 %v2793, %v2841
    %v2843 = vpop.f32.mrf.mxu0
    %v2844 = vadd.f32 %v2795, %v2843
    %2845 = vdwg.mxu0
    %2846 = vmatpush.bf16.msra.mxu0 %v1724
    %2847 = vmatpush.bf16.msra.mxu0 %v1718
    %2848 = vmatpush.bf16.msra.mxu0 %v1712
    %2849 = vmatpush.bf16.msra.mxu0 %v1706
    %2850 = vmatpush.bf16.msra.mxu0 %v1700
    %2851 = vmatpush.bf16.msra.mxu0 %v1694
    %2852 = vmatpush.bf16.msra.mxu0 %v1688
    %2853 = vmatpush.bf16.msra.mxu0 %v1682
    %2854 = vmatmul.bf16.gmra.mxu0 %v626
    %v2855 = vpop.f32.mrf.mxu0
    %v2856 = vadd.f32 %v2807, %v2855
    %v2857 = vpop.f32.mrf.mxu0
    %v2858 = vadd.f32 %v2809, %v2857
    %2859 = vmatmul.bf16.gmra.mxu0 %v632
    %v2860 = vpop.f32.mrf.mxu0
    %v2861 = vadd.f32 %v2812, %v2860
    %v2862 = vpop.f32.mrf.mxu0
    %v2863 = vadd.f32 %v2814, %v2862
    %2864 = vmatmul.bf16.gmra.mxu0 %v638
    %v2865 = vpop.f32.mrf.mxu0
    %v2866 = vadd.f32 %v2817, %v2865
    %v2867 = vpop.f32.mrf.mxu0
    %v2868 = vadd.f32 %v2819, %v2867
    %2869 = vmatmul.bf16.gmra.mxu0 %v644
    %v2870 = vpop.f32.mrf.mxu0
    %v2871 = vadd.f32 %v2822, %v2870
    %v2872 = vpop.f32.mrf.mxu0
    %v2873 = vadd.f32 %v2824, %v2872
    %2874 = vmatmul.bf16.gmra.mxu0 %v650
    %v2875 = vpop.f32.mrf.mxu0
    %v2876 = vadd.f32 %v2827, %v2875
    %v2877 = vpop.f32.mrf.mxu0
    %v2878 = vadd.f32 %v2829, %v2877
    %2879 = vmatmul.bf16.gmra.mxu0 %v656
    %v2880 = vpop.f32.mrf.mxu0
    %v2881 = vadd.f32 %v2832, %v2880
    %v2882 = vpop.f32.mrf.mxu0
    %v2883 = vadd.f32 %v2834, %v2882
    %2884 = vmatmul.bf16.gmra.mxu0 %v662
    %v2885 = vpop.f32.mrf.mxu0
    %v2886 = vadd.f32 %v2837, %v2885
    %v2887 = vpop.f32.mrf.mxu0
    %v2888 = vadd.f32 %v2839, %v2887
    %2889 = vmatmul.bf16.gmra.mxu0 %v668
    %v2890 = vpop.f32.mrf.mxu0
    %v2891 = vadd.f32 %v2842, %v2890
    %v2892 = vpop.f32.mrf.mxu0
    %v2893 = vadd.f32 %v2844, %v2892
    %2894 = vdwg.mxu0
    %2895 = vmatpush.bf16.msra.mxu0 %v1772
    %2896 = vmatpush.bf16.msra.mxu0 %v1766
    %2897 = vmatpush.bf16.msra.mxu0 %v1760
    %2898 = vmatpush.bf16.msra.mxu0 %v1754
    %2899 = vmatpush.bf16.msra.mxu0 %v1748
    %2900 = vmatpush.bf16.msra.mxu0 %v1742
    %2901 = vmatpush.bf16.msra.mxu0 %v1736
    %2902 = vmatpush.bf16.msra.mxu0 %v1730
    %2903 = vmatmul.bf16.gmra.mxu0 %v627
    %v2904 = vpop.f32.mrf.mxu0
    %v2905 = vadd.f32 %v2856, %v2904
    %v2906 = vpop.f32.mrf.mxu0
    %v2907 = vadd.f32 %v2858, %v2906
    %2908 = vmatmul.bf16.gmra.mxu0 %v633
    %v2909 = vpop.f32.mrf.mxu0
    %v2910 = vadd.f32 %v2861, %v2909
    %v2911 = vpop.f32.mrf.mxu0
    %v2912 = vadd.f32 %v2863, %v2911
    %2913 = vmatmul.bf16.gmra.mxu0 %v639
    %v2914 = vpop.f32.mrf.mxu0
    %v2915 = vadd.f32 %v2866, %v2914
    %v2916 = vpop.f32.mrf.mxu0
    %v2917 = vadd.f32 %v2868, %v2916
    %2918 = vmatmul.bf16.gmra.mxu0 %v645
    %v2919 = vpop.f32.mrf.mxu0
    %v2920 = vadd.f32 %v2871, %v2919
    %v2921 = vpop.f32.mrf.mxu0
    %v2922 = vadd.f32 %v2873, %v2921
    %2923 = vmatmul.bf16.gmra.mxu0 %v651
    %v2924 = vpop.f32.mrf.mxu0
    %v2925 = vadd.f32 %v2876, %v2924
    %v2926 = vpop.f32.mrf.mxu0
    %v2927 = vadd.f32 %v2878, %v2926
    %2928 = vmatmul.bf16.gmra.mxu0 %v657
    %v2929 = vpop.f32.mrf.mxu0
    %v2930 = vadd.f32 %v2881, %v2929
    %v2931 = vpop.f32.mrf.mxu0
    %v2932 = vadd.f32 %v2883, %v2931
    %2933 = vmatmul.bf16.gmra.mxu0 %v663
    %v2934 = vpop.f32.mrf.mxu0
    %v2935 = vadd.f32 %v2886, %v2934
    %v2936 = vpop.f32.mrf.mxu0
    %v2937 = vadd.f32 %v2888, %v2936
    %2938 = vmatmul.bf16.gmra.mxu0 %v669
    %v2939 = vpop.f32.mrf.mxu0
    %v2940 = vadd.f32 %v2891, %v2939
    %v2941 = vpop.f32.mrf.mxu0
    %v2942 = vadd.f32 %v2893, %v2941
    %2943 = vdwg.mxu0
    %2944 = vmatpush.bf16.msra.mxu0 %v1820
    %2945 = vmatpush.bf16.msra.mxu0 %v1814
    %2946 = vmatpush.bf16.msra.mxu0 %v1808
    %2947 = vmatpush.bf16.msra.mxu0 %v1802
    %2948 = vmatpush.bf16.msra.mxu0 %v1796
    %2949 = vmatpush.bf16.msra.mxu0 %v1790
    %2950 = vmatpush.bf16.msra.mxu0 %v1784
    %2951 = vmatpush.bf16.msra.mxu0 %v1778
    %2952 = vmatmul.bf16.gmra.mxu0 %v628
    %v2953 = vpop.f32.mrf.mxu0
    %v2954 = vadd.f32 %v2905, %v2953
    %v2955 = vpop.f32.mrf.mxu0
    %v2956 = vadd.f32 %v2907, %v2955
    %2957 = vmatmul.bf16.gmra.mxu0 %v634
    %v2958 = vpop.f32.mrf.mxu0
    %v2959 = vadd.f32 %v2910, %v2958
    %v2960 = vpop.f32.mrf.mxu0
    %v2961 = vadd.f32 %v2912, %v2960
    %2962 = vmatmul.bf16.gmra.mxu0 %v640
    %v2963 = vpop.f32.mrf.mxu0
    %v2964 = vadd.f32 %v2915, %v2963
    %v2965 = vpop.f32.mrf.mxu0
    %v2966 = vadd.f32 %v2917, %v2965
    %2967 = vmatmul.bf16.gmra.mxu0 %v646
    %v2968 = vpop.f32.mrf.mxu0
    %v2969 = vadd.f32 %v2920, %v2968
    %v2970 = vpop.f32.mrf.mxu0
    %v2971 = vadd.f32 %v2922, %v2970
    %2972 = vmatmul.bf16.gmra.mxu0 %v652
    %v2973 = vpop.f32.mrf.mxu0
    %v2974 = vadd.f32 %v2925, %v2973
    %v2975 = vpop.f32.mrf.mxu0
    %v2976 = vadd.f32 %v2927, %v2975
    %2977 = vmatmul.bf16.gmra.mxu0 %v658
    %v2978 = vpop.f32.mrf.mxu0
    %v2979 = vadd.f32 %v2930, %v2978
    %v2980 = vpop.f32.mrf.mxu0
    %v2981 = vadd.f32 %v2932, %v2980
    %2982 = vmatmul.bf16.gmra.mxu0 %v664
    %v2983 = vpop.f32.mrf.mxu0
    %v2984 = vadd.f32 %v2935, %v2983
    %v2985 = vpop.f32.mrf.mxu0
    %v2986 = vadd.f32 %v2937, %v2985
    %2987 = vmatmul.bf16.gmra.mxu0 %v670
    %v2988 = vpop.f32.mrf.mxu0
    %v2989 = vadd.f32 %v2940, %v2988
    %v2990 = vpop.f32.mrf.mxu0
    %v2991 = vadd.f32 %v2942, %v2990
    %2992 = vdwg.mxu0
    %2993 = vmatpush.bf16.msra.mxu0 %v1868
    %2994 = vmatpush.bf16.msra.mxu0 %v1862
    %2995 = vmatpush.bf16.msra.mxu0 %v1856
    %2996 = vmatpush.bf16.msra.mxu0 %v1850
    %2997 = vmatpush.bf16.msra.mxu0 %v1844
    %2998 = vmatpush.bf16.msra.mxu0 %v1838
    %2999 = vmatpush.bf16.msra.mxu0 %v1832
    %3000 = vmatpush.bf16.msra.mxu0 %v1826
    %3001 = vmatmul.bf16.gmra.mxu0 %v629
    %v3002 = vpop.f32.mrf.mxu0
    %v3003 = vadd.f32 %v2954, %v3002
    %v3004 = vpop.f32.mrf.mxu0
    %v3005 = vadd.f32 %v2956, %v3004
    %3006 = vmatmul.bf16.gmra.mxu0 %v635
    %v3007 = vpop.f32.mrf.mxu0
    %v3008 = vadd.f32 %v2959, %v3007
    %v3009 = vpop.f32.mrf.mxu0
    %v3010 = vadd.f32 %v2961, %v3009
    %3011 = vmatmul.bf16.gmra.mxu0 %v641
    %v3012 = vpop.f32.mrf.mxu0
    %v3013 = vadd.f32 %v2964, %v3012
    %v3014 = vpop.f32.mrf.mxu0
    %v3015 = vadd.f32 %v2966, %v3014
    %3016 = vmatmul.bf16.gmra.mxu0 %v647
    %v3017 = vpop.f32.mrf.mxu0
    %v3018 = vadd.f32 %v2969, %v3017
    %v3019 = vpop.f32.mrf.mxu0
    %v3020 = vadd.f32 %v2971, %v3019
    %3021 = vmatmul.bf16.gmra.mxu0 %v653
    %v3022 = vpop.f32.mrf.mxu0
    %v3023 = vadd.f32 %v2974, %v3022
    %v3024 = vpop.f32.mrf.mxu0
    %v3025 = vadd.f32 %v2976, %v3024
    %3026 = vmatmul.bf16.gmra.mxu0 %v659
    %v3027 = vpop.f32.mrf.mxu0
    %v3028 = vadd.f32 %v2979, %v3027
    %v3029 = vpop.f32.mrf.mxu0
    %v3030 = vadd.f32 %v2981, %v3029
    %3031 = vmatmul.bf16.gmra.mxu0 %v665
    %v3032 = vpop.f32.mrf.mxu0
    %v3033 = vadd.f32 %v2984, %v3032
    %v3034 = vpop.f32.mrf.mxu0
    %v3035 = vadd.f32 %v2986, %v3034
    %3036 = vmatmul.bf16.gmra.mxu0 %v671
    %v3037 = vpop.f32.mrf.mxu0
    %v3038 = vadd.f32 %v2989, %v3037
    %v3039 = vpop.f32.mrf.mxu0
    %v3040 = vadd.f32 %v2991, %v3039
    %3041 = vdwg.mxu0
    %3042 = vmatpush.bf16.msra.mxu0 %v1629
    %3043 = vmatpush.bf16.msra.mxu0 %v1623
    %3044 = vmatpush.bf16.msra.mxu0 %v1617
    %3045 = vmatpush.bf16.msra.mxu0 %v1611
    %3046 = vmatpush.bf16.msra.mxu0 %v1605
    %3047 = vmatpush.bf16.msra.mxu0 %v1599
    %3048 = vmatpush.bf16.msra.mxu0 %v1593
    %3049 = vmatpush.bf16.msra.mxu0 %v1587
    %3050 = vmatmul.bf16.gmra.mxu0 %v624
    %v3051 = vpop.f32.mrf.mxu0
    %v3052 = vadd.f32 %v471, %v3051
    %v3053 = vpop.f32.mrf.mxu0
    %v3054 = vadd.f32 %v471, %v3053
    %3055 = vmatmul.bf16.gmra.mxu0 %v630
    %v3056 = vpop.f32.mrf.mxu0
    %v3057 = vadd.f32 %v471, %v3056
    %v3058 = vpop.f32.mrf.mxu0
    %v3059 = vadd.f32 %v471, %v3058
    %3060 = vmatmul.bf16.gmra.mxu0 %v636
    %v3061 = vpop.f32.mrf.mxu0
    %v3062 = vadd.f32 %v471, %v3061
    %v3063 = vpop.f32.mrf.mxu0
    %v3064 = vadd.f32 %v471, %v3063
    %3065 = vmatmul.bf16.gmra.mxu0 %v642
    %v3066 = vpop.f32.mrf.mxu0
    %v3067 = vadd.f32 %v471, %v3066
    %v3068 = vpop.f32.mrf.mxu0
    %v3069 = vadd.f32 %v471, %v3068
    %3070 = vmatmul.bf16.gmra.mxu0 %v648
    %v3071 = vpop.f32.mrf.mxu0
    %v3072 = vadd.f32 %v471, %v3071
    %v3073 = vpop.f32.mrf.mxu0
    %v3074 = vadd.f32 %v471, %v3073
    %3075 = vmatmul.bf16.gmra.mxu0 %v654
    %v3076 = vpop.f32.mrf.mxu0
    %v3077 = vadd.f32 %v471, %v3076
    %v3078 = vpop.f32.mrf.mxu0
    %v3079 = vadd.f32 %v471, %v3078
    %3080 = vmatmul.bf16.gmra.mxu0 %v660
    %v3081 = vpop.f32.mrf.mxu0
    %v3082 = vadd.f32 %v471, %v3081
    %v3083 = vpop.f32.mrf.mxu0
    %v3084 = vadd.f32 %v471, %v3083
    %3085 = vmatmul.bf16.gmra.mxu0 %v666
    %v3086 = vpop.f32.mrf.mxu0
    %v3087 = vadd.f32 %v471, %v3086
    %v3088 = vpop.f32.mrf.mxu0
    %v3089 = vadd.f32 %v471, %v3088
    %3090 = vdwg.mxu0
    %3091 = vmatpush.bf16.msra.mxu0 %v1677
    %3092 = vmatpush.bf16.msra.mxu0 %v1671
    %3093 = vmatpush.bf16.msra.mxu0 %v1665
    %3094 = vmatpush.bf16.msra.mxu0 %v1659
    %3095 = vmatpush.bf16.msra.mxu0 %v1653
    %3096 = vmatpush.bf16.msra.mxu0 %v1647
    %3097 = vmatpush.bf16.msra.mxu0 %v1641
    %3098 = vmatpush.bf16.msra.mxu0 %v1635
    %3099 = vmatmul.bf16.gmra.mxu0 %v625
    %v3100 = vpop.f32.mrf.mxu0
    %v3101 = vadd.f32 %v3052, %v3100
    %v3102 = vpop.f32.mrf.mxu0
    %v3103 = vadd.f32 %v3054, %v3102
    %3104 = vmatmul.bf16.gmra.mxu0 %v631
    %v3105 = vpop.f32.mrf.mxu0
    %v3106 = vadd.f32 %v3057, %v3105
    %v3107 = vpop.f32.mrf.mxu0
    %v3108 = vadd.f32 %v3059, %v3107
    %3109 = vmatmul.bf16.gmra.mxu0 %v637
    %v3110 = vpop.f32.mrf.mxu0
    %v3111 = vadd.f32 %v3062, %v3110
    %v3112 = vpop.f32.mrf.mxu0
    %v3113 = vadd.f32 %v3064, %v3112
    %3114 = vmatmul.bf16.gmra.mxu0 %v643
    %v3115 = vpop.f32.mrf.mxu0
    %v3116 = vadd.f32 %v3067, %v3115
    %v3117 = vpop.f32.mrf.mxu0
    %v3118 = vadd.f32 %v3069, %v3117
    %3119 = vmatmul.bf16.gmra.mxu0 %v649
    %v3120 = vpop.f32.mrf.mxu0
    %v3121 = vadd.f32 %v3072, %v3120
    %v3122 = vpop.f32.mrf.mxu0
    %v3123 = vadd.f32 %v3074, %v3122
    %3124 = vmatmul.bf16.gmra.mxu0 %v655
    %v3125 = vpop.f32.mrf.mxu0
    %v3126 = vadd.f32 %v3077, %v3125
    %v3127 = vpop.f32.mrf.mxu0
    %v3128 = vadd.f32 %v3079, %v3127
    %3129 = vmatmul.bf16.gmra.mxu0 %v661
    %v3130 = vpop.f32.mrf.mxu0
    %v3131 = vadd.f32 %v3082, %v3130
    %v3132 = vpop.f32.mrf.mxu0
    %v3133 = vadd.f32 %v3084, %v3132
    %3134 = vmatmul.bf16.gmra.mxu0 %v667
    %v3135 = vpop.f32.mrf.mxu0
    %v3136 = vadd.f32 %v3087, %v3135
    %v3137 = vpop.f32.mrf.mxu0
    %v3138 = vadd.f32 %v3089, %v3137
    %3139 = vdwg.mxu0
    %3140 = vmatpush.bf16.msra.mxu0 %v1725
    %3141 = vmatpush.bf16.msra.mxu0 %v1719
    %3142 = vmatpush.bf16.msra.mxu0 %v1713
    %3143 = vmatpush.bf16.msra.mxu0 %v1707
    %3144 = vmatpush.bf16.msra.mxu0 %v1701
    %3145 = vmatpush.bf16.msra.mxu0 %v1695
    %3146 = vmatpush.bf16.msra.mxu0 %v1689
    %3147 = vmatpush.bf16.msra.mxu0 %v1683
    %3148 = vmatmul.bf16.gmra.mxu0 %v626
    %v3149 = vpop.f32.mrf.mxu0
    %v3150 = vadd.f32 %v3101, %v3149
    %v3151 = vpop.f32.mrf.mxu0
    %v3152 = vadd.f32 %v3103, %v3151
    %3153 = vmatmul.bf16.gmra.mxu0 %v632
    %v3154 = vpop.f32.mrf.mxu0
    %v3155 = vadd.f32 %v3106, %v3154
    %v3156 = vpop.f32.mrf.mxu0
    %v3157 = vadd.f32 %v3108, %v3156
    %3158 = vmatmul.bf16.gmra.mxu0 %v638
    %v3159 = vpop.f32.mrf.mxu0
    %v3160 = vadd.f32 %v3111, %v3159
    %v3161 = vpop.f32.mrf.mxu0
    %v3162 = vadd.f32 %v3113, %v3161
    %3163 = vmatmul.bf16.gmra.mxu0 %v644
    %v3164 = vpop.f32.mrf.mxu0
    %v3165 = vadd.f32 %v3116, %v3164
    %v3166 = vpop.f32.mrf.mxu0
    %v3167 = vadd.f32 %v3118, %v3166
    %3168 = vmatmul.bf16.gmra.mxu0 %v650
    %v3169 = vpop.f32.mrf.mxu0
    %v3170 = vadd.f32 %v3121, %v3169
    %v3171 = vpop.f32.mrf.mxu0
    %v3172 = vadd.f32 %v3123, %v3171
    %3173 = vmatmul.bf16.gmra.mxu0 %v656
    %v3174 = vpop.f32.mrf.mxu0
    %v3175 = vadd.f32 %v3126, %v3174
    %v3176 = vpop.f32.mrf.mxu0
    %v3177 = vadd.f32 %v3128, %v3176
    %3178 = vmatmul.bf16.gmra.mxu0 %v662
    %v3179 = vpop.f32.mrf.mxu0
    %v3180 = vadd.f32 %v3131, %v3179
    %v3181 = vpop.f32.mrf.mxu0
    %v3182 = vadd.f32 %v3133, %v3181
    %3183 = vmatmul.bf16.gmra.mxu0 %v668
    %v3184 = vpop.f32.mrf.mxu0
    %v3185 = vadd.f32 %v3136, %v3184
    %v3186 = vpop.f32.mrf.mxu0
    %v3187 = vadd.f32 %v3138, %v3186
    %3188 = vdwg.mxu0
    %3189 = vmatpush.bf16.msra.mxu0 %v1773
    %3190 = vmatpush.bf16.msra.mxu0 %v1767
    %3191 = vmatpush.bf16.msra.mxu0 %v1761
    %3192 = vmatpush.bf16.msra.mxu0 %v1755
    %3193 = vmatpush.bf16.msra.mxu0 %v1749
    %3194 = vmatpush.bf16.msra.mxu0 %v1743
    %3195 = vmatpush.bf16.msra.mxu0 %v1737
    %3196 = vmatpush.bf16.msra.mxu0 %v1731
    %3197 = vmatmul.bf16.gmra.mxu0 %v627
    %v3198 = vpop.f32.mrf.mxu0
    %v3199 = vadd.f32 %v3150, %v3198
    %v3200 = vpop.f32.mrf.mxu0
    %v3201 = vadd.f32 %v3152, %v3200
    %3202 = vmatmul.bf16.gmra.mxu0 %v633
    %v3203 = vpop.f32.mrf.mxu0
    %v3204 = vadd.f32 %v3155, %v3203
    %v3205 = vpop.f32.mrf.mxu0
    %v3206 = vadd.f32 %v3157, %v3205
    %3207 = vmatmul.bf16.gmra.mxu0 %v639
    %v3208 = vpop.f32.mrf.mxu0
    %v3209 = vadd.f32 %v3160, %v3208
    %v3210 = vpop.f32.mrf.mxu0
    %v3211 = vadd.f32 %v3162, %v3210
    %3212 = vmatmul.bf16.gmra.mxu0 %v645
    %v3213 = vpop.f32.mrf.mxu0
    %v3214 = vadd.f32 %v3165, %v3213
    %v3215 = vpop.f32.mrf.mxu0
    %v3216 = vadd.f32 %v3167, %v3215
    %3217 = vmatmul.bf16.gmra.mxu0 %v651
    %v3218 = vpop.f32.mrf.mxu0
    %v3219 = vadd.f32 %v3170, %v3218
    %v3220 = vpop.f32.mrf.mxu0
    %v3221 = vadd.f32 %v3172, %v3220
    %3222 = vmatmul.bf16.gmra.mxu0 %v657
    %v3223 = vpop.f32.mrf.mxu0
    %v3224 = vadd.f32 %v3175, %v3223
    %v3225 = vpop.f32.mrf.mxu0
    %v3226 = vadd.f32 %v3177, %v3225
    %3227 = vmatmul.bf16.gmra.mxu0 %v663
    %v3228 = vpop.f32.mrf.mxu0
    %v3229 = vadd.f32 %v3180, %v3228
    %v3230 = vpop.f32.mrf.mxu0
    %v3231 = vadd.f32 %v3182, %v3230
    %3232 = vmatmul.bf16.gmra.mxu0 %v669
    %v3233 = vpop.f32.mrf.mxu0
    %v3234 = vadd.f32 %v3185, %v3233
    %v3235 = vpop.f32.mrf.mxu0
    %v3236 = vadd.f32 %v3187, %v3235
    %3237 = vdwg.mxu0
    %3238 = vmatpush.bf16.msra.mxu0 %v1821
    %3239 = vmatpush.bf16.msra.mxu0 %v1815
    %3240 = vmatpush.bf16.msra.mxu0 %v1809
    %3241 = vmatpush.bf16.msra.mxu0 %v1803
    %3242 = vmatpush.bf16.msra.mxu0 %v1797
    %3243 = vmatpush.bf16.msra.mxu0 %v1791
    %3244 = vmatpush.bf16.msra.mxu0 %v1785
    %3245 = vmatpush.bf16.msra.mxu0 %v1779
    %3246 = vmatmul.bf16.gmra.mxu0 %v628
    %v3247 = vpop.f32.mrf.mxu0
    %v3248 = vadd.f32 %v3199, %v3247
    %v3249 = vpop.f32.mrf.mxu0
    %v3250 = vadd.f32 %v3201, %v3249
    %3251 = vmatmul.bf16.gmra.mxu0 %v634
    %v3252 = vpop.f32.mrf.mxu0
    %v3253 = vadd.f32 %v3204, %v3252
    %v3254 = vpop.f32.mrf.mxu0
    %v3255 = vadd.f32 %v3206, %v3254
    %3256 = vmatmul.bf16.gmra.mxu0 %v640
    %v3257 = vpop.f32.mrf.mxu0
    %v3258 = vadd.f32 %v3209, %v3257
    %v3259 = vpop.f32.mrf.mxu0
    %v3260 = vadd.f32 %v3211, %v3259
    %3261 = vmatmul.bf16.gmra.mxu0 %v646
    %v3262 = vpop.f32.mrf.mxu0
    %v3263 = vadd.f32 %v3214, %v3262
    %v3264 = vpop.f32.mrf.mxu0
    %v3265 = vadd.f32 %v3216, %v3264
    %3266 = vmatmul.bf16.gmra.mxu0 %v652
    %v3267 = vpop.f32.mrf.mxu0
    %v3268 = vadd.f32 %v3219, %v3267
    %v3269 = vpop.f32.mrf.mxu0
    %v3270 = vadd.f32 %v3221, %v3269
    %3271 = vmatmul.bf16.gmra.mxu0 %v658
    %v3272 = vpop.f32.mrf.mxu0
    %v3273 = vadd.f32 %v3224, %v3272
    %v3274 = vpop.f32.mrf.mxu0
    %v3275 = vadd.f32 %v3226, %v3274
    %3276 = vmatmul.bf16.gmra.mxu0 %v664
    %v3277 = vpop.f32.mrf.mxu0
    %v3278 = vadd.f32 %v3229, %v3277
    %v3279 = vpop.f32.mrf.mxu0
    %v3280 = vadd.f32 %v3231, %v3279
    %3281 = vmatmul.bf16.gmra.mxu0 %v670
    %v3282 = vpop.f32.mrf.mxu0
    %v3283 = vadd.f32 %v3234, %v3282
    %v3284 = vpop.f32.mrf.mxu0
    %v3285 = vadd.f32 %v3236, %v3284
    %3286 = vdwg.mxu0
    %3287 = vmatpush.bf16.msra.mxu0 %v1869
    %3288 = vmatpush.bf16.msra.mxu0 %v1863
    %3289 = vmatpush.bf16.msra.mxu0 %v1857
    %3290 = vmatpush.bf16.msra.mxu0 %v1851
    %3291 = vmatpush.bf16.msra.mxu0 %v1845
    %3292 = vmatpush.bf16.msra.mxu0 %v1839
    %3293 = vmatpush.bf16.msra.mxu0 %v1833
    %3294 = vmatpush.bf16.msra.mxu0 %v1827
    %3295 = vmatmul.bf16.gmra.mxu0 %v629
    %v3296 = vpop.f32.mrf.mxu0
    %v3297 = vadd.f32 %v3248, %v3296
    %v3298 = vpop.f32.mrf.mxu0
    %v3299 = vadd.f32 %v3250, %v3298
    %3300 = vmatmul.bf16.gmra.mxu0 %v635
    %v3301 = vpop.f32.mrf.mxu0
    %v3302 = vadd.f32 %v3253, %v3301
    %v3303 = vpop.f32.mrf.mxu0
    %v3304 = vadd.f32 %v3255, %v3303
    %3305 = vmatmul.bf16.gmra.mxu0 %v641
    %v3306 = vpop.f32.mrf.mxu0
    %v3307 = vadd.f32 %v3258, %v3306
    %v3308 = vpop.f32.mrf.mxu0
    %v3309 = vadd.f32 %v3260, %v3308
    %3310 = vmatmul.bf16.gmra.mxu0 %v647
    %v3311 = vpop.f32.mrf.mxu0
    %v3312 = vadd.f32 %v3263, %v3311
    %v3313 = vpop.f32.mrf.mxu0
    %v3314 = vadd.f32 %v3265, %v3313
    %3315 = vmatmul.bf16.gmra.mxu0 %v653
    %v3316 = vpop.f32.mrf.mxu0
    %v3317 = vadd.f32 %v3268, %v3316
    %v3318 = vpop.f32.mrf.mxu0
    %v3319 = vadd.f32 %v3270, %v3318
    %3320 = vmatmul.bf16.gmra.mxu0 %v659
    %v3321 = vpop.f32.mrf.mxu0
    %v3322 = vadd.f32 %v3273, %v3321
    %v3323 = vpop.f32.mrf.mxu0
    %v3324 = vadd.f32 %v3275, %v3323
    %3325 = vmatmul.bf16.gmra.mxu0 %v665
    %v3326 = vpop.f32.mrf.mxu0
    %v3327 = vadd.f32 %v3278, %v3326
    %v3328 = vpop.f32.mrf.mxu0
    %v3329 = vadd.f32 %v3280, %v3328
    %3330 = vmatmul.bf16.gmra.mxu0 %v671
    %v3331 = vpop.f32.mrf.mxu0
    %v3332 = vadd.f32 %v3283, %v3331
    %v3333 = vpop.f32.mrf.mxu0
    %v3334 = vadd.f32 %v3285, %v3333
    %3335 = vdwg.mxu0
    %3336 = vmatpush.bf16.msra.mxu0 %v1630
    %3337 = vmatpush.bf16.msra.mxu0 %v1624
    %3338 = vmatpush.bf16.msra.mxu0 %v1618
    %3339 = vmatpush.bf16.msra.mxu0 %v1612
    %3340 = vmatpush.bf16.msra.mxu0 %v1606
    %3341 = vmatpush.bf16.msra.mxu0 %v1600
    %3342 = vmatpush.bf16.msra.mxu0 %v1594
    %3343 = vmatpush.bf16.msra.mxu0 %v1588
    %3344 = vmatmul.bf16.gmra.mxu0 %v624
    %v3345 = vpop.f32.mrf.mxu0
    %v3346 = vadd.f32 %v472, %v3345
    %v3347 = vpop.f32.mrf.mxu0
    %v3348 = vadd.f32 %v472, %v3347
    %3349 = vmatmul.bf16.gmra.mxu0 %v630
    %v3350 = vpop.f32.mrf.mxu0
    %v3351 = vadd.f32 %v472, %v3350
    %v3352 = vpop.f32.mrf.mxu0
    %v3353 = vadd.f32 %v472, %v3352
    %3354 = vmatmul.bf16.gmra.mxu0 %v636
    %v3355 = vpop.f32.mrf.mxu0
    %v3356 = vadd.f32 %v472, %v3355
    %v3357 = vpop.f32.mrf.mxu0
    %v3358 = vadd.f32 %v472, %v3357
    %3359 = vmatmul.bf16.gmra.mxu0 %v642
    %v3360 = vpop.f32.mrf.mxu0
    %v3361 = vadd.f32 %v472, %v3360
    %v3362 = vpop.f32.mrf.mxu0
    %v3363 = vadd.f32 %v472, %v3362
    %3364 = vmatmul.bf16.gmra.mxu0 %v648
    %v3365 = vpop.f32.mrf.mxu0
    %v3366 = vadd.f32 %v472, %v3365
    %v3367 = vpop.f32.mrf.mxu0
    %v3368 = vadd.f32 %v472, %v3367
    %3369 = vmatmul.bf16.gmra.mxu0 %v654
    %v3370 = vpop.f32.mrf.mxu0
    %v3371 = vadd.f32 %v472, %v3370
    %v3372 = vpop.f32.mrf.mxu0
    %v3373 = vadd.f32 %v472, %v3372
    %3374 = vmatmul.bf16.gmra.mxu0 %v660
    %v3375 = vpop.f32.mrf.mxu0
    %v3376 = vadd.f32 %v472, %v3375
    %v3377 = vpop.f32.mrf.mxu0
    %v3378 = vadd.f32 %v472, %v3377
    %3379 = vmatmul.bf16.gmra.mxu0 %v666
    %v3380 = vpop.f32.mrf.mxu0
    %v3381 = vadd.f32 %v472, %v3380
    %v3382 = vpop.f32.mrf.mxu0
    %v3383 = vadd.f32 %v472, %v3382
    %3384 = vdwg.mxu0
    %3385 = vmatpush.bf16.msra.mxu0 %v1678
    %3386 = vmatpush.bf16.msra.mxu0 %v1672
    %3387 = vmatpush.bf16.msra.mxu0 %v1666
    %3388 = vmatpush.bf16.msra.mxu0 %v1660
    %3389 = vmatpush.bf16.msra.mxu0 %v1654
    %3390 = vmatpush.bf16.msra.mxu0 %v1648
    %3391 = vmatpush.bf16.msra.mxu0 %v1642
    %3392 = vmatpush.bf16.msra.mxu0 %v1636
    %3393 = vmatmul.bf16.gmra.mxu0 %v625
    %v3394 = vpop.f32.mrf.mxu0
    %v3395 = vadd.f32 %v3346, %v3394
    %v3396 = vpop.f32.mrf.mxu0
    %v3397 = vadd.f32 %v3348, %v3396
    %3398 = vmatmul.bf16.gmra.mxu0 %v631
    %v3399 = vpop.f32.mrf.mxu0
    %v3400 = vadd.f32 %v3351, %v3399
    %v3401 = vpop.f32.mrf.mxu0
    %v3402 = vadd.f32 %v3353, %v3401
    %3403 = vmatmul.bf16.gmra.mxu0 %v637
    %v3404 = vpop.f32.mrf.mxu0
    %v3405 = vadd.f32 %v3356, %v3404
    %v3406 = vpop.f32.mrf.mxu0
    %v3407 = vadd.f32 %v3358, %v3406
    %3408 = vmatmul.bf16.gmra.mxu0 %v643
    %v3409 = vpop.f32.mrf.mxu0
    %v3410 = vadd.f32 %v3361, %v3409
    %v3411 = vpop.f32.mrf.mxu0
    %v3412 = vadd.f32 %v3363, %v3411
    %3413 = vmatmul.bf16.gmra.mxu0 %v649
    %v3414 = vpop.f32.mrf.mxu0
    %v3415 = vadd.f32 %v3366, %v3414
    %v3416 = vpop.f32.mrf.mxu0
    %v3417 = vadd.f32 %v3368, %v3416
    %3418 = vmatmul.bf16.gmra.mxu0 %v655
    %v3419 = vpop.f32.mrf.mxu0
    %v3420 = vadd.f32 %v3371, %v3419
    %v3421 = vpop.f32.mrf.mxu0
    %v3422 = vadd.f32 %v3373, %v3421
    %3423 = vmatmul.bf16.gmra.mxu0 %v661
    %v3424 = vpop.f32.mrf.mxu0
    %v3425 = vadd.f32 %v3376, %v3424
    %v3426 = vpop.f32.mrf.mxu0
    %v3427 = vadd.f32 %v3378, %v3426
    %3428 = vmatmul.bf16.gmra.mxu0 %v667
    %v3429 = vpop.f32.mrf.mxu0
    %v3430 = vadd.f32 %v3381, %v3429
    %v3431 = vpop.f32.mrf.mxu0
    %v3432 = vadd.f32 %v3383, %v3431
    %3433 = vdwg.mxu0
    %3434 = vmatpush.bf16.msra.mxu0 %v1726
    %3435 = vmatpush.bf16.msra.mxu0 %v1720
    %3436 = vmatpush.bf16.msra.mxu0 %v1714
    %3437 = vmatpush.bf16.msra.mxu0 %v1708
    %3438 = vmatpush.bf16.msra.mxu0 %v1702
    %3439 = vmatpush.bf16.msra.mxu0 %v1696
    %3440 = vmatpush.bf16.msra.mxu0 %v1690
    %3441 = vmatpush.bf16.msra.mxu0 %v1684
    %3442 = vmatmul.bf16.gmra.mxu0 %v626
    %v3443 = vpop.f32.mrf.mxu0
    %v3444 = vadd.f32 %v3395, %v3443
    %v3445 = vpop.f32.mrf.mxu0
    %v3446 = vadd.f32 %v3397, %v3445
    %3447 = vmatmul.bf16.gmra.mxu0 %v632
    %v3448 = vpop.f32.mrf.mxu0
    %v3449 = vadd.f32 %v3400, %v3448
    %v3450 = vpop.f32.mrf.mxu0
    %v3451 = vadd.f32 %v3402, %v3450
    %3452 = vmatmul.bf16.gmra.mxu0 %v638
    %v3453 = vpop.f32.mrf.mxu0
    %v3454 = vadd.f32 %v3405, %v3453
    %v3455 = vpop.f32.mrf.mxu0
    %v3456 = vadd.f32 %v3407, %v3455
    %3457 = vmatmul.bf16.gmra.mxu0 %v644
    %v3458 = vpop.f32.mrf.mxu0
    %v3459 = vadd.f32 %v3410, %v3458
    %v3460 = vpop.f32.mrf.mxu0
    %v3461 = vadd.f32 %v3412, %v3460
    %3462 = vmatmul.bf16.gmra.mxu0 %v650
    %v3463 = vpop.f32.mrf.mxu0
    %v3464 = vadd.f32 %v3415, %v3463
    %v3465 = vpop.f32.mrf.mxu0
    %v3466 = vadd.f32 %v3417, %v3465
    %3467 = vmatmul.bf16.gmra.mxu0 %v656
    %v3468 = vpop.f32.mrf.mxu0
    %v3469 = vadd.f32 %v3420, %v3468
    %v3470 = vpop.f32.mrf.mxu0
    %v3471 = vadd.f32 %v3422, %v3470
    %3472 = vmatmul.bf16.gmra.mxu0 %v662
    %v3473 = vpop.f32.mrf.mxu0
    %v3474 = vadd.f32 %v3425, %v3473
    %v3475 = vpop.f32.mrf.mxu0
    %v3476 = vadd.f32 %v3427, %v3475
    %3477 = vmatmul.bf16.gmra.mxu0 %v668
    %v3478 = vpop.f32.mrf.mxu0
    %v3479 = vadd.f32 %v3430, %v3478
    %v3480 = vpop.f32.mrf.mxu0
    %v3481 = vadd.f32 %v3432, %v3480
    %3482 = vdwg.mxu0
    %3483 = vmatpush.bf16.msra.mxu0 %v1774
    %3484 = vmatpush.bf16.msra.mxu0 %v1768
    %3485 = vmatpush.bf16.msra.mxu0 %v1762
    %3486 = vmatpush.bf16.msra.mxu0 %v1756
    %3487 = vmatpush.bf16.msra.mxu0 %v1750
    %3488 = vmatpush.bf16.msra.mxu0 %v1744
    %3489 = vmatpush.bf16.msra.mxu0 %v1738
    %3490 = vmatpush.bf16.msra.mxu0 %v1732
    %3491 = vmatmul.bf16.gmra.mxu0 %v627
    %v3492 = vpop.f32.mrf.mxu0
    %v3493 = vadd.f32 %v3444, %v3492
    %v3494 = vpop.f32.mrf.mxu0
    %v3495 = vadd.f32 %v3446, %v3494
    %3496 = vmatmul.bf16.gmra.mxu0 %v633
    %v3497 = vpop.f32.mrf.mxu0
    %v3498 = vadd.f32 %v3449, %v3497
    %v3499 = vpop.f32.mrf.mxu0
    %v3500 = vadd.f32 %v3451, %v3499
    %3501 = vmatmul.bf16.gmra.mxu0 %v639
    %v3502 = vpop.f32.mrf.mxu0
    %v3503 = vadd.f32 %v3454, %v3502
    %v3504 = vpop.f32.mrf.mxu0
    %v3505 = vadd.f32 %v3456, %v3504
    %3506 = vmatmul.bf16.gmra.mxu0 %v645
    %v3507 = vpop.f32.mrf.mxu0
    %v3508 = vadd.f32 %v3459, %v3507
    %v3509 = vpop.f32.mrf.mxu0
    %v3510 = vadd.f32 %v3461, %v3509
    %3511 = vmatmul.bf16.gmra.mxu0 %v651
    %v3512 = vpop.f32.mrf.mxu0
    %v3513 = vadd.f32 %v3464, %v3512
    %v3514 = vpop.f32.mrf.mxu0
    %v3515 = vadd.f32 %v3466, %v3514
    %3516 = vmatmul.bf16.gmra.mxu0 %v657
    %v3517 = vpop.f32.mrf.mxu0
    %v3518 = vadd.f32 %v3469, %v3517
    %v3519 = vpop.f32.mrf.mxu0
    %v3520 = vadd.f32 %v3471, %v3519
    %3521 = vmatmul.bf16.gmra.mxu0 %v663
    %v3522 = vpop.f32.mrf.mxu0
    %v3523 = vadd.f32 %v3474, %v3522
    %v3524 = vpop.f32.mrf.mxu0
    %v3525 = vadd.f32 %v3476, %v3524
    %3526 = vmatmul.bf16.gmra.mxu0 %v669
    %v3527 = vpop.f32.mrf.mxu0
    %v3528 = vadd.f32 %v3479, %v3527
    %v3529 = vpop.f32.mrf.mxu0
    %v3530 = vadd.f32 %v3481, %v3529
    %3531 = vdwg.mxu0
    %3532 = vmatpush.bf16.msra.mxu0 %v1822
    %3533 = vmatpush.bf16.msra.mxu0 %v1816
    %3534 = vmatpush.bf16.msra.mxu0 %v1810
    %3535 = vmatpush.bf16.msra.mxu0 %v1804
    %3536 = vmatpush.bf16.msra.mxu0 %v1798
    %3537 = vmatpush.bf16.msra.mxu0 %v1792
    %3538 = vmatpush.bf16.msra.mxu0 %v1786
    %3539 = vmatpush.bf16.msra.mxu0 %v1780
    %3540 = vmatmul.bf16.gmra.mxu0 %v628
    %v3541 = vpop.f32.mrf.mxu0
    %v3542 = vadd.f32 %v3493, %v3541
    %v3543 = vpop.f32.mrf.mxu0
    %v3544 = vadd.f32 %v3495, %v3543
    %3545 = vmatmul.bf16.gmra.mxu0 %v634
    %v3546 = vpop.f32.mrf.mxu0
    %v3547 = vadd.f32 %v3498, %v3546
    %v3548 = vpop.f32.mrf.mxu0
    %v3549 = vadd.f32 %v3500, %v3548
    %3550 = vmatmul.bf16.gmra.mxu0 %v640
    %v3551 = vpop.f32.mrf.mxu0
    %v3552 = vadd.f32 %v3503, %v3551
    %v3553 = vpop.f32.mrf.mxu0
    %v3554 = vadd.f32 %v3505, %v3553
    %3555 = vmatmul.bf16.gmra.mxu0 %v646
    %v3556 = vpop.f32.mrf.mxu0
    %v3557 = vadd.f32 %v3508, %v3556
    %v3558 = vpop.f32.mrf.mxu0
    %v3559 = vadd.f32 %v3510, %v3558
    %3560 = vmatmul.bf16.gmra.mxu0 %v652
    %v3561 = vpop.f32.mrf.mxu0
    %v3562 = vadd.f32 %v3513, %v3561
    %v3563 = vpop.f32.mrf.mxu0
    %v3564 = vadd.f32 %v3515, %v3563
    %3565 = vmatmul.bf16.gmra.mxu0 %v658
    %v3566 = vpop.f32.mrf.mxu0
    %v3567 = vadd.f32 %v3518, %v3566
    %v3568 = vpop.f32.mrf.mxu0
    %v3569 = vadd.f32 %v3520, %v3568
    %3570 = vmatmul.bf16.gmra.mxu0 %v664
    %v3571 = vpop.f32.mrf.mxu0
    %v3572 = vadd.f32 %v3523, %v3571
    %v3573 = vpop.f32.mrf.mxu0
    %v3574 = vadd.f32 %v3525, %v3573
    %3575 = vmatmul.bf16.gmra.mxu0 %v670
    %v3576 = vpop.f32.mrf.mxu0
    %v3577 = vadd.f32 %v3528, %v3576
    %v3578 = vpop.f32.mrf.mxu0
    %v3579 = vadd.f32 %v3530, %v3578
    %3580 = vdwg.mxu0
    %3581 = vmatpush.bf16.msra.mxu0 %v1870
    %3582 = vmatpush.bf16.msra.mxu0 %v1864
    %3583 = vmatpush.bf16.msra.mxu0 %v1858
    %3584 = vmatpush.bf16.msra.mxu0 %v1852
    %3585 = vmatpush.bf16.msra.mxu0 %v1846
    %3586 = vmatpush.bf16.msra.mxu0 %v1840
    %3587 = vmatpush.bf16.msra.mxu0 %v1834
    %3588 = vmatpush.bf16.msra.mxu0 %v1828
    %3589 = vmatmul.bf16.gmra.mxu0 %v629
    %v3590 = vpop.f32.mrf.mxu0
    %v3591 = vadd.f32 %v3542, %v3590
    %v3592 = vpop.f32.mrf.mxu0
    %v3593 = vadd.f32 %v3544, %v3592
    %3594 = vmatmul.bf16.gmra.mxu0 %v635
    %v3595 = vpop.f32.mrf.mxu0
    %v3596 = vadd.f32 %v3547, %v3595
    %v3597 = vpop.f32.mrf.mxu0
    %v3598 = vadd.f32 %v3549, %v3597
    %3599 = vmatmul.bf16.gmra.mxu0 %v641
    %v3600 = vpop.f32.mrf.mxu0
    %v3601 = vadd.f32 %v3552, %v3600
    %v3602 = vpop.f32.mrf.mxu0
    %v3603 = vadd.f32 %v3554, %v3602
    %3604 = vmatmul.bf16.gmra.mxu0 %v647
    %v3605 = vpop.f32.mrf.mxu0
    %v3606 = vadd.f32 %v3557, %v3605
    %v3607 = vpop.f32.mrf.mxu0
    %v3608 = vadd.f32 %v3559, %v3607
    %3609 = vmatmul.bf16.gmra.mxu0 %v653
    %v3610 = vpop.f32.mrf.mxu0
    %v3611 = vadd.f32 %v3562, %v3610
    %v3612 = vpop.f32.mrf.mxu0
    %v3613 = vadd.f32 %v3564, %v3612
    %3614 = vmatmul.bf16.gmra.mxu0 %v659
    %v3615 = vpop.f32.mrf.mxu0
    %v3616 = vadd.f32 %v3567, %v3615
    %v3617 = vpop.f32.mrf.mxu0
    %v3618 = vadd.f32 %v3569, %v3617
    %3619 = vmatmul.bf16.gmra.mxu0 %v665
    %v3620 = vpop.f32.mrf.mxu0
    %v3621 = vadd.f32 %v3572, %v3620
    %v3622 = vpop.f32.mrf.mxu0
    %v3623 = vadd.f32 %v3574, %v3622
    %3624 = vmatmul.bf16.gmra.mxu0 %v671
    %v3625 = vpop.f32.mrf.mxu0
    %v3626 = vadd.f32 %v3577, %v3625
    %v3627 = vpop.f32.mrf.mxu0
    %v3628 = vadd.f32 %v3579, %v3627
    %3629 = vdwg.mxu0
    %3630 = vmatpush.bf16.msra.mxu0 %v1631
    %3631 = vmatpush.bf16.msra.mxu0 %v1625
    %3632 = vmatpush.bf16.msra.mxu0 %v1619
    %3633 = vmatpush.bf16.msra.mxu0 %v1613
    %3634 = vmatpush.bf16.msra.mxu0 %v1607
    %3635 = vmatpush.bf16.msra.mxu0 %v1601
    %3636 = vmatpush.bf16.msra.mxu0 %v1595
    %3637 = vmatpush.bf16.msra.mxu0 %v1589
    %3638 = vmatmul.bf16.gmra.mxu0 %v624
    %v3639 = vpop.f32.mrf.mxu0
    %v3640 = vadd.f32 %v473, %v3639
    %v3641 = vpop.f32.mrf.mxu0
    %v3642 = vadd.f32 %v473, %v3641
    %3643 = vmatmul.bf16.gmra.mxu0 %v630
    %v3644 = vpop.f32.mrf.mxu0
    %v3645 = vadd.f32 %v473, %v3644
    %v3646 = vpop.f32.mrf.mxu0
    %v3647 = vadd.f32 %v473, %v3646
    %3648 = vmatmul.bf16.gmra.mxu0 %v636
    %v3649 = vpop.f32.mrf.mxu0
    %v3650 = vadd.f32 %v473, %v3649
    %v3651 = vpop.f32.mrf.mxu0
    %v3652 = vadd.f32 %v473, %v3651
    %3653 = vmatmul.bf16.gmra.mxu0 %v642
    %v3654 = vpop.f32.mrf.mxu0
    %v3655 = vadd.f32 %v473, %v3654
    %v3656 = vpop.f32.mrf.mxu0
    %v3657 = vadd.f32 %v473, %v3656
    %3658 = vmatmul.bf16.gmra.mxu0 %v648
    %v3659 = vpop.f32.mrf.mxu0
    %v3660 = vadd.f32 %v473, %v3659
    %v3661 = vpop.f32.mrf.mxu0
    %v3662 = vadd.f32 %v473, %v3661
    %3663 = vmatmul.bf16.gmra.mxu0 %v654
    %v3664 = vpop.f32.mrf.mxu0
    %v3665 = vadd.f32 %v473, %v3664
    %v3666 = vpop.f32.mrf.mxu0
    %v3667 = vadd.f32 %v473, %v3666
    %3668 = vmatmul.bf16.gmra.mxu0 %v660
    %v3669 = vpop.f32.mrf.mxu0
    %v3670 = vadd.f32 %v473, %v3669
    %v3671 = vpop.f32.mrf.mxu0
    %v3672 = vadd.f32 %v473, %v3671
    %3673 = vmatmul.bf16.gmra.mxu0 %v666
    %v3674 = vpop.f32.mrf.mxu0
    %v3675 = vadd.f32 %v473, %v3674
    %v3676 = vpop.f32.mrf.mxu0
    %v3677 = vadd.f32 %v473, %v3676
    %3678 = vdwg.mxu0
    %3679 = vmatpush.bf16.msra.mxu0 %v1679
    %3680 = vmatpush.bf16.msra.mxu0 %v1673
    %3681 = vmatpush.bf16.msra.mxu0 %v1667
    %3682 = vmatpush.bf16.msra.mxu0 %v1661
    %3683 = vmatpush.bf16.msra.mxu0 %v1655
    %3684 = vmatpush.bf16.msra.mxu0 %v1649
    %3685 = vmatpush.bf16.msra.mxu0 %v1643
    %3686 = vmatpush.bf16.msra.mxu0 %v1637
    %3687 = vmatmul.bf16.gmra.mxu0 %v625
    %v3688 = vpop.f32.mrf.mxu0
    %v3689 = vadd.f32 %v3640, %v3688
    %v3690 = vpop.f32.mrf.mxu0
    %v3691 = vadd.f32 %v3642, %v3690
    %3692 = vmatmul.bf16.gmra.mxu0 %v631
    %v3693 = vpop.f32.mrf.mxu0
    %v3694 = vadd.f32 %v3645, %v3693
    %v3695 = vpop.f32.mrf.mxu0
    %v3696 = vadd.f32 %v3647, %v3695
    %3697 = vmatmul.bf16.gmra.mxu0 %v637
    %v3698 = vpop.f32.mrf.mxu0
    %v3699 = vadd.f32 %v3650, %v3698
    %v3700 = vpop.f32.mrf.mxu0
    %v3701 = vadd.f32 %v3652, %v3700
    %3702 = vmatmul.bf16.gmra.mxu0 %v643
    %v3703 = vpop.f32.mrf.mxu0
    %v3704 = vadd.f32 %v3655, %v3703
    %v3705 = vpop.f32.mrf.mxu0
    %v3706 = vadd.f32 %v3657, %v3705
    %3707 = vmatmul.bf16.gmra.mxu0 %v649
    %v3708 = vpop.f32.mrf.mxu0
    %v3709 = vadd.f32 %v3660, %v3708
    %v3710 = vpop.f32.mrf.mxu0
    %v3711 = vadd.f32 %v3662, %v3710
    %3712 = vmatmul.bf16.gmra.mxu0 %v655
    %v3713 = vpop.f32.mrf.mxu0
    %v3714 = vadd.f32 %v3665, %v3713
    %v3715 = vpop.f32.mrf.mxu0
    %v3716 = vadd.f32 %v3667, %v3715
    %3717 = vmatmul.bf16.gmra.mxu0 %v661
    %v3718 = vpop.f32.mrf.mxu0
    %v3719 = vadd.f32 %v3670, %v3718
    %v3720 = vpop.f32.mrf.mxu0
    %v3721 = vadd.f32 %v3672, %v3720
    %3722 = vmatmul.bf16.gmra.mxu0 %v667
    %v3723 = vpop.f32.mrf.mxu0
    %v3724 = vadd.f32 %v3675, %v3723
    %v3725 = vpop.f32.mrf.mxu0
    %v3726 = vadd.f32 %v3677, %v3725
    %3727 = vdwg.mxu0
    %3728 = vmatpush.bf16.msra.mxu0 %v1727
    %3729 = vmatpush.bf16.msra.mxu0 %v1721
    %3730 = vmatpush.bf16.msra.mxu0 %v1715
    %3731 = vmatpush.bf16.msra.mxu0 %v1709
    %3732 = vmatpush.bf16.msra.mxu0 %v1703
    %3733 = vmatpush.bf16.msra.mxu0 %v1697
    %3734 = vmatpush.bf16.msra.mxu0 %v1691
    %3735 = vmatpush.bf16.msra.mxu0 %v1685
    %3736 = vmatmul.bf16.gmra.mxu0 %v626
    %v3737 = vpop.f32.mrf.mxu0
    %v3738 = vadd.f32 %v3689, %v3737
    %v3739 = vpop.f32.mrf.mxu0
    %v3740 = vadd.f32 %v3691, %v3739
    %3741 = vmatmul.bf16.gmra.mxu0 %v632
    %v3742 = vpop.f32.mrf.mxu0
    %v3743 = vadd.f32 %v3694, %v3742
    %v3744 = vpop.f32.mrf.mxu0
    %v3745 = vadd.f32 %v3696, %v3744
    %3746 = vmatmul.bf16.gmra.mxu0 %v638
    %v3747 = vpop.f32.mrf.mxu0
    %v3748 = vadd.f32 %v3699, %v3747
    %v3749 = vpop.f32.mrf.mxu0
    %v3750 = vadd.f32 %v3701, %v3749
    %3751 = vmatmul.bf16.gmra.mxu0 %v644
    %v3752 = vpop.f32.mrf.mxu0
    %v3753 = vadd.f32 %v3704, %v3752
    %v3754 = vpop.f32.mrf.mxu0
    %v3755 = vadd.f32 %v3706, %v3754
    %3756 = vmatmul.bf16.gmra.mxu0 %v650
    %v3757 = vpop.f32.mrf.mxu0
    %v3758 = vadd.f32 %v3709, %v3757
    %v3759 = vpop.f32.mrf.mxu0
    %v3760 = vadd.f32 %v3711, %v3759
    %3761 = vmatmul.bf16.gmra.mxu0 %v656
    %v3762 = vpop.f32.mrf.mxu0
    %v3763 = vadd.f32 %v3714, %v3762
    %v3764 = vpop.f32.mrf.mxu0
    %v3765 = vadd.f32 %v3716, %v3764
    %3766 = vmatmul.bf16.gmra.mxu0 %v662
    %v3767 = vpop.f32.mrf.mxu0
    %v3768 = vadd.f32 %v3719, %v3767
    %v3769 = vpop.f32.mrf.mxu0
    %v3770 = vadd.f32 %v3721, %v3769
    %3771 = vmatmul.bf16.gmra.mxu0 %v668
    %v3772 = vpop.f32.mrf.mxu0
    %v3773 = vadd.f32 %v3724, %v3772
    %v3774 = vpop.f32.mrf.mxu0
    %v3775 = vadd.f32 %v3726, %v3774
    %3776 = vdwg.mxu0
    %3777 = vmatpush.bf16.msra.mxu0 %v1775
    %3778 = vmatpush.bf16.msra.mxu0 %v1769
    %3779 = vmatpush.bf16.msra.mxu0 %v1763
    %3780 = vmatpush.bf16.msra.mxu0 %v1757
    %3781 = vmatpush.bf16.msra.mxu0 %v1751
    %3782 = vmatpush.bf16.msra.mxu0 %v1745
    %3783 = vmatpush.bf16.msra.mxu0 %v1739
    %3784 = vmatpush.bf16.msra.mxu0 %v1733
    %3785 = vmatmul.bf16.gmra.mxu0 %v627
    %v3786 = vpop.f32.mrf.mxu0
    %v3787 = vadd.f32 %v3738, %v3786
    %v3788 = vpop.f32.mrf.mxu0
    %v3789 = vadd.f32 %v3740, %v3788
    %3790 = vmatmul.bf16.gmra.mxu0 %v633
    %v3791 = vpop.f32.mrf.mxu0
    %v3792 = vadd.f32 %v3743, %v3791
    %v3793 = vpop.f32.mrf.mxu0
    %v3794 = vadd.f32 %v3745, %v3793
    %3795 = vmatmul.bf16.gmra.mxu0 %v639
    %v3796 = vpop.f32.mrf.mxu0
    %v3797 = vadd.f32 %v3748, %v3796
    %v3798 = vpop.f32.mrf.mxu0
    %v3799 = vadd.f32 %v3750, %v3798
    %3800 = vmatmul.bf16.gmra.mxu0 %v645
    %v3801 = vpop.f32.mrf.mxu0
    %v3802 = vadd.f32 %v3753, %v3801
    %v3803 = vpop.f32.mrf.mxu0
    %v3804 = vadd.f32 %v3755, %v3803
    %3805 = vmatmul.bf16.gmra.mxu0 %v651
    %v3806 = vpop.f32.mrf.mxu0
    %v3807 = vadd.f32 %v3758, %v3806
    %v3808 = vpop.f32.mrf.mxu0
    %v3809 = vadd.f32 %v3760, %v3808
    %3810 = vmatmul.bf16.gmra.mxu0 %v657
    %v3811 = vpop.f32.mrf.mxu0
    %v3812 = vadd.f32 %v3763, %v3811
    %v3813 = vpop.f32.mrf.mxu0
    %v3814 = vadd.f32 %v3765, %v3813
    %3815 = vmatmul.bf16.gmra.mxu0 %v663
    %v3816 = vpop.f32.mrf.mxu0
    %v3817 = vadd.f32 %v3768, %v3816
    %v3818 = vpop.f32.mrf.mxu0
    %v3819 = vadd.f32 %v3770, %v3818
    %3820 = vmatmul.bf16.gmra.mxu0 %v669
    %v3821 = vpop.f32.mrf.mxu0
    %v3822 = vadd.f32 %v3773, %v3821
    %v3823 = vpop.f32.mrf.mxu0
    %v3824 = vadd.f32 %v3775, %v3823
    %3825 = vdwg.mxu0
    %3826 = vmatpush.bf16.msra.mxu0 %v1823
    %3827 = vmatpush.bf16.msra.mxu0 %v1817
    %3828 = vmatpush.bf16.msra.mxu0 %v1811
    %3829 = vmatpush.bf16.msra.mxu0 %v1805
    %3830 = vmatpush.bf16.msra.mxu0 %v1799
    %3831 = vmatpush.bf16.msra.mxu0 %v1793
    %3832 = vmatpush.bf16.msra.mxu0 %v1787
    %3833 = vmatpush.bf16.msra.mxu0 %v1781
    %3834 = vmatmul.bf16.gmra.mxu0 %v628
    %v3835 = vpop.f32.mrf.mxu0
    %v3836 = vadd.f32 %v3787, %v3835
    %v3837 = vpop.f32.mrf.mxu0
    %v3838 = vadd.f32 %v3789, %v3837
    %3839 = vmatmul.bf16.gmra.mxu0 %v634
    %v3840 = vpop.f32.mrf.mxu0
    %v3841 = vadd.f32 %v3792, %v3840
    %v3842 = vpop.f32.mrf.mxu0
    %v3843 = vadd.f32 %v3794, %v3842
    %3844 = vmatmul.bf16.gmra.mxu0 %v640
    %v3845 = vpop.f32.mrf.mxu0
    %v3846 = vadd.f32 %v3797, %v3845
    %v3847 = vpop.f32.mrf.mxu0
    %v3848 = vadd.f32 %v3799, %v3847
    %3849 = vmatmul.bf16.gmra.mxu0 %v646
    %v3850 = vpop.f32.mrf.mxu0
    %v3851 = vadd.f32 %v3802, %v3850
    %v3852 = vpop.f32.mrf.mxu0
    %v3853 = vadd.f32 %v3804, %v3852
    %3854 = vmatmul.bf16.gmra.mxu0 %v652
    %v3855 = vpop.f32.mrf.mxu0
    %v3856 = vadd.f32 %v3807, %v3855
    %v3857 = vpop.f32.mrf.mxu0
    %v3858 = vadd.f32 %v3809, %v3857
    %3859 = vmatmul.bf16.gmra.mxu0 %v658
    %v3860 = vpop.f32.mrf.mxu0
    %v3861 = vadd.f32 %v3812, %v3860
    %v3862 = vpop.f32.mrf.mxu0
    %v3863 = vadd.f32 %v3814, %v3862
    %3864 = vmatmul.bf16.gmra.mxu0 %v664
    %v3865 = vpop.f32.mrf.mxu0
    %v3866 = vadd.f32 %v3817, %v3865
    %v3867 = vpop.f32.mrf.mxu0
    %v3868 = vadd.f32 %v3819, %v3867
    %3869 = vmatmul.bf16.gmra.mxu0 %v670
    %v3870 = vpop.f32.mrf.mxu0
    %v3871 = vadd.f32 %v3822, %v3870
    %v3872 = vpop.f32.mrf.mxu0
    %v3873 = vadd.f32 %v3824, %v3872
    %3874 = vdwg.mxu0
    %3875 = vmatpush.bf16.msra.mxu0 %v1871
    %3876 = vmatpush.bf16.msra.mxu0 %v1865
    %3877 = vmatpush.bf16.msra.mxu0 %v1859
    %3878 = vmatpush.bf16.msra.mxu0 %v1853
    %3879 = vmatpush.bf16.msra.mxu0 %v1847
    %3880 = vmatpush.bf16.msra.mxu0 %v1841
    %3881 = vmatpush.bf16.msra.mxu0 %v1835
    %3882 = vmatpush.bf16.msra.mxu0 %v1829
    %3883 = vmatmul.bf16.gmra.mxu0 %v629
    %v3884 = vpop.f32.mrf.mxu0
    %v3885 = vadd.f32 %v3836, %v3884
    %v3886 = vpop.f32.mrf.mxu0
    %v3887 = vadd.f32 %v3838, %v3886
    %3888 = vmatmul.bf16.gmra.mxu0 %v635
    %v3889 = vpop.f32.mrf.mxu0
    %v3890 = vadd.f32 %v3841, %v3889
    %v3891 = vpop.f32.mrf.mxu0
    %v3892 = vadd.f32 %v3843, %v3891
    %3893 = vmatmul.bf16.gmra.mxu0 %v641
    %v3894 = vpop.f32.mrf.mxu0
    %v3895 = vadd.f32 %v3846, %v3894
    %v3896 = vpop.f32.mrf.mxu0
    %v3897 = vadd.f32 %v3848, %v3896
    %3898 = vmatmul.bf16.gmra.mxu0 %v647
    %v3899 = vpop.f32.mrf.mxu0
    %v3900 = vadd.f32 %v3851, %v3899
    %v3901 = vpop.f32.mrf.mxu0
    %v3902 = vadd.f32 %v3853, %v3901
    %3903 = vmatmul.bf16.gmra.mxu0 %v653
    %v3904 = vpop.f32.mrf.mxu0
    %v3905 = vadd.f32 %v3856, %v3904
    %v3906 = vpop.f32.mrf.mxu0
    %v3907 = vadd.f32 %v3858, %v3906
    %3908 = vmatmul.bf16.gmra.mxu0 %v659
    %v3909 = vpop.f32.mrf.mxu0
    %v3910 = vadd.f32 %v3861, %v3909
    %v3911 = vpop.f32.mrf.mxu0
    %v3912 = vadd.f32 %v3863, %v3911
    %3913 = vmatmul.bf16.gmra.mxu0 %v665
    %v3914 = vpop.f32.mrf.mxu0
    %v3915 = vadd.f32 %v3866, %v3914
    %v3916 = vpop.f32.mrf.mxu0
    %v3917 = vadd.f32 %v3868, %v3916
    %3918 = vmatmul.bf16.gmra.mxu0 %v671
    %v3919 = vpop.f32.mrf.mxu0
    %v3920 = vadd.f32 %v3871, %v3919
    %v3921 = vpop.f32.mrf.mxu0
    %v3922 = vadd.f32 %v3873, %v3921
    %3923 = vdwg.mxu0
    %v3924 = vtanh.pop %v2415
    %v3925 = vtanh.pop %v2709
    %v3926 = vtanh.pop %v3003
    %v3927 = vtanh.pop %v3297
    %v3928 = vtanh.pop %v3591
    %v3929 = vtanh.pop %v3885
    %v3930 = vtanh.pop %v2417
    %v3931 = vtanh.pop %v2711
    %v3932 = vtanh.pop %v3005
    %v3933 = vtanh.pop %v3299
    %v3934 = vtanh.pop %v3593
    %v3935 = vtanh.pop %v3887
    %v3936 = vtanh.pop %v2420
    %v3937 = vtanh.pop %v2714
    %v3938 = vtanh.pop %v3008
    %v3939 = vtanh.pop %v3302
    %v3940 = vtanh.pop %v3596
    %v3941 = vtanh.pop %v3890
    %v3942 = vtanh.pop %v2422
    %v3943 = vtanh.pop %v2716
    %v3944 = vtanh.pop %v3010
    %v3945 = vtanh.pop %v3304
    %v3946 = vtanh.pop %v3598
    %v3947 = vtanh.pop %v3892
    %v3948 = vtanh.pop %v2425
    %v3949 = vtanh.pop %v2719
    %v3950 = vtanh.pop %v3013
    %v3951 = vtanh.pop %v3307
    %v3952 = vtanh.pop %v3601
    %v3953 = vtanh.pop %v3895
    %v3954 = vtanh.pop %v2427
    %v3955 = vtanh.pop %v2721
    %v3956 = vtanh.pop %v3015
    %v3957 = vtanh.pop %v3309
    %v3958 = vtanh.pop %v3603
    %v3959 = vtanh.pop %v3897
    %v3960 = vtanh.pop %v2430
    %v3961 = vtanh.pop %v2724
    %v3962 = vtanh.pop %v3018
    %v3963 = vtanh.pop %v3312
    %v3964 = vtanh.pop %v3606
    %v3965 = vtanh.pop %v3900
    %v3966 = vtanh.pop %v2432
    %v3967 = vtanh.pop %v2726
    %v3968 = vtanh.pop %v3020
    %v3969 = vtanh.pop %v3314
    %v3970 = vtanh.pop %v3608
    %v3971 = vtanh.pop %v3902
    %v3972 = vtanh.pop %v2435
    %v3973 = vtanh.pop %v2729
    %v3974 = vtanh.pop %v3023
    %v3975 = vtanh.pop %v3317
    %v3976 = vtanh.pop %v3611
    %v3977 = vtanh.pop %v3905
    %v3978 = vtanh.pop %v2437
    %v3979 = vtanh.pop %v2731
    %v3980 = vtanh.pop %v3025
    %v3981 = vtanh.pop %v3319
    %v3982 = vtanh.pop %v3613
    %v3983 = vtanh.pop %v3907
    %v3984 = vtanh.pop %v2440
    %v3985 = vtanh.pop %v2734
    %v3986 = vtanh.pop %v3028
    %v3987 = vtanh.pop %v3322
    %v3988 = vtanh.pop %v3616
    %v3989 = vtanh.pop %v3910
    %v3990 = vtanh.pop %v2442
    %v3991 = vtanh.pop %v2736
    %v3992 = vtanh.pop %v3030
    %v3993 = vtanh.pop %v3324
    %v3994 = vtanh.pop %v3618
    %v3995 = vtanh.pop %v3912
    %v3996 = vtanh.pop %v2445
    %v3997 = vtanh.pop %v2739
    %v3998 = vtanh.pop %v3033
    %v3999 = vtanh.pop %v3327
    %v4000 = vtanh.pop %v3621
    %v4001 = vtanh.pop %v3915
    %v4002 = vtanh.pop %v2447
    %v4003 = vtanh.pop %v2741
    %v4004 = vtanh.pop %v3035
    %v4005 = vtanh.pop %v3329
    %v4006 = vtanh.pop %v3623
    %v4007 = vtanh.pop %v3917
    %v4008 = vtanh.pop %v2450
    %v4009 = vtanh.pop %v2744
    %v4010 = vtanh.pop %v3038
    %v4011 = vtanh.pop %v3332
    %v4012 = vtanh.pop %v3626
    %v4013 = vtanh.pop %v3920
    %v4014 = vtanh.pop %v2452
    %v4015 = vtanh.pop %v2746
    %v4016 = vtanh.pop %v3040
    %v4017 = vtanh.pop %v3334
    %v4018 = vtanh.pop %v3628
    %v4019 = vtanh.pop %v3922
    %v4020 = vpack.c.bf16 %v3930, %v3924
    %v4021 = vpack.c.bf16 %v3931, %v3925
    %v4022 = vpack.c.bf16 %v3932, %v3926
    %v4023 = vpack.c.bf16 %v3933, %v3927
    %v4024 = vpack.c.bf16 %v3934, %v3928
    %v4025 = vpack.c.bf16 %v3935, %v3929
    %v4026 = vpack.c.bf16 %v3942, %v3936
    %v4027 = vpack.c.bf16 %v3943, %v3937
    %v4028 = vpack.c.bf16 %v3944, %v3938
    %v4029 = vpack.c.bf16 %v3945, %v3939
    %v4030 = vpack.c.bf16 %v3946, %v3940
    %v4031 = vpack.c.bf16 %v3947, %v3941
    %v4032 = vpack.c.bf16 %v3954, %v3948
    %v4033 = vpack.c.bf16 %v3955, %v3949
    %v4034 = vpack.c.bf16 %v3956, %v3950
    %v4035 = vpack.c.bf16 %v3957, %v3951
    %v4036 = vpack.c.bf16 %v3958, %v3952
    %v4037 = vpack.c.bf16 %v3959, %v3953
    %v4038 = vpack.c.bf16 %v3966, %v3960
    %v4039 = vpack.c.bf16 %v3967, %v3961
    %v4040 = vpack.c.bf16 %v3968, %v3962
    %v4041 = vpack.c.bf16 %v3969, %v3963
    %v4042 = vpack.c.bf16 %v3970, %v3964
    %v4043 = vpack.c.bf16 %v3971, %v3965
    %v4044 = vpack.c.bf16 %v3978, %v3972
    %v4045 = vpack.c.bf16 %v3979, %v3973
    %v4046 = vpack.c.bf16 %v3980, %v3974
    %v4047 = vpack.c.bf16 %v3981, %v3975
    %v4048 = vpack.c.bf16 %v3982, %v3976
    %v4049 = vpack.c.bf16 %v3983, %v3977
    %v4050 = vpack.c.bf16 %v3990, %v3984
    %v4051 = vpack.c.bf16 %v3991, %v3985
    %v4052 = vpack.c.bf16 %v3992, %v3986
    %v4053 = vpack.c.bf16 %v3993, %v3987
    %v4054 = vpack.c.bf16 %v3994, %v3988
    %v4055 = vpack.c.bf16 %v3995, %v3989
    %v4056 = vpack.c.bf16 %v4002, %v3996
    %v4057 = vpack.c.bf16 %v4003, %v3997
    %v4058 = vpack.c.bf16 %v4004, %v3998
    %v4059 = vpack.c.bf16 %v4005, %v3999
    %v4060 = vpack.c.bf16 %v4006, %v4000
    %v4061 = vpack.c.bf16 %v4007, %v4001
    %v4062 = vpack.c.bf16 %v4014, %v4008
    %v4063 = vpack.c.bf16 %v4015, %v4009
    %v4064 = vpack.c.bf16 %v4016, %v4010
    %v4065 = vpack.c.bf16 %v4017, %v4011
    %v4066 = vpack.c.bf16 %v4018, %v4012
    %v4067 = vpack.c.bf16 %v4019, %v4013
    %v4068 = vld [vmem:[#allocation8] sm:$0xff]
    %v4069 = vld [vmem:[#allocation8 + $0x8] sm:$0xff]
    %v4070 = vld [vmem:[#allocation8 + $0x10] sm:$0xff]
    %v4071 = vld [vmem:[#allocation8 + $0x18] sm:$0xff]
    %v4072 = vld [vmem:[#allocation8 + $0x20] sm:$0xff]
    %v4073 = vld [vmem:[#allocation8 + $0x28] sm:$0xff]
    %v4074 = vld [vmem:[#allocation8 + $0x30] sm:$0xff]
    %v4075 = vld [vmem:[#allocation8 + $0x38] sm:$0xff]
    %v4076 = vld [vmem:[#allocation8 + $0x40] sm:$0xff]
    %v4077 = vld [vmem:[#allocation8 + $0x48] sm:$0xff]
    %v4078 = vld [vmem:[#allocation8 + $0x50] sm:$0xff]
    %v4079 = vld [vmem:[#allocation8 + $0x58] sm:$0xff]
    %v4080 = vld [vmem:[#allocation8 + $0x60] sm:$0xff]
    %v4081 = vld [vmem:[#allocation8 + $0x68] sm:$0xff]
    %v4082 = vld [vmem:[#allocation8 + $0x70] sm:$0xff]
    %v4083 = vld [vmem:[#allocation8 + $0x78] sm:$0xff]
    %v4084 = vld [vmem:[#allocation8 + $0x80] sm:$0xff]
    %v4085 = vld [vmem:[#allocation8 + $0x88] sm:$0xff]
    %v4086 = vld [vmem:[#allocation8 + $0x90] sm:$0xff]
    %v4087 = vld [vmem:[#allocation8 + $0x98] sm:$0xff]
    %v4088 = vld [vmem:[#allocation8 + $0xa0] sm:$0xff]
    %v4089 = vld [vmem:[#allocation8 + $0xa8] sm:$0xff]
    %v4090 = vld [vmem:[#allocation8 + $0xb0] sm:$0xff]
    %v4091 = vld [vmem:[#allocation8 + $0xb8] sm:$0xff]
    %v4092 = vld [vmem:[#allocation8 + $0xc0] sm:$0xff]
    %v4093 = vld [vmem:[#allocation8 + $0xc8] sm:$0xff]
    %v4094 = vld [vmem:[#allocation8 + $0xd0] sm:$0xff]
    %v4095 = vld [vmem:[#allocation8 + $0xd8] sm:$0xff]
    %v4096 = vld [vmem:[#allocation8 + $0xe0] sm:$0xff]
    %v4097 = vld [vmem:[#allocation8 + $0xe8] sm:$0xff]
    %v4098 = vld [vmem:[#allocation8 + $0xf0] sm:$0xff]
    %v4099 = vld [vmem:[#allocation8 + $0xf8] sm:$0xff]
    %v4100 = vld [vmem:[#allocation8 + $0x100] sm:$0xff]
    %v4101 = vld [vmem:[#allocation8 + $0x108] sm:$0xff]
    %v4102 = vld [vmem:[#allocation8 + $0x110] sm:$0xff]
    %v4103 = vld [vmem:[#allocation8 + $0x118] sm:$0xff]
    %v4104 = vld [vmem:[#allocation8 + $0x120] sm:$0xff]
    %v4105 = vld [vmem:[#allocation8 + $0x128] sm:$0xff]
    %v4106 = vld [vmem:[#allocation8 + $0x130] sm:$0xff]
    %v4107 = vld [vmem:[#allocation8 + $0x138] sm:$0xff]
    %v4108 = vld [vmem:[#allocation8 + $0x140] sm:$0xff]
    %v4109 = vld [vmem:[#allocation8 + $0x148] sm:$0xff]
    %v4110 = vld [vmem:[#allocation8 + $0x150] sm:$0xff]
    %v4111 = vld [vmem:[#allocation8 + $0x158] sm:$0xff]
    %v4112 = vld [vmem:[#allocation8 + $0x160] sm:$0xff]
    %v4113 = vld [vmem:[#allocation8 + $0x168] sm:$0xff]
    %v4114 = vld [vmem:[#allocation8 + $0x170] sm:$0xff]
    %v4115 = vld [vmem:[#allocation8 + $0x178] sm:$0xff]
    %v4116 = vld [vmem:[#allocation8 + $0x180] sm:$0xff]
    %v4117 = vld [vmem:[#allocation8 + $0x188] sm:$0xff]
    %v4118 = vld [vmem:[#allocation8 + $0x190] sm:$0xff]
    %v4119 = vld [vmem:[#allocation8 + $0x198] sm:$0xff]
    %v4120 = vld [vmem:[#allocation8 + $0x1a0] sm:$0xff]
    %v4121 = vld [vmem:[#allocation8 + $0x1a8] sm:$0xff]
    %v4122 = vld [vmem:[#allocation8 + $0x1b0] sm:$0xff]
    %v4123 = vld [vmem:[#allocation8 + $0x1b8] sm:$0xff]
    %v4124 = vld [vmem:[#allocation8 + $0x1c0] sm:$0xff]
    %v4125 = vld [vmem:[#allocation8 + $0x1c8] sm:$0xff]
    %v4126 = vld [vmem:[#allocation8 + $0x1d0] sm:$0xff]
    %v4127 = vld [vmem:[#allocation8 + $0x1d8] sm:$0xff]
    %v4128 = vld [vmem:[#allocation8 + $0x1e0] sm:$0xff]
    %v4129 = vld [vmem:[#allocation8 + $0x1e8] sm:$0xff]
    %v4130 = vld [vmem:[#allocation8 + $0x1f0] sm:$0xff]
    %v4131 = vld [vmem:[#allocation8 + $0x1f8] sm:$0xff]
    %v4132 = vld [vmem:[#allocation8 + $0x200] sm:$0xff]
    %v4133 = vld [vmem:[#allocation8 + $0x208] sm:$0xff]
    %v4134 = vld [vmem:[#allocation8 + $0x210] sm:$0xff]
    %v4135 = vld [vmem:[#allocation8 + $0x218] sm:$0xff]
    %v4136 = vld [vmem:[#allocation8 + $0x220] sm:$0xff]
    %v4137 = vld [vmem:[#allocation8 + $0x228] sm:$0xff]
    %v4138 = vld [vmem:[#allocation8 + $0x230] sm:$0xff]
    %v4139 = vld [vmem:[#allocation8 + $0x238] sm:$0xff]
    %v4140 = vld [vmem:[#allocation8 + $0x240] sm:$0xff]
    %v4141 = vld [vmem:[#allocation8 + $0x248] sm:$0xff]
    %v4142 = vld [vmem:[#allocation8 + $0x250] sm:$0xff]
    %v4143 = vld [vmem:[#allocation8 + $0x258] sm:$0xff]
    %v4144 = vld [vmem:[#allocation8 + $0x260] sm:$0xff]
    %v4145 = vld [vmem:[#allocation8 + $0x268] sm:$0xff]
    %v4146 = vld [vmem:[#allocation8 + $0x270] sm:$0xff]
    %v4147 = vld [vmem:[#allocation8 + $0x278] sm:$0xff]
    %v4148 = vld [vmem:[#allocation8 + $0x280] sm:$0xff]
    %v4149 = vld [vmem:[#allocation8 + $0x288] sm:$0xff]
    %v4150 = vld [vmem:[#allocation8 + $0x290] sm:$0xff]
    %v4151 = vld [vmem:[#allocation8 + $0x298] sm:$0xff]
    %v4152 = vld [vmem:[#allocation8 + $0x2a0] sm:$0xff]
    %v4153 = vld [vmem:[#allocation8 + $0x2a8] sm:$0xff]
    %v4154 = vld [vmem:[#allocation8 + $0x2b0] sm:$0xff]
    %v4155 = vld [vmem:[#allocation8 + $0x2b8] sm:$0xff]
    %v4156 = vld [vmem:[#allocation8 + $0x2c0] sm:$0xff]
    %v4157 = vld [vmem:[#allocation8 + $0x2c8] sm:$0xff]
    %v4158 = vld [vmem:[#allocation8 + $0x2d0] sm:$0xff]
    %v4159 = vld [vmem:[#allocation8 + $0x2d8] sm:$0xff]
    %v4160 = vld [vmem:[#allocation8 + $0x2e0] sm:$0xff]
    %v4161 = vld [vmem:[#allocation8 + $0x2e8] sm:$0xff]
    %v4162 = vld [vmem:[#allocation8 + $0x2f0] sm:$0xff]
    %v4163 = vld [vmem:[#allocation8 + $0x2f8] sm:$0xff]
    %v4164 = vld [vmem:[#allocation8 + $0x300] sm:$0xff]
    %v4165 = vld [vmem:[#allocation8 + $0x308] sm:$0xff]
    %v4166 = vld [vmem:[#allocation8 + $0x310] sm:$0xff]
    %v4167 = vld [vmem:[#allocation8 + $0x318] sm:$0xff]
    %v4168 = vld [vmem:[#allocation8 + $0x320] sm:$0xff]
    %v4169 = vld [vmem:[#allocation8 + $0x328] sm:$0xff]
    %v4170 = vld [vmem:[#allocation8 + $0x330] sm:$0xff]
    %v4171 = vld [vmem:[#allocation8 + $0x338] sm:$0xff]
    %v4172 = vld [vmem:[#allocation8 + $0x340] sm:$0xff]
    %v4173 = vld [vmem:[#allocation8 + $0x348] sm:$0xff]
    %v4174 = vld [vmem:[#allocation8 + $0x350] sm:$0xff]
    %v4175 = vld [vmem:[#allocation8 + $0x358] sm:$0xff]
    %v4176 = vld [vmem:[#allocation8 + $0x360] sm:$0xff]
    %v4177 = vld [vmem:[#allocation8 + $0x368] sm:$0xff]
    %v4178 = vld [vmem:[#allocation8 + $0x370] sm:$0xff]
    %v4179 = vld [vmem:[#allocation8 + $0x378] sm:$0xff]
    %v4180 = vld [vmem:[#allocation8 + $0x380] sm:$0xff]
    %v4181 = vld [vmem:[#allocation8 + $0x388] sm:$0xff]
    %v4182 = vld [vmem:[#allocation8 + $0x390] sm:$0xff]
    %v4183 = vld [vmem:[#allocation8 + $0x398] sm:$0xff]
    %v4184 = vld [vmem:[#allocation8 + $0x3a0] sm:$0xff]
    %v4185 = vld [vmem:[#allocation8 + $0x3a8] sm:$0xff]
    %v4186 = vld [vmem:[#allocation8 + $0x3b0] sm:$0xff]
    %v4187 = vld [vmem:[#allocation8 + $0x3b8] sm:$0xff]
    %v4188 = vld [vmem:[#allocation8 + $0x3c0] sm:$0xff]
    %v4189 = vld [vmem:[#allocation8 + $0x3c8] sm:$0xff]
    %v4190 = vld [vmem:[#allocation8 + $0x3d0] sm:$0xff]
    %v4191 = vld [vmem:[#allocation8 + $0x3d8] sm:$0xff]
    %v4192 = vld [vmem:[#allocation8 + $0x3e0] sm:$0xff]
    %v4193 = vld [vmem:[#allocation8 + $0x3e8] sm:$0xff]
    %v4194 = vld [vmem:[#allocation8 + $0x3f0] sm:$0xff]
    %v4195 = vld [vmem:[#allocation8 + $0x3f8] sm:$0xff]
    %v4196 = vld [vmem:[#allocation8 + $0x400] sm:$0xff]
    %v4197 = vld [vmem:[#allocation8 + $0x408] sm:$0xff]
    %v4198 = vld [vmem:[#allocation8 + $0x410] sm:$0xff]
    %v4199 = vld [vmem:[#allocation8 + $0x418] sm:$0xff]
    %v4200 = vld [vmem:[#allocation8 + $0x420] sm:$0xff]
    %v4201 = vld [vmem:[#allocation8 + $0x428] sm:$0xff]
    %v4202 = vld [vmem:[#allocation8 + $0x430] sm:$0xff]
    %v4203 = vld [vmem:[#allocation8 + $0x438] sm:$0xff]
    %v4204 = vld [vmem:[#allocation8 + $0x440] sm:$0xff]
    %v4205 = vld [vmem:[#allocation8 + $0x448] sm:$0xff]
    %v4206 = vld [vmem:[#allocation8 + $0x450] sm:$0xff]
    %v4207 = vld [vmem:[#allocation8 + $0x458] sm:$0xff]
    %v4208 = vld [vmem:[#allocation8 + $0x460] sm:$0xff]
    %v4209 = vld [vmem:[#allocation8 + $0x468] sm:$0xff]
    %v4210 = vld [vmem:[#allocation8 + $0x470] sm:$0xff]
    %v4211 = vld [vmem:[#allocation8 + $0x478] sm:$0xff]
    %v4212 = vld [vmem:[#allocation8 + $0x480] sm:$0xff]
    %v4213 = vld [vmem:[#allocation8 + $0x488] sm:$0xff]
    %v4214 = vld [vmem:[#allocation8 + $0x490] sm:$0xff]
    %v4215 = vld [vmem:[#allocation8 + $0x498] sm:$0xff]
    %v4216 = vld [vmem:[#allocation8 + $0x4a0] sm:$0xff]
    %v4217 = vld [vmem:[#allocation8 + $0x4a8] sm:$0xff]
    %v4218 = vld [vmem:[#allocation8 + $0x4b0] sm:$0xff]
    %v4219 = vld [vmem:[#allocation8 + $0x4b8] sm:$0xff]
    %v4220 = vld [vmem:[#allocation8 + $0x4c0] sm:$0xff]
    %v4221 = vld [vmem:[#allocation8 + $0x4c8] sm:$0xff]
    %v4222 = vld [vmem:[#allocation8 + $0x4d0] sm:$0xff]
    %v4223 = vld [vmem:[#allocation8 + $0x4d8] sm:$0xff]
    %v4224 = vld [vmem:[#allocation8 + $0x4e0] sm:$0xff]
    %v4225 = vld [vmem:[#allocation8 + $0x4e8] sm:$0xff]
    %v4226 = vld [vmem:[#allocation8 + $0x4f0] sm:$0xff]
    %v4227 = vld [vmem:[#allocation8 + $0x4f8] sm:$0xff]
    %v4228 = vld [vmem:[#allocation8 + $0x500] sm:$0xff]
    %v4229 = vld [vmem:[#allocation8 + $0x508] sm:$0xff]
    %v4230 = vld [vmem:[#allocation8 + $0x510] sm:$0xff]
    %v4231 = vld [vmem:[#allocation8 + $0x518] sm:$0xff]
    %v4232 = vld [vmem:[#allocation8 + $0x520] sm:$0xff]
    %v4233 = vld [vmem:[#allocation8 + $0x528] sm:$0xff]
    %v4234 = vld [vmem:[#allocation8 + $0x530] sm:$0xff]
    %v4235 = vld [vmem:[#allocation8 + $0x538] sm:$0xff]
    %v4236 = vld [vmem:[#allocation8 + $0x540] sm:$0xff]
    %v4237 = vld [vmem:[#allocation8 + $0x548] sm:$0xff]
    %v4238 = vld [vmem:[#allocation8 + $0x550] sm:$0xff]
    %v4239 = vld [vmem:[#allocation8 + $0x558] sm:$0xff]
    %v4240 = vld [vmem:[#allocation8 + $0x560] sm:$0xff]
    %v4241 = vld [vmem:[#allocation8 + $0x568] sm:$0xff]
    %v4242 = vld [vmem:[#allocation8 + $0x570] sm:$0xff]
    %v4243 = vld [vmem:[#allocation8 + $0x578] sm:$0xff]
    %v4244 = vld [vmem:[#allocation8 + $0x580] sm:$0xff]
    %v4245 = vld [vmem:[#allocation8 + $0x588] sm:$0xff]
    %v4246 = vld [vmem:[#allocation8 + $0x590] sm:$0xff]
    %v4247 = vld [vmem:[#allocation8 + $0x598] sm:$0xff]
    %v4248 = vld [vmem:[#allocation8 + $0x5a0] sm:$0xff]
    %v4249 = vld [vmem:[#allocation8 + $0x5a8] sm:$0xff]
    %v4250 = vld [vmem:[#allocation8 + $0x5b0] sm:$0xff]
    %v4251 = vld [vmem:[#allocation8 + $0x5b8] sm:$0xff]
    %v4252 = vld [vmem:[#allocation8 + $0x5c0] sm:$0xff]
    %v4253 = vld [vmem:[#allocation8 + $0x5c8] sm:$0xff]
    %v4254 = vld [vmem:[#allocation8 + $0x5d0] sm:$0xff]
    %v4255 = vld [vmem:[#allocation8 + $0x5d8] sm:$0xff]
    %v4256 = vld [vmem:[#allocation8 + $0x5e0] sm:$0xff]
    %v4257 = vld [vmem:[#allocation8 + $0x5e8] sm:$0xff]
    %v4258 = vld [vmem:[#allocation8 + $0x5f0] sm:$0xff]
    %v4259 = vld [vmem:[#allocation8 + $0x5f8] sm:$0xff]
    %v4260 = vld [vmem:[#allocation10] sm:$0xf]
    %v4262 = vperm.slane %v4260, 0
    %v4263 = vperm.slane %v4260, 1
    %v4264 = vperm.slane %v4260, 2
    %v4265 = vperm.slane %v4260, 3
    %v4462 = vunpack.c.l.b16 %v4068
    %v4463 = vunpack.c.h.b16 %v4068
    %v4464 = vunpack.c.l.b16 %v4069
    %v4465 = vunpack.c.h.b16 %v4069
    %v4466 = vunpack.c.l.b16 %v4070
    %v4467 = vunpack.c.h.b16 %v4070
    %v4468 = vunpack.c.l.b16 %v4071
    %v4469 = vunpack.c.h.b16 %v4071
    %v4470 = vunpack.c.l.b16 %v4072
    %v4471 = vunpack.c.h.b16 %v4072
    %v4472 = vunpack.c.l.b16 %v4073
    %v4473 = vunpack.c.h.b16 %v4073
    %v4474 = vunpack.c.l.b16 %v4074
    %v4475 = vunpack.c.h.b16 %v4074
    %v4476 = vunpack.c.l.b16 %v4075
    %v4477 = vunpack.c.h.b16 %v4075
    %v4478 = vunpack.c.l.b16 %v4076
    %v4479 = vunpack.c.h.b16 %v4076
    %v4480 = vunpack.c.l.b16 %v4077
    %v4481 = vunpack.c.h.b16 %v4077
    %v4482 = vunpack.c.l.b16 %v4078
    %v4483 = vunpack.c.h.b16 %v4078
    %v4484 = vunpack.c.l.b16 %v4079
    %v4485 = vunpack.c.h.b16 %v4079
    %v4486 = vunpack.c.l.b16 %v4080
    %v4487 = vunpack.c.h.b16 %v4080
    %v4488 = vunpack.c.l.b16 %v4081
    %v4489 = vunpack.c.h.b16 %v4081
    %v4490 = vunpack.c.l.b16 %v4082
    %v4491 = vunpack.c.h.b16 %v4082
    %v4492 = vunpack.c.l.b16 %v4083
    %v4493 = vunpack.c.h.b16 %v4083
    %v4494 = vunpack.c.l.b16 %v4084
    %v4495 = vunpack.c.h.b16 %v4084
    %v4496 = vunpack.c.l.b16 %v4085
    %v4497 = vunpack.c.h.b16 %v4085
    %v4498 = vunpack.c.l.b16 %v4086
    %v4499 = vunpack.c.h.b16 %v4086
    %v4500 = vunpack.c.l.b16 %v4087
    %v4501 = vunpack.c.h.b16 %v4087
    %v4502 = vunpack.c.l.b16 %v4088
    %v4503 = vunpack.c.h.b16 %v4088
    %v4504 = vunpack.c.l.b16 %v4089
    %v4505 = vunpack.c.h.b16 %v4089
    %v4506 = vunpack.c.l.b16 %v4090
    %v4507 = vunpack.c.h.b16 %v4090
    %v4508 = vunpack.c.l.b16 %v4091
    %v4509 = vunpack.c.h.b16 %v4091
    %v4510 = vunpack.c.l.b16 %v4092
    %v4511 = vunpack.c.h.b16 %v4092
    %v4512 = vunpack.c.l.b16 %v4093
    %v4513 = vunpack.c.h.b16 %v4093
    %v4514 = vunpack.c.l.b16 %v4094
    %v4515 = vunpack.c.h.b16 %v4094
    %v4516 = vunpack.c.l.b16 %v4095
    %v4517 = vunpack.c.h.b16 %v4095
    %v4518 = vunpack.c.l.b16 %v4096
    %v4519 = vunpack.c.h.b16 %v4096
    %v4520 = vunpack.c.l.b16 %v4097
    %v4521 = vunpack.c.h.b16 %v4097
    %v4522 = vunpack.c.l.b16 %v4098
    %v4523 = vunpack.c.h.b16 %v4098
    %v4524 = vunpack.c.l.b16 %v4099
    %v4525 = vunpack.c.h.b16 %v4099
    %v4526 = vunpack.c.l.b16 %v4100
    %v4527 = vunpack.c.h.b16 %v4100
    %v4528 = vunpack.c.l.b16 %v4101
    %v4529 = vunpack.c.h.b16 %v4101
    %v4530 = vunpack.c.l.b16 %v4102
    %v4531 = vunpack.c.h.b16 %v4102
    %v4532 = vunpack.c.l.b16 %v4103
    %v4533 = vunpack.c.h.b16 %v4103
    %v4534 = vunpack.c.l.b16 %v4104
    %v4535 = vunpack.c.h.b16 %v4104
    %v4536 = vunpack.c.l.b16 %v4105
    %v4537 = vunpack.c.h.b16 %v4105
    %v4538 = vunpack.c.l.b16 %v4106
    %v4539 = vunpack.c.h.b16 %v4106
    %v4540 = vunpack.c.l.b16 %v4107
    %v4541 = vunpack.c.h.b16 %v4107
    %v4542 = vunpack.c.l.b16 %v4108
    %v4543 = vunpack.c.h.b16 %v4108
    %v4544 = vunpack.c.l.b16 %v4109
    %v4545 = vunpack.c.h.b16 %v4109
    %v4546 = vunpack.c.l.b16 %v4110
    %v4547 = vunpack.c.h.b16 %v4110
    %v4548 = vunpack.c.l.b16 %v4111
    %v4549 = vunpack.c.h.b16 %v4111
    %v4550 = vunpack.c.l.b16 %v4112
    %v4551 = vunpack.c.h.b16 %v4112
    %v4552 = vunpack.c.l.b16 %v4113
    %v4553 = vunpack.c.h.b16 %v4113
    %v4554 = vunpack.c.l.b16 %v4114
    %v4555 = vunpack.c.h.b16 %v4114
    %v4556 = vunpack.c.l.b16 %v4115
    %v4557 = vunpack.c.h.b16 %v4115
    %v4558 = vunpack.c.l.b16 %v4116
    %v4559 = vunpack.c.h.b16 %v4116
    %v4560 = vunpack.c.l.b16 %v4117
    %v4561 = vunpack.c.h.b16 %v4117
    %v4562 = vunpack.c.l.b16 %v4118
    %v4563 = vunpack.c.h.b16 %v4118
    %v4564 = vunpack.c.l.b16 %v4119
    %v4565 = vunpack.c.h.b16 %v4119
    %v4566 = vunpack.c.l.b16 %v4120
    %v4567 = vunpack.c.h.b16 %v4120
    %v4568 = vunpack.c.l.b16 %v4121
    %v4569 = vunpack.c.h.b16 %v4121
    %v4570 = vunpack.c.l.b16 %v4122
    %v4571 = vunpack.c.h.b16 %v4122
    %v4572 = vunpack.c.l.b16 %v4123
    %v4573 = vunpack.c.h.b16 %v4123
    %v4574 = vunpack.c.l.b16 %v4124
    %v4575 = vunpack.c.h.b16 %v4124
    %v4576 = vunpack.c.l.b16 %v4125
    %v4577 = vunpack.c.h.b16 %v4125
    %v4578 = vunpack.c.l.b16 %v4126
    %v4579 = vunpack.c.h.b16 %v4126
    %v4580 = vunpack.c.l.b16 %v4127
    %v4581 = vunpack.c.h.b16 %v4127
    %v4582 = vunpack.c.l.b16 %v4128
    %v4583 = vunpack.c.h.b16 %v4128
    %v4584 = vunpack.c.l.b16 %v4129
    %v4585 = vunpack.c.h.b16 %v4129
    %v4586 = vunpack.c.l.b16 %v4130
    %v4587 = vunpack.c.h.b16 %v4130
    %v4588 = vunpack.c.l.b16 %v4131
    %v4589 = vunpack.c.h.b16 %v4131
    %v4590 = vunpack.c.l.b16 %v4132
    %v4591 = vunpack.c.h.b16 %v4132
    %v4592 = vunpack.c.l.b16 %v4133
    %v4593 = vunpack.c.h.b16 %v4133
    %v4594 = vunpack.c.l.b16 %v4134
    %v4595 = vunpack.c.h.b16 %v4134
    %v4596 = vunpack.c.l.b16 %v4135
    %v4597 = vunpack.c.h.b16 %v4135
    %v4598 = vunpack.c.l.b16 %v4136
    %v4599 = vunpack.c.h.b16 %v4136
    %v4600 = vunpack.c.l.b16 %v4137
    %v4601 = vunpack.c.h.b16 %v4137
    %v4602 = vunpack.c.l.b16 %v4138
    %v4603 = vunpack.c.h.b16 %v4138
    %v4604 = vunpack.c.l.b16 %v4139
    %v4605 = vunpack.c.h.b16 %v4139
    %v4606 = vunpack.c.l.b16 %v4140
    %v4607 = vunpack.c.h.b16 %v4140
    %v4608 = vunpack.c.l.b16 %v4141
    %v4609 = vunpack.c.h.b16 %v4141
    %v4610 = vunpack.c.l.b16 %v4142
    %v4611 = vunpack.c.h.b16 %v4142
    %v4612 = vunpack.c.l.b16 %v4143
    %v4613 = vunpack.c.h.b16 %v4143
    %v4614 = vunpack.c.l.b16 %v4144
    %v4615 = vunpack.c.h.b16 %v4144
    %v4616 = vunpack.c.l.b16 %v4145
    %v4617 = vunpack.c.h.b16 %v4145
    %v4618 = vunpack.c.l.b16 %v4146
    %v4619 = vunpack.c.h.b16 %v4146
    %v4620 = vunpack.c.l.b16 %v4147
    %v4621 = vunpack.c.h.b16 %v4147
    %v4622 = vunpack.c.l.b16 %v4148
    %v4623 = vunpack.c.h.b16 %v4148
    %v4624 = vunpack.c.l.b16 %v4149
    %v4625 = vunpack.c.h.b16 %v4149
    %v4626 = vunpack.c.l.b16 %v4150
    %v4627 = vunpack.c.h.b16 %v4150
    %v4628 = vunpack.c.l.b16 %v4151
    %v4629 = vunpack.c.h.b16 %v4151
    %v4630 = vunpack.c.l.b16 %v4152
    %v4631 = vunpack.c.h.b16 %v4152
    %v4632 = vunpack.c.l.b16 %v4153
    %v4633 = vunpack.c.h.b16 %v4153
    %v4634 = vunpack.c.l.b16 %v4154
    %v4635 = vunpack.c.h.b16 %v4154
    %v4636 = vunpack.c.l.b16 %v4155
    %v4637 = vunpack.c.h.b16 %v4155
    %v4638 = vunpack.c.l.b16 %v4156
    %v4639 = vunpack.c.h.b16 %v4156
    %v4640 = vunpack.c.l.b16 %v4157
    %v4641 = vunpack.c.h.b16 %v4157
    %v4642 = vunpack.c.l.b16 %v4158
    %v4643 = vunpack.c.h.b16 %v4158
    %v4644 = vunpack.c.l.b16 %v4159
    %v4645 = vunpack.c.h.b16 %v4159
    %v4646 = vunpack.c.l.b16 %v4160
    %v4647 = vunpack.c.h.b16 %v4160
    %v4648 = vunpack.c.l.b16 %v4161
    %v4649 = vunpack.c.h.b16 %v4161
    %v4650 = vunpack.c.l.b16 %v4162
    %v4651 = vunpack.c.h.b16 %v4162
    %v4652 = vunpack.c.l.b16 %v4163
    %v4653 = vunpack.c.h.b16 %v4163
    %v4654 = vunpack.c.l.b16 %v4164
    %v4655 = vunpack.c.h.b16 %v4164
    %v4656 = vunpack.c.l.b16 %v4165
    %v4657 = vunpack.c.h.b16 %v4165
    %v4658 = vunpack.c.l.b16 %v4166
    %v4659 = vunpack.c.h.b16 %v4166
    %v4660 = vunpack.c.l.b16 %v4167
    %v4661 = vunpack.c.h.b16 %v4167
    %v4662 = vunpack.c.l.b16 %v4168
    %v4663 = vunpack.c.h.b16 %v4168
    %v4664 = vunpack.c.l.b16 %v4169
    %v4665 = vunpack.c.h.b16 %v4169
    %v4666 = vunpack.c.l.b16 %v4170
    %v4667 = vunpack.c.h.b16 %v4170
    %v4668 = vunpack.c.l.b16 %v4171
    %v4669 = vunpack.c.h.b16 %v4171
    %v4670 = vunpack.c.l.b16 %v4172
    %v4671 = vunpack.c.h.b16 %v4172
    %v4672 = vunpack.c.l.b16 %v4173
    %v4673 = vunpack.c.h.b16 %v4173
    %v4674 = vunpack.c.l.b16 %v4174
    %v4675 = vunpack.c.h.b16 %v4174
    %v4676 = vunpack.c.l.b16 %v4175
    %v4677 = vunpack.c.h.b16 %v4175
    %v4678 = vunpack.c.l.b16 %v4176
    %v4679 = vunpack.c.h.b16 %v4176
    %v4680 = vunpack.c.l.b16 %v4177
    %v4681 = vunpack.c.h.b16 %v4177
    %v4682 = vunpack.c.l.b16 %v4178
    %v4683 = vunpack.c.h.b16 %v4178
    %v4684 = vunpack.c.l.b16 %v4179
    %v4685 = vunpack.c.h.b16 %v4179
    %v4686 = vunpack.c.l.b16 %v4180
    %v4687 = vunpack.c.h.b16 %v4180
    %v4688 = vunpack.c.l.b16 %v4181
    %v4689 = vunpack.c.h.b16 %v4181
    %v4690 = vunpack.c.l.b16 %v4182
    %v4691 = vunpack.c.h.b16 %v4182
    %v4692 = vunpack.c.l.b16 %v4183
    %v4693 = vunpack.c.h.b16 %v4183
    %v4694 = vunpack.c.l.b16 %v4184
    %v4695 = vunpack.c.h.b16 %v4184
    %v4696 = vunpack.c.l.b16 %v4185
    %v4697 = vunpack.c.h.b16 %v4185
    %v4698 = vunpack.c.l.b16 %v4186
    %v4699 = vunpack.c.h.b16 %v4186
    %v4700 = vunpack.c.l.b16 %v4187
    %v4701 = vunpack.c.h.b16 %v4187
    %v4702 = vunpack.c.l.b16 %v4188
    %v4703 = vunpack.c.h.b16 %v4188
    %v4704 = vunpack.c.l.b16 %v4189
    %v4705 = vunpack.c.h.b16 %v4189
    %v4706 = vunpack.c.l.b16 %v4190
    %v4707 = vunpack.c.h.b16 %v4190
    %v4708 = vunpack.c.l.b16 %v4191
    %v4709 = vunpack.c.h.b16 %v4191
    %v4710 = vunpack.c.l.b16 %v4192
    %v4711 = vunpack.c.h.b16 %v4192
    %v4712 = vunpack.c.l.b16 %v4193
    %v4713 = vunpack.c.h.b16 %v4193
    %v4714 = vunpack.c.l.b16 %v4194
    %v4715 = vunpack.c.h.b16 %v4194
    %v4716 = vunpack.c.l.b16 %v4195
    %v4717 = vunpack.c.h.b16 %v4195
    %v4718 = vunpack.c.l.b16 %v4196
    %v4719 = vunpack.c.h.b16 %v4196
    %v4720 = vunpack.c.l.b16 %v4197
    %v4721 = vunpack.c.h.b16 %v4197
    %v4722 = vunpack.c.l.b16 %v4198
    %v4723 = vunpack.c.h.b16 %v4198
    %v4724 = vunpack.c.l.b16 %v4199
    %v4725 = vunpack.c.h.b16 %v4199
    %v4726 = vunpack.c.l.b16 %v4200
    %v4727 = vunpack.c.h.b16 %v4200
    %v4728 = vunpack.c.l.b16 %v4201
    %v4729 = vunpack.c.h.b16 %v4201
    %v4730 = vunpack.c.l.b16 %v4202
    %v4731 = vunpack.c.h.b16 %v4202
    %v4732 = vunpack.c.l.b16 %v4203
    %v4733 = vunpack.c.h.b16 %v4203
    %v4734 = vunpack.c.l.b16 %v4204
    %v4735 = vunpack.c.h.b16 %v4204
    %v4736 = vunpack.c.l.b16 %v4205
    %v4737 = vunpack.c.h.b16 %v4205
    %v4738 = vunpack.c.l.b16 %v4206
    %v4739 = vunpack.c.h.b16 %v4206
    %v4740 = vunpack.c.l.b16 %v4207
    %v4741 = vunpack.c.h.b16 %v4207
    %v4742 = vunpack.c.l.b16 %v4208
    %v4743 = vunpack.c.h.b16 %v4208
    %v4744 = vunpack.c.l.b16 %v4209
    %v4745 = vunpack.c.h.b16 %v4209
    %v4746 = vunpack.c.l.b16 %v4210
    %v4747 = vunpack.c.h.b16 %v4210
    %v4748 = vunpack.c.l.b16 %v4211
    %v4749 = vunpack.c.h.b16 %v4211
    %v4750 = vunpack.c.l.b16 %v4212
    %v4751 = vunpack.c.h.b16 %v4212
    %v4752 = vunpack.c.l.b16 %v4213
    %v4753 = vunpack.c.h.b16 %v4213
    %v4754 = vunpack.c.l.b16 %v4214
    %v4755 = vunpack.c.h.b16 %v4214
    %v4756 = vunpack.c.l.b16 %v4215
    %v4757 = vunpack.c.h.b16 %v4215
    %v4758 = vunpack.c.l.b16 %v4216
    %v4759 = vunpack.c.h.b16 %v4216
    %v4760 = vunpack.c.l.b16 %v4217
    %v4761 = vunpack.c.h.b16 %v4217
    %v4762 = vunpack.c.l.b16 %v4218
    %v4763 = vunpack.c.h.b16 %v4218
    %v4764 = vunpack.c.l.b16 %v4219
    %v4765 = vunpack.c.h.b16 %v4219
    %v4766 = vunpack.c.l.b16 %v4220
    %v4767 = vunpack.c.h.b16 %v4220
    %v4768 = vunpack.c.l.b16 %v4221
    %v4769 = vunpack.c.h.b16 %v4221
    %v4770 = vunpack.c.l.b16 %v4222
    %v4771 = vunpack.c.h.b16 %v4222
    %v4772 = vunpack.c.l.b16 %v4223
    %v4773 = vunpack.c.h.b16 %v4223
    %v4774 = vunpack.c.l.b16 %v4224
    %v4775 = vunpack.c.h.b16 %v4224
    %v4776 = vunpack.c.l.b16 %v4225
    %v4777 = vunpack.c.h.b16 %v4225
    %v4778 = vunpack.c.l.b16 %v4226
    %v4779 = vunpack.c.h.b16 %v4226
    %v4780 = vunpack.c.l.b16 %v4227
    %v4781 = vunpack.c.h.b16 %v4227
    %v4782 = vunpack.c.l.b16 %v4228
    %v4783 = vunpack.c.h.b16 %v4228
    %v4784 = vunpack.c.l.b16 %v4229
    %v4785 = vunpack.c.h.b16 %v4229
    %v4786 = vunpack.c.l.b16 %v4230
    %v4787 = vunpack.c.h.b16 %v4230
    %v4788 = vunpack.c.l.b16 %v4231
    %v4789 = vunpack.c.h.b16 %v4231
    %v4790 = vunpack.c.l.b16 %v4232
    %v4791 = vunpack.c.h.b16 %v4232
    %v4792 = vunpack.c.l.b16 %v4233
    %v4793 = vunpack.c.h.b16 %v4233
    %v4794 = vunpack.c.l.b16 %v4234
    %v4795 = vunpack.c.h.b16 %v4234
    %v4796 = vunpack.c.l.b16 %v4235
    %v4797 = vunpack.c.h.b16 %v4235
    %v4798 = vunpack.c.l.b16 %v4236
    %v4799 = vunpack.c.h.b16 %v4236
    %v4800 = vunpack.c.l.b16 %v4237
    %v4801 = vunpack.c.h.b16 %v4237
    %v4802 = vunpack.c.l.b16 %v4238
    %v4803 = vunpack.c.h.b16 %v4238
    %v4804 = vunpack.c.l.b16 %v4239
    %v4805 = vunpack.c.h.b16 %v4239
    %v4806 = vunpack.c.l.b16 %v4240
    %v4807 = vunpack.c.h.b16 %v4240
    %v4808 = vunpack.c.l.b16 %v4241
    %v4809 = vunpack.c.h.b16 %v4241
    %v4810 = vunpack.c.l.b16 %v4242
    %v4811 = vunpack.c.h.b16 %v4242
    %v4812 = vunpack.c.l.b16 %v4243
    %v4813 = vunpack.c.h.b16 %v4243
    %v4814 = vunpack.c.l.b16 %v4244
    %v4815 = vunpack.c.h.b16 %v4244
    %v4816 = vunpack.c.l.b16 %v4245
    %v4817 = vunpack.c.h.b16 %v4245
    %v4818 = vunpack.c.l.b16 %v4246
    %v4819 = vunpack.c.h.b16 %v4246
    %v4820 = vunpack.c.l.b16 %v4247
    %v4821 = vunpack.c.h.b16 %v4247
    %v4822 = vunpack.c.l.b16 %v4248
    %v4823 = vunpack.c.h.b16 %v4248
    %v4824 = vunpack.c.l.b16 %v4249
    %v4825 = vunpack.c.h.b16 %v4249
    %v4826 = vunpack.c.l.b16 %v4250
    %v4827 = vunpack.c.h.b16 %v4250
    %v4828 = vunpack.c.l.b16 %v4251
    %v4829 = vunpack.c.h.b16 %v4251
    %v4830 = vunpack.c.l.b16 %v4252
    %v4831 = vunpack.c.h.b16 %v4252
    %v4832 = vunpack.c.l.b16 %v4253
    %v4833 = vunpack.c.h.b16 %v4253
    %v4834 = vunpack.c.l.b16 %v4254
    %v4835 = vunpack.c.h.b16 %v4254
    %v4836 = vunpack.c.l.b16 %v4255
    %v4837 = vunpack.c.h.b16 %v4255
    %v4838 = vunpack.c.l.b16 %v4256
    %v4839 = vunpack.c.h.b16 %v4256
    %v4840 = vunpack.c.l.b16 %v4257
    %v4841 = vunpack.c.h.b16 %v4257
    %v4842 = vunpack.c.l.b16 %v4258
    %v4843 = vunpack.c.h.b16 %v4258
    %v4844 = vunpack.c.l.b16 %v4259
    %v4845 = vunpack.c.h.b16 %v4259
    %v4846 = vpack.c.b16 %v4466, %v4462
    %v4847 = vpack.c.b16 %v4467, %v4463
    %v4848 = vpack.c.b16 %v4468, %v4464
    %v4849 = vpack.c.b16 %v4469, %v4465
    %v4850 = vpack.c.b16 %v4474, %v4470
    %v4851 = vpack.c.b16 %v4475, %v4471
    %v4852 = vpack.c.b16 %v4476, %v4472
    %v4853 = vpack.c.b16 %v4477, %v4473
    %v4854 = vpack.c.b16 %v4482, %v4478
    %v4855 = vpack.c.b16 %v4483, %v4479
    %v4856 = vpack.c.b16 %v4484, %v4480
    %v4857 = vpack.c.b16 %v4485, %v4481
    %v4858 = vpack.c.b16 %v4490, %v4486
    %v4859 = vpack.c.b16 %v4491, %v4487
    %v4860 = vpack.c.b16 %v4492, %v4488
    %v4861 = vpack.c.b16 %v4493, %v4489
    %v4862 = vpack.c.b16 %v4498, %v4494
    %v4863 = vpack.c.b16 %v4499, %v4495
    %v4864 = vpack.c.b16 %v4500, %v4496
    %v4865 = vpack.c.b16 %v4501, %v4497
    %v4866 = vpack.c.b16 %v4506, %v4502
    %v4867 = vpack.c.b16 %v4507, %v4503
    %v4868 = vpack.c.b16 %v4508, %v4504
    %v4869 = vpack.c.b16 %v4509, %v4505
    %v4870 = vpack.c.b16 %v4514, %v4510
    %v4871 = vpack.c.b16 %v4515, %v4511
    %v4872 = vpack.c.b16 %v4516, %v4512
    %v4873 = vpack.c.b16 %v4517, %v4513
    %v4874 = vpack.c.b16 %v4522, %v4518
    %v4875 = vpack.c.b16 %v4523, %v4519
    %v4876 = vpack.c.b16 %v4524, %v4520
    %v4877 = vpack.c.b16 %v4525, %v4521
    %v4878 = vpack.c.b16 %v4530, %v4526
    %v4879 = vpack.c.b16 %v4531, %v4527
    %v4880 = vpack.c.b16 %v4532, %v4528
    %v4881 = vpack.c.b16 %v4533, %v4529
    %v4882 = vpack.c.b16 %v4538, %v4534
    %v4883 = vpack.c.b16 %v4539, %v4535
    %v4884 = vpack.c.b16 %v4540, %v4536
    %v4885 = vpack.c.b16 %v4541, %v4537
    %v4886 = vpack.c.b16 %v4546, %v4542
    %v4887 = vpack.c.b16 %v4547, %v4543
    %v4888 = vpack.c.b16 %v4548, %v4544
    %v4889 = vpack.c.b16 %v4549, %v4545
    %v4890 = vpack.c.b16 %v4554, %v4550
    %v4891 = vpack.c.b16 %v4555, %v4551
    %v4892 = vpack.c.b16 %v4556, %v4552
    %v4893 = vpack.c.b16 %v4557, %v4553
    %v4894 = vpack.c.b16 %v4562, %v4558
    %v4895 = vpack.c.b16 %v4563, %v4559
    %v4896 = vpack.c.b16 %v4564, %v4560
    %v4897 = vpack.c.b16 %v4565, %v4561
    %v4898 = vpack.c.b16 %v4570, %v4566
    %v4899 = vpack.c.b16 %v4571, %v4567
    %v4900 = vpack.c.b16 %v4572, %v4568
    %v4901 = vpack.c.b16 %v4573, %v4569
    %v4902 = vpack.c.b16 %v4578, %v4574
    %v4903 = vpack.c.b16 %v4579, %v4575
    %v4904 = vpack.c.b16 %v4580, %v4576
    %v4905 = vpack.c.b16 %v4581, %v4577
    %v4906 = vpack.c.b16 %v4586, %v4582
    %v4907 = vpack.c.b16 %v4587, %v4583
    %v4908 = vpack.c.b16 %v4588, %v4584
    %v4909 = vpack.c.b16 %v4589, %v4585
    %v4910 = vpack.c.b16 %v4594, %v4590
    %v4911 = vpack.c.b16 %v4595, %v4591
    %v4912 = vpack.c.b16 %v4596, %v4592
    %v4913 = vpack.c.b16 %v4597, %v4593
    %v4914 = vpack.c.b16 %v4602, %v4598
    %v4915 = vpack.c.b16 %v4603, %v4599
    %v4916 = vpack.c.b16 %v4604, %v4600
    %v4917 = vpack.c.b16 %v4605, %v4601
    %v4918 = vpack.c.b16 %v4610, %v4606
    %v4919 = vpack.c.b16 %v4611, %v4607
    %v4920 = vpack.c.b16 %v4612, %v4608
    %v4921 = vpack.c.b16 %v4613, %v4609
    %v4922 = vpack.c.b16 %v4618, %v4614
    %v4923 = vpack.c.b16 %v4619, %v4615
    %v4924 = vpack.c.b16 %v4620, %v4616
    %v4925 = vpack.c.b16 %v4621, %v4617
    %v4926 = vpack.c.b16 %v4626, %v4622
    %v4927 = vpack.c.b16 %v4627, %v4623
    %v4928 = vpack.c.b16 %v4628, %v4624
    %v4929 = vpack.c.b16 %v4629, %v4625
    %v4930 = vpack.c.b16 %v4634, %v4630
    %v4931 = vpack.c.b16 %v4635, %v4631
    %v4932 = vpack.c.b16 %v4636, %v4632
    %v4933 = vpack.c.b16 %v4637, %v4633
    %v4934 = vpack.c.b16 %v4642, %v4638
    %v4935 = vpack.c.b16 %v4643, %v4639
    %v4936 = vpack.c.b16 %v4644, %v4640
    %v4937 = vpack.c.b16 %v4645, %v4641
    %v4938 = vpack.c.b16 %v4650, %v4646
    %v4939 = vpack.c.b16 %v4651, %v4647
    %v4940 = vpack.c.b16 %v4652, %v4648
    %v4941 = vpack.c.b16 %v4653, %v4649
    %v4942 = vpack.c.b16 %v4658, %v4654
    %v4943 = vpack.c.b16 %v4659, %v4655
    %v4944 = vpack.c.b16 %v4660, %v4656
    %v4945 = vpack.c.b16 %v4661, %v4657
    %v4946 = vpack.c.b16 %v4666, %v4662
    %v4947 = vpack.c.b16 %v4667, %v4663
    %v4948 = vpack.c.b16 %v4668, %v4664
    %v4949 = vpack.c.b16 %v4669, %v4665
    %v4950 = vpack.c.b16 %v4674, %v4670
    %v4951 = vpack.c.b16 %v4675, %v4671
    %v4952 = vpack.c.b16 %v4676, %v4672
    %v4953 = vpack.c.b16 %v4677, %v4673
    %v4954 = vpack.c.b16 %v4682, %v4678
    %v4955 = vpack.c.b16 %v4683, %v4679
    %v4956 = vpack.c.b16 %v4684, %v4680
    %v4957 = vpack.c.b16 %v4685, %v4681
    %v4958 = vpack.c.b16 %v4690, %v4686
    %v4959 = vpack.c.b16 %v4691, %v4687
    %v4960 = vpack.c.b16 %v4692, %v4688
    %v4961 = vpack.c.b16 %v4693, %v4689
    %v4962 = vpack.c.b16 %v4698, %v4694
    %v4963 = vpack.c.b16 %v4699, %v4695
    %v4964 = vpack.c.b16 %v4700, %v4696
    %v4965 = vpack.c.b16 %v4701, %v4697
    %v4966 = vpack.c.b16 %v4706, %v4702
    %v4967 = vpack.c.b16 %v4707, %v4703
    %v4968 = vpack.c.b16 %v4708, %v4704
    %v4969 = vpack.c.b16 %v4709, %v4705
    %v4970 = vpack.c.b16 %v4714, %v4710
    %v4971 = vpack.c.b16 %v4715, %v4711
    %v4972 = vpack.c.b16 %v4716, %v4712
    %v4973 = vpack.c.b16 %v4717, %v4713
    %v4974 = vpack.c.b16 %v4722, %v4718
    %v4975 = vpack.c.b16 %v4723, %v4719
    %v4976 = vpack.c.b16 %v4724, %v4720
    %v4977 = vpack.c.b16 %v4725, %v4721
    %v4978 = vpack.c.b16 %v4730, %v4726
    %v4979 = vpack.c.b16 %v4731, %v4727
    %v4980 = vpack.c.b16 %v4732, %v4728
    %v4981 = vpack.c.b16 %v4733, %v4729
    %v4982 = vpack.c.b16 %v4738, %v4734
    %v4983 = vpack.c.b16 %v4739, %v4735
    %v4984 = vpack.c.b16 %v4740, %v4736
    %v4985 = vpack.c.b16 %v4741, %v4737
    %v4986 = vpack.c.b16 %v4746, %v4742
    %v4987 = vpack.c.b16 %v4747, %v4743
    %v4988 = vpack.c.b16 %v4748, %v4744
    %v4989 = vpack.c.b16 %v4749, %v4745
    %v4990 = vpack.c.b16 %v4754, %v4750
    %v4991 = vpack.c.b16 %v4755, %v4751
    %v4992 = vpack.c.b16 %v4756, %v4752
    %v4993 = vpack.c.b16 %v4757, %v4753
    %v4994 = vpack.c.b16 %v4762, %v4758
    %v4995 = vpack.c.b16 %v4763, %v4759
    %v4996 = vpack.c.b16 %v4764, %v4760
    %v4997 = vpack.c.b16 %v4765, %v4761
    %v4998 = vpack.c.b16 %v4770, %v4766
    %v4999 = vpack.c.b16 %v4771, %v4767
    %v5000 = vpack.c.b16 %v4772, %v4768
    %v5001 = vpack.c.b16 %v4773, %v4769
    %v5002 = vpack.c.b16 %v4778, %v4774
    %v5003 = vpack.c.b16 %v4779, %v4775
    %v5004 = vpack.c.b16 %v4780, %v4776
    %v5005 = vpack.c.b16 %v4781, %v4777
    %v5006 = vpack.c.b16 %v4786, %v4782
    %v5007 = vpack.c.b16 %v4787, %v4783
    %v5008 = vpack.c.b16 %v4788, %v4784
    %v5009 = vpack.c.b16 %v4789, %v4785
    %v5010 = vpack.c.b16 %v4794, %v4790
    %v5011 = vpack.c.b16 %v4795, %v4791
    %v5012 = vpack.c.b16 %v4796, %v4792
    %v5013 = vpack.c.b16 %v4797, %v4793
    %v5014 = vpack.c.b16 %v4802, %v4798
    %v5015 = vpack.c.b16 %v4803, %v4799
    %v5016 = vpack.c.b16 %v4804, %v4800
    %v5017 = vpack.c.b16 %v4805, %v4801
    %v5018 = vpack.c.b16 %v4810, %v4806
    %v5019 = vpack.c.b16 %v4811, %v4807
    %v5020 = vpack.c.b16 %v4812, %v4808
    %v5021 = vpack.c.b16 %v4813, %v4809
    %v5022 = vpack.c.b16 %v4818, %v4814
    %v5023 = vpack.c.b16 %v4819, %v4815
    %v5024 = vpack.c.b16 %v4820, %v4816
    %v5025 = vpack.c.b16 %v4821, %v4817
    %v5026 = vpack.c.b16 %v4826, %v4822
    %v5027 = vpack.c.b16 %v4827, %v4823
    %v5028 = vpack.c.b16 %v4828, %v4824
    %v5029 = vpack.c.b16 %v4829, %v4825
    %v5030 = vpack.c.b16 %v4834, %v4830
    %v5031 = vpack.c.b16 %v4835, %v4831
    %v5032 = vpack.c.b16 %v4836, %v4832
    %v5033 = vpack.c.b16 %v4837, %v4833
    %v5034 = vpack.c.b16 %v4842, %v4838
    %v5035 = vpack.c.b16 %v4843, %v4839
    %v5036 = vpack.c.b16 %v4844, %v4840
    %v5037 = vpack.c.b16 %v4845, %v4841
    %5230 = vmatpush.bf16.msra.mxu0 %v4874
    %5231 = vmatpush.bf16.msra.mxu0 %v4870
    %5232 = vmatpush.bf16.msra.mxu0 %v4866
    %5233 = vmatpush.bf16.msra.mxu0 %v4862
    %5234 = vmatpush.bf16.msra.mxu0 %v4858
    %5235 = vmatpush.bf16.msra.mxu0 %v4854
    %5236 = vmatpush.bf16.msra.mxu0 %v4850
    %5237 = vmatpush.bf16.msra.mxu0 %v4846
    %5238 = vmatmul.bf16.gmra.mxu0 %v4020
    %v5239 = vpop.f32.mrf.mxu0
    %v5240 = vadd.f32 %v4262, %v5239
    %v5241 = vpop.f32.mrf.mxu0
    %v5242 = vadd.f32 %v4262, %v5241
    %5243 = vmatmul.bf16.gmra.mxu0 %v4026
    %v5244 = vpop.f32.mrf.mxu0
    %v5245 = vadd.f32 %v4262, %v5244
    %v5246 = vpop.f32.mrf.mxu0
    %v5247 = vadd.f32 %v4262, %v5246
    %5248 = vmatmul.bf16.gmra.mxu0 %v4032
    %v5249 = vpop.f32.mrf.mxu0
    %v5250 = vadd.f32 %v4262, %v5249
    %v5251 = vpop.f32.mrf.mxu0
    %v5252 = vadd.f32 %v4262, %v5251
    %5253 = vmatmul.bf16.gmra.mxu0 %v4038
    %v5254 = vpop.f32.mrf.mxu0
    %v5255 = vadd.f32 %v4262, %v5254
    %v5256 = vpop.f32.mrf.mxu0
    %v5257 = vadd.f32 %v4262, %v5256
    %5258 = vmatmul.bf16.gmra.mxu0 %v4044
    %v5259 = vpop.f32.mrf.mxu0
    %v5260 = vadd.f32 %v4262, %v5259
    %v5261 = vpop.f32.mrf.mxu0
    %v5262 = vadd.f32 %v4262, %v5261
    %5263 = vmatmul.bf16.gmra.mxu0 %v4050
    %v5264 = vpop.f32.mrf.mxu0
    %v5265 = vadd.f32 %v4262, %v5264
    %v5266 = vpop.f32.mrf.mxu0
    %v5267 = vadd.f32 %v4262, %v5266
    %5268 = vmatmul.bf16.gmra.mxu0 %v4056
    %v5269 = vpop.f32.mrf.mxu0
    %v5270 = vadd.f32 %v4262, %v5269
    %v5271 = vpop.f32.mrf.mxu0
    %v5272 = vadd.f32 %v4262, %v5271
    %5273 = vmatmul.bf16.gmra.mxu0 %v4062
    %v5274 = vpop.f32.mrf.mxu0
    %v5275 = vadd.f32 %v4262, %v5274
    %v5276 = vpop.f32.mrf.mxu0
    %v5277 = vadd.f32 %v4262, %v5276
    %5278 = vdwg.mxu0
    %5279 = vmatpush.bf16.msra.mxu0 %v4906
    %5280 = vmatpush.bf16.msra.mxu0 %v4902
    %5281 = vmatpush.bf16.msra.mxu0 %v4898
    %5282 = vmatpush.bf16.msra.mxu0 %v4894
    %5283 = vmatpush.bf16.msra.mxu0 %v4890
    %5284 = vmatpush.bf16.msra.mxu0 %v4886
    %5285 = vmatpush.bf16.msra.mxu0 %v4882
    %5286 = vmatpush.bf16.msra.mxu0 %v4878
    %5287 = vmatmul.bf16.gmra.mxu0 %v4021
    %v5288 = vpop.f32.mrf.mxu0
    %v5289 = vadd.f32 %v5240, %v5288
    %v5290 = vpop.f32.mrf.mxu0
    %v5291 = vadd.f32 %v5242, %v5290
    %5292 = vmatmul.bf16.gmra.mxu0 %v4027
    %v5293 = vpop.f32.mrf.mxu0
    %v5294 = vadd.f32 %v5245, %v5293
    %v5295 = vpop.f32.mrf.mxu0
    %v5296 = vadd.f32 %v5247, %v5295
    %5297 = vmatmul.bf16.gmra.mxu0 %v4033
    %v5298 = vpop.f32.mrf.mxu0
    %v5299 = vadd.f32 %v5250, %v5298
    %v5300 = vpop.f32.mrf.mxu0
    %v5301 = vadd.f32 %v5252, %v5300
    %5302 = vmatmul.bf16.gmra.mxu0 %v4039
    %v5303 = vpop.f32.mrf.mxu0
    %v5304 = vadd.f32 %v5255, %v5303
    %v5305 = vpop.f32.mrf.mxu0
    %v5306 = vadd.f32 %v5257, %v5305
    %5307 = vmatmul.bf16.gmra.mxu0 %v4045
    %v5308 = vpop.f32.mrf.mxu0
    %v5309 = vadd.f32 %v5260, %v5308
    %v5310 = vpop.f32.mrf.mxu0
    %v5311 = vadd.f32 %v5262, %v5310
    %5312 = vmatmul.bf16.gmra.mxu0 %v4051
    %v5313 = vpop.f32.mrf.mxu0
    %v5314 = vadd.f32 %v5265, %v5313
    %v5315 = vpop.f32.mrf.mxu0
    %v5316 = vadd.f32 %v5267, %v5315
    %5317 = vmatmul.bf16.gmra.mxu0 %v4057
    %v5318 = vpop.f32.mrf.mxu0
    %v5319 = vadd.f32 %v5270, %v5318
    %v5320 = vpop.f32.mrf.mxu0
    %v5321 = vadd.f32 %v5272, %v5320
    %5322 = vmatmul.bf16.gmra.mxu0 %v4063
    %v5323 = vpop.f32.mrf.mxu0
    %v5324 = vadd.f32 %v5275, %v5323
    %v5325 = vpop.f32.mrf.mxu0
    %v5326 = vadd.f32 %v5277, %v5325
    %5327 = vdwg.mxu0
    %5328 = vmatpush.bf16.msra.mxu0 %v4938
    %5329 = vmatpush.bf16.msra.mxu0 %v4934
    %5330 = vmatpush.bf16.msra.mxu0 %v4930
    %5331 = vmatpush.bf16.msra.mxu0 %v4926
    %5332 = vmatpush.bf16.msra.mxu0 %v4922
    %5333 = vmatpush.bf16.msra.mxu0 %v4918
    %5334 = vmatpush.bf16.msra.mxu0 %v4914
    %5335 = vmatpush.bf16.msra.mxu0 %v4910
    %5336 = vmatmul.bf16.gmra.mxu0 %v4022
    %v5337 = vpop.f32.mrf.mxu0
    %v5338 = vadd.f32 %v5289, %v5337
    %v5339 = vpop.f32.mrf.mxu0
    %v5340 = vadd.f32 %v5291, %v5339
    %5341 = vmatmul.bf16.gmra.mxu0 %v4028
    %v5342 = vpop.f32.mrf.mxu0
    %v5343 = vadd.f32 %v5294, %v5342
    %v5344 = vpop.f32.mrf.mxu0
    %v5345 = vadd.f32 %v5296, %v5344
    %5346 = vmatmul.bf16.gmra.mxu0 %v4034
    %v5347 = vpop.f32.mrf.mxu0
    %v5348 = vadd.f32 %v5299, %v5347
    %v5349 = vpop.f32.mrf.mxu0
    %v5350 = vadd.f32 %v5301, %v5349
    %5351 = vmatmul.bf16.gmra.mxu0 %v4040
    %v5352 = vpop.f32.mrf.mxu0
    %v5353 = vadd.f32 %v5304, %v5352
    %v5354 = vpop.f32.mrf.mxu0
    %v5355 = vadd.f32 %v5306, %v5354
    %5356 = vmatmul.bf16.gmra.mxu0 %v4046
    %v5357 = vpop.f32.mrf.mxu0
    %v5358 = vadd.f32 %v5309, %v5357
    %v5359 = vpop.f32.mrf.mxu0
    %v5360 = vadd.f32 %v5311, %v5359
    %5361 = vmatmul.bf16.gmra.mxu0 %v4052
    %v5362 = vpop.f32.mrf.mxu0
    %v5363 = vadd.f32 %v5314, %v5362
    %v5364 = vpop.f32.mrf.mxu0
    %v5365 = vadd.f32 %v5316, %v5364
    %5366 = vmatmul.bf16.gmra.mxu0 %v4058
    %v5367 = vpop.f32.mrf.mxu0
    %v5368 = vadd.f32 %v5319, %v5367
    %v5369 = vpop.f32.mrf.mxu0
    %v5370 = vadd.f32 %v5321, %v5369
    %5371 = vmatmul.bf16.gmra.mxu0 %v4064
    %v5372 = vpop.f32.mrf.mxu0
    %v5373 = vadd.f32 %v5324, %v5372
    %v5374 = vpop.f32.mrf.mxu0
    %v5375 = vadd.f32 %v5326, %v5374
    %5376 = vdwg.mxu0
    %5377 = vmatpush.bf16.msra.mxu0 %v4970
    %5378 = vmatpush.bf16.msra.mxu0 %v4966
    %5379 = vmatpush.bf16.msra.mxu0 %v4962
    %5380 = vmatpush.bf16.msra.mxu0 %v4958
    %5381 = vmatpush.bf16.msra.mxu0 %v4954
    %5382 = vmatpush.bf16.msra.mxu0 %v4950
    %5383 = vmatpush.bf16.msra.mxu0 %v4946
    %5384 = vmatpush.bf16.msra.mxu0 %v4942
    %5385 = vmatmul.bf16.gmra.mxu0 %v4023
    %v5386 = vpop.f32.mrf.mxu0
    %v5387 = vadd.f32 %v5338, %v5386
    %v5388 = vpop.f32.mrf.mxu0
    %v5389 = vadd.f32 %v5340, %v5388
    %5390 = vmatmul.bf16.gmra.mxu0 %v4029
    %v5391 = vpop.f32.mrf.mxu0
    %v5392 = vadd.f32 %v5343, %v5391
    %v5393 = vpop.f32.mrf.mxu0
    %v5394 = vadd.f32 %v5345, %v5393
    %5395 = vmatmul.bf16.gmra.mxu0 %v4035
    %v5396 = vpop.f32.mrf.mxu0
    %v5397 = vadd.f32 %v5348, %v5396
    %v5398 = vpop.f32.mrf.mxu0
    %v5399 = vadd.f32 %v5350, %v5398
    %5400 = vmatmul.bf16.gmra.mxu0 %v4041
    %v5401 = vpop.f32.mrf.mxu0
    %v5402 = vadd.f32 %v5353, %v5401
    %v5403 = vpop.f32.mrf.mxu0
    %v5404 = vadd.f32 %v5355, %v5403
    %5405 = vmatmul.bf16.gmra.mxu0 %v4047
    %v5406 = vpop.f32.mrf.mxu0
    %v5407 = vadd.f32 %v5358, %v5406
    %v5408 = vpop.f32.mrf.mxu0
    %v5409 = vadd.f32 %v5360, %v5408
    %5410 = vmatmul.bf16.gmra.mxu0 %v4053
    %v5411 = vpop.f32.mrf.mxu0
    %v5412 = vadd.f32 %v5363, %v5411
    %v5413 = vpop.f32.mrf.mxu0
    %v5414 = vadd.f32 %v5365, %v5413
    %5415 = vmatmul.bf16.gmra.mxu0 %v4059
    %v5416 = vpop.f32.mrf.mxu0
    %v5417 = vadd.f32 %v5368, %v5416
    %v5418 = vpop.f32.mrf.mxu0
    %v5419 = vadd.f32 %v5370, %v5418
    %5420 = vmatmul.bf16.gmra.mxu0 %v4065
    %v5421 = vpop.f32.mrf.mxu0
    %v5422 = vadd.f32 %v5373, %v5421
    %v5423 = vpop.f32.mrf.mxu0
    %v5424 = vadd.f32 %v5375, %v5423
    %5425 = vdwg.mxu0
    %5426 = vmatpush.bf16.msra.mxu0 %v5002
    %5427 = vmatpush.bf16.msra.mxu0 %v4998
    %5428 = vmatpush.bf16.msra.mxu0 %v4994
    %5429 = vmatpush.bf16.msra.mxu0 %v4990
    %5430 = vmatpush.bf16.msra.mxu0 %v4986
    %5431 = vmatpush.bf16.msra.mxu0 %v4982
    %5432 = vmatpush.bf16.msra.mxu0 %v4978
    %5433 = vmatpush.bf16.msra.mxu0 %v4974
    %5434 = vmatmul.bf16.gmra.mxu0 %v4024
    %v5435 = vpop.f32.mrf.mxu0
    %v5436 = vadd.f32 %v5387, %v5435
    %v5437 = vpop.f32.mrf.mxu0
    %v5438 = vadd.f32 %v5389, %v5437
    %5439 = vmatmul.bf16.gmra.mxu0 %v4030
    %v5440 = vpop.f32.mrf.mxu0
    %v5441 = vadd.f32 %v5392, %v5440
    %v5442 = vpop.f32.mrf.mxu0
    %v5443 = vadd.f32 %v5394, %v5442
    %5444 = vmatmul.bf16.gmra.mxu0 %v4036
    %v5445 = vpop.f32.mrf.mxu0
    %v5446 = vadd.f32 %v5397, %v5445
    %v5447 = vpop.f32.mrf.mxu0
    %v5448 = vadd.f32 %v5399, %v5447
    %5449 = vmatmul.bf16.gmra.mxu0 %v4042
    %v5450 = vpop.f32.mrf.mxu0
    %v5451 = vadd.f32 %v5402, %v5450
    %v5452 = vpop.f32.mrf.mxu0
    %v5453 = vadd.f32 %v5404, %v5452
    %5454 = vmatmul.bf16.gmra.mxu0 %v4048
    %v5455 = vpop.f32.mrf.mxu0
    %v5456 = vadd.f32 %v5407, %v5455
    %v5457 = vpop.f32.mrf.mxu0
    %v5458 = vadd.f32 %v5409, %v5457
    %5459 = vmatmul.bf16.gmra.mxu0 %v4054
    %v5460 = vpop.f32.mrf.mxu0
    %v5461 = vadd.f32 %v5412, %v5460
    %v5462 = vpop.f32.mrf.mxu0
    %v5463 = vadd.f32 %v5414, %v5462
    %5464 = vmatmul.bf16.gmra.mxu0 %v4060
    %v5465 = vpop.f32.mrf.mxu0
    %v5466 = vadd.f32 %v5417, %v5465
    %v5467 = vpop.f32.mrf.mxu0
    %v5468 = vadd.f32 %v5419, %v5467
    %5469 = vmatmul.bf16.gmra.mxu0 %v4066
    %v5470 = vpop.f32.mrf.mxu0
    %v5471 = vadd.f32 %v5422, %v5470
    %v5472 = vpop.f32.mrf.mxu0
    %v5473 = vadd.f32 %v5424, %v5472
    %5474 = vdwg.mxu0
    %5475 = vmatpush.bf16.msra.mxu0 %v5034
    %5476 = vmatpush.bf16.msra.mxu0 %v5030
    %5477 = vmatpush.bf16.msra.mxu0 %v5026
    %5478 = vmatpush.bf16.msra.mxu0 %v5022
    %5479 = vmatpush.bf16.msra.mxu0 %v5018
    %5480 = vmatpush.bf16.msra.mxu0 %v5014
    %5481 = vmatpush.bf16.msra.mxu0 %v5010
    %5482 = vmatpush.bf16.msra.mxu0 %v5006
    %5483 = vmatmul.bf16.gmra.mxu0 %v4025
    %v5484 = vpop.f32.mrf.mxu0
    %v5485 = vadd.f32 %v5436, %v5484
    %v5486 = vpop.f32.mrf.mxu0
    %v5487 = vadd.f32 %v5438, %v5486
    %5488 = vmatmul.bf16.gmra.mxu0 %v4031
    %v5489 = vpop.f32.mrf.mxu0
    %v5490 = vadd.f32 %v5441, %v5489
    %v5491 = vpop.f32.mrf.mxu0
    %v5492 = vadd.f32 %v5443, %v5491
    %5493 = vmatmul.bf16.gmra.mxu0 %v4037
    %v5494 = vpop.f32.mrf.mxu0
    %v5495 = vadd.f32 %v5446, %v5494
    %v5496 = vpop.f32.mrf.mxu0
    %v5497 = vadd.f32 %v5448, %v5496
    %5498 = vmatmul.bf16.gmra.mxu0 %v4043
    %v5499 = vpop.f32.mrf.mxu0
    %v5500 = vadd.f32 %v5451, %v5499
    %v5501 = vpop.f32.mrf.mxu0
    %v5502 = vadd.f32 %v5453, %v5501
    %5503 = vmatmul.bf16.gmra.mxu0 %v4049
    %v5504 = vpop.f32.mrf.mxu0
    %v5505 = vadd.f32 %v5456, %v5504
    %v5506 = vpop.f32.mrf.mxu0
    %v5507 = vadd.f32 %v5458, %v5506
    %5508 = vmatmul.bf16.gmra.mxu0 %v4055
    %v5509 = vpop.f32.mrf.mxu0
    %v5510 = vadd.f32 %v5461, %v5509
    %v5511 = vpop.f32.mrf.mxu0
    %v5512 = vadd.f32 %v5463, %v5511
    %5513 = vmatmul.bf16.gmra.mxu0 %v4061
    %v5514 = vpop.f32.mrf.mxu0
    %v5515 = vadd.f32 %v5466, %v5514
    %v5516 = vpop.f32.mrf.mxu0
    %v5517 = vadd.f32 %v5468, %v5516
    %5518 = vmatmul.bf16.gmra.mxu0 %v4067
    %v5519 = vpop.f32.mrf.mxu0
    %v5520 = vadd.f32 %v5471, %v5519
    %v5521 = vpop.f32.mrf.mxu0
    %v5522 = vadd.f32 %v5473, %v5521
    %5523 = vdwg.mxu0
    %5524 = vmatpush.bf16.msra.mxu0 %v4875
    %5525 = vmatpush.bf16.msra.mxu0 %v4871
    %5526 = vmatpush.bf16.msra.mxu0 %v4867
    %5527 = vmatpush.bf16.msra.mxu0 %v4863
    %5528 = vmatpush.bf16.msra.mxu0 %v4859
    %5529 = vmatpush.bf16.msra.mxu0 %v4855
    %5530 = vmatpush.bf16.msra.mxu0 %v4851
    %5531 = vmatpush.bf16.msra.mxu0 %v4847
    %5532 = vmatmul.bf16.gmra.mxu0 %v4020
    %v5533 = vpop.f32.mrf.mxu0
    %v5534 = vadd.f32 %v4263, %v5533
    %v5535 = vpop.f32.mrf.mxu0
    %v5536 = vadd.f32 %v4263, %v5535
    %5537 = vmatmul.bf16.gmra.mxu0 %v4026
    %v5538 = vpop.f32.mrf.mxu0
    %v5539 = vadd.f32 %v4263, %v5538
    %v5540 = vpop.f32.mrf.mxu0
    %v5541 = vadd.f32 %v4263, %v5540
    %5542 = vmatmul.bf16.gmra.mxu0 %v4032
    %v5543 = vpop.f32.mrf.mxu0
    %v5544 = vadd.f32 %v4263, %v5543
    %v5545 = vpop.f32.mrf.mxu0
    %v5546 = vadd.f32 %v4263, %v5545
    %5547 = vmatmul.bf16.gmra.mxu0 %v4038
    %v5548 = vpop.f32.mrf.mxu0
    %v5549 = vadd.f32 %v4263, %v5548
    %v5550 = vpop.f32.mrf.mxu0
    %v5551 = vadd.f32 %v4263, %v5550
    %5552 = vmatmul.bf16.gmra.mxu0 %v4044
    %v5553 = vpop.f32.mrf.mxu0
    %v5554 = vadd.f32 %v4263, %v5553
    %v5555 = vpop.f32.mrf.mxu0
    %v5556 = vadd.f32 %v4263, %v5555
    %5557 = vmatmul.bf16.gmra.mxu0 %v4050
    %v5558 = vpop.f32.mrf.mxu0
    %v5559 = vadd.f32 %v4263, %v5558
    %v5560 = vpop.f32.mrf.mxu0
    %v5561 = vadd.f32 %v4263, %v5560
    %5562 = vmatmul.bf16.gmra.mxu0 %v4056
    %v5563 = vpop.f32.mrf.mxu0
    %v5564 = vadd.f32 %v4263, %v5563
    %v5565 = vpop.f32.mrf.mxu0
    %v5566 = vadd.f32 %v4263, %v5565
    %5567 = vmatmul.bf16.gmra.mxu0 %v4062
    %v5568 = vpop.f32.mrf.mxu0
    %v5569 = vadd.f32 %v4263, %v5568
    %v5570 = vpop.f32.mrf.mxu0
    %v5571 = vadd.f32 %v4263, %v5570
    %5572 = vdwg.mxu0
    %5573 = vmatpush.bf16.msra.mxu0 %v4907
    %5574 = vmatpush.bf16.msra.mxu0 %v4903
    %5575 = vmatpush.bf16.msra.mxu0 %v4899
    %5576 = vmatpush.bf16.msra.mxu0 %v4895
    %5577 = vmatpush.bf16.msra.mxu0 %v4891
    %5578 = vmatpush.bf16.msra.mxu0 %v4887
    %5579 = vmatpush.bf16.msra.mxu0 %v4883
    %5580 = vmatpush.bf16.msra.mxu0 %v4879
    %5581 = vmatmul.bf16.gmra.mxu0 %v4021
    %v5582 = vpop.f32.mrf.mxu0
    %v5583 = vadd.f32 %v5534, %v5582
    %v5584 = vpop.f32.mrf.mxu0
    %v5585 = vadd.f32 %v5536, %v5584
    %5586 = vmatmul.bf16.gmra.mxu0 %v4027
    %v5587 = vpop.f32.mrf.mxu0
    %v5588 = vadd.f32 %v5539, %v5587
    %v5589 = vpop.f32.mrf.mxu0
    %v5590 = vadd.f32 %v5541, %v5589
    %5591 = vmatmul.bf16.gmra.mxu0 %v4033
    %v5592 = vpop.f32.mrf.mxu0
    %v5593 = vadd.f32 %v5544, %v5592
    %v5594 = vpop.f32.mrf.mxu0
    %v5595 = vadd.f32 %v5546, %v5594
    %5596 = vmatmul.bf16.gmra.mxu0 %v4039
    %v5597 = vpop.f32.mrf.mxu0
    %v5598 = vadd.f32 %v5549, %v5597
    %v5599 = vpop.f32.mrf.mxu0
    %v5600 = vadd.f32 %v5551, %v5599
    %5601 = vmatmul.bf16.gmra.mxu0 %v4045
    %v5602 = vpop.f32.mrf.mxu0
    %v5603 = vadd.f32 %v5554, %v5602
    %v5604 = vpop.f32.mrf.mxu0
    %v5605 = vadd.f32 %v5556, %v5604
    %5606 = vmatmul.bf16.gmra.mxu0 %v4051
    %v5607 = vpop.f32.mrf.mxu0
    %v5608 = vadd.f32 %v5559, %v5607
    %v5609 = vpop.f32.mrf.mxu0
    %v5610 = vadd.f32 %v5561, %v5609
    %5611 = vmatmul.bf16.gmra.mxu0 %v4057
    %v5612 = vpop.f32.mrf.mxu0
    %v5613 = vadd.f32 %v5564, %v5612
    %v5614 = vpop.f32.mrf.mxu0
    %v5615 = vadd.f32 %v5566, %v5614
    %5616 = vmatmul.bf16.gmra.mxu0 %v4063
    %v5617 = vpop.f32.mrf.mxu0
    %v5618 = vadd.f32 %v5569, %v5617
    %v5619 = vpop.f32.mrf.mxu0
    %v5620 = vadd.f32 %v5571, %v5619
    %5621 = vdwg.mxu0
    %5622 = vmatpush.bf16.msra.mxu0 %v4939
    %5623 = vmatpush.bf16.msra.mxu0 %v4935
    %5624 = vmatpush.bf16.msra.mxu0 %v4931
    %5625 = vmatpush.bf16.msra.mxu0 %v4927
    %5626 = vmatpush.bf16.msra.mxu0 %v4923
    %5627 = vmatpush.bf16.msra.mxu0 %v4919
    %5628 = vmatpush.bf16.msra.mxu0 %v4915
    %5629 = vmatpush.bf16.msra.mxu0 %v4911
    %5630 = vmatmul.bf16.gmra.mxu0 %v4022
    %v5631 = vpop.f32.mrf.mxu0
    %v5632 = vadd.f32 %v5583, %v5631
    %v5633 = vpop.f32.mrf.mxu0
    %v5634 = vadd.f32 %v5585, %v5633
    %5635 = vmatmul.bf16.gmra.mxu0 %v4028
    %v5636 = vpop.f32.mrf.mxu0
    %v5637 = vadd.f32 %v5588, %v5636
    %v5638 = vpop.f32.mrf.mxu0
    %v5639 = vadd.f32 %v5590, %v5638
    %5640 = vmatmul.bf16.gmra.mxu0 %v4034
    %v5641 = vpop.f32.mrf.mxu0
    %v5642 = vadd.f32 %v5593, %v5641
    %v5643 = vpop.f32.mrf.mxu0
    %v5644 = vadd.f32 %v5595, %v5643
    %5645 = vmatmul.bf16.gmra.mxu0 %v4040
    %v5646 = vpop.f32.mrf.mxu0
    %v5647 = vadd.f32 %v5598, %v5646
    %v5648 = vpop.f32.mrf.mxu0
    %v5649 = vadd.f32 %v5600, %v5648
    %5650 = vmatmul.bf16.gmra.mxu0 %v4046
    %v5651 = vpop.f32.mrf.mxu0
    %v5652 = vadd.f32 %v5603, %v5651
    %v5653 = vpop.f32.mrf.mxu0
    %v5654 = vadd.f32 %v5605, %v5653
    %5655 = vmatmul.bf16.gmra.mxu0 %v4052
    %v5656 = vpop.f32.mrf.mxu0
    %v5657 = vadd.f32 %v5608, %v5656
    %v5658 = vpop.f32.mrf.mxu0
    %v5659 = vadd.f32 %v5610, %v5658
    %5660 = vmatmul.bf16.gmra.mxu0 %v4058
    %v5661 = vpop.f32.mrf.mxu0
    %v5662 = vadd.f32 %v5613, %v5661
    %v5663 = vpop.f32.mrf.mxu0
    %v5664 = vadd.f32 %v5615, %v5663
    %5665 = vmatmul.bf16.gmra.mxu0 %v4064
    %v5666 = vpop.f32.mrf.mxu0
    %v5667 = vadd.f32 %v5618, %v5666
    %v5668 = vpop.f32.mrf.mxu0
    %v5669 = vadd.f32 %v5620, %v5668
    %5670 = vdwg.mxu0
    %5671 = vmatpush.bf16.msra.mxu0 %v4971
    %5672 = vmatpush.bf16.msra.mxu0 %v4967
    %5673 = vmatpush.bf16.msra.mxu0 %v4963
    %5674 = vmatpush.bf16.msra.mxu0 %v4959
    %5675 = vmatpush.bf16.msra.mxu0 %v4955
    %5676 = vmatpush.bf16.msra.mxu0 %v4951
    %5677 = vmatpush.bf16.msra.mxu0 %v4947
    %5678 = vmatpush.bf16.msra.mxu0 %v4943
    %5679 = vmatmul.bf16.gmra.mxu0 %v4023
    %v5680 = vpop.f32.mrf.mxu0
    %v5681 = vadd.f32 %v5632, %v5680
    %v5682 = vpop.f32.mrf.mxu0
    %v5683 = vadd.f32 %v5634, %v5682
    %5684 = vmatmul.bf16.gmra.mxu0 %v4029
    %v5685 = vpop.f32.mrf.mxu0
    %v5686 = vadd.f32 %v5637, %v5685
    %v5687 = vpop.f32.mrf.mxu0
    %v5688 = vadd.f32 %v5639, %v5687
    %5689 = vmatmul.bf16.gmra.mxu0 %v4035
    %v5690 = vpop.f32.mrf.mxu0
    %v5691 = vadd.f32 %v5642, %v5690
    %v5692 = vpop.f32.mrf.mxu0
    %v5693 = vadd.f32 %v5644, %v5692
    %5694 = vmatmul.bf16.gmra.mxu0 %v4041
    %v5695 = vpop.f32.mrf.mxu0
    %v5696 = vadd.f32 %v5647, %v5695
    %v5697 = vpop.f32.mrf.mxu0
    %v5698 = vadd.f32 %v5649, %v5697
    %5699 = vmatmul.bf16.gmra.mxu0 %v4047
    %v5700 = vpop.f32.mrf.mxu0
    %v5701 = vadd.f32 %v5652, %v5700
    %v5702 = vpop.f32.mrf.mxu0
    %v5703 = vadd.f32 %v5654, %v5702
    %5704 = vmatmul.bf16.gmra.mxu0 %v4053
    %v5705 = vpop.f32.mrf.mxu0
    %v5706 = vadd.f32 %v5657, %v5705
    %v5707 = vpop.f32.mrf.mxu0
    %v5708 = vadd.f32 %v5659, %v5707
    %5709 = vmatmul.bf16.gmra.mxu0 %v4059
    %v5710 = vpop.f32.mrf.mxu0
    %v5711 = vadd.f32 %v5662, %v5710
    %v5712 = vpop.f32.mrf.mxu0
    %v5713 = vadd.f32 %v5664, %v5712
    %5714 = vmatmul.bf16.gmra.mxu0 %v4065
    %v5715 = vpop.f32.mrf.mxu0
    %v5716 = vadd.f32 %v5667, %v5715
    %v5717 = vpop.f32.mrf.mxu0
    %v5718 = vadd.f32 %v5669, %v5717
    %5719 = vdwg.mxu0
    %5720 = vmatpush.bf16.msra.mxu0 %v5003
    %5721 = vmatpush.bf16.msra.mxu0 %v4999
    %5722 = vmatpush.bf16.msra.mxu0 %v4995
    %5723 = vmatpush.bf16.msra.mxu0 %v4991
    %5724 = vmatpush.bf16.msra.mxu0 %v4987
    %5725 = vmatpush.bf16.msra.mxu0 %v4983
    %5726 = vmatpush.bf16.msra.mxu0 %v4979
    %5727 = vmatpush.bf16.msra.mxu0 %v4975
    %5728 = vmatmul.bf16.gmra.mxu0 %v4024
    %v5729 = vpop.f32.mrf.mxu0
    %v5730 = vadd.f32 %v5681, %v5729
    %v5731 = vpop.f32.mrf.mxu0
    %v5732 = vadd.f32 %v5683, %v5731
    %5733 = vmatmul.bf16.gmra.mxu0 %v4030
    %v5734 = vpop.f32.mrf.mxu0
    %v5735 = vadd.f32 %v5686, %v5734
    %v5736 = vpop.f32.mrf.mxu0
    %v5737 = vadd.f32 %v5688, %v5736
    %5738 = vmatmul.bf16.gmra.mxu0 %v4036
    %v5739 = vpop.f32.mrf.mxu0
    %v5740 = vadd.f32 %v5691, %v5739
    %v5741 = vpop.f32.mrf.mxu0
    %v5742 = vadd.f32 %v5693, %v5741
    %5743 = vmatmul.bf16.gmra.mxu0 %v4042
    %v5744 = vpop.f32.mrf.mxu0
    %v5745 = vadd.f32 %v5696, %v5744
    %v5746 = vpop.f32.mrf.mxu0
    %v5747 = vadd.f32 %v5698, %v5746
    %5748 = vmatmul.bf16.gmra.mxu0 %v4048
    %v5749 = vpop.f32.mrf.mxu0
    %v5750 = vadd.f32 %v5701, %v5749
    %v5751 = vpop.f32.mrf.mxu0
    %v5752 = vadd.f32 %v5703, %v5751
    %5753 = vmatmul.bf16.gmra.mxu0 %v4054
    %v5754 = vpop.f32.mrf.mxu0
    %v5755 = vadd.f32 %v5706, %v5754
    %v5756 = vpop.f32.mrf.mxu0
    %v5757 = vadd.f32 %v5708, %v5756
    %5758 = vmatmul.bf16.gmra.mxu0 %v4060
    %v5759 = vpop.f32.mrf.mxu0
    %v5760 = vadd.f32 %v5711, %v5759
    %v5761 = vpop.f32.mrf.mxu0
    %v5762 = vadd.f32 %v5713, %v5761
    %5763 = vmatmul.bf16.gmra.mxu0 %v4066
    %v5764 = vpop.f32.mrf.mxu0
    %v5765 = vadd.f32 %v5716, %v5764
    %v5766 = vpop.f32.mrf.mxu0
    %v5767 = vadd.f32 %v5718, %v5766
    %5768 = vdwg.mxu0
    %5769 = vmatpush.bf16.msra.mxu0 %v5035
    %5770 = vmatpush.bf16.msra.mxu0 %v5031
    %5771 = vmatpush.bf16.msra.mxu0 %v5027
    %5772 = vmatpush.bf16.msra.mxu0 %v5023
    %5773 = vmatpush.bf16.msra.mxu0 %v5019
    %5774 = vmatpush.bf16.msra.mxu0 %v5015
    %5775 = vmatpush.bf16.msra.mxu0 %v5011
    %5776 = vmatpush.bf16.msra.mxu0 %v5007
    %5777 = vmatmul.bf16.gmra.mxu0 %v4025
    %v5778 = vpop.f32.mrf.mxu0
    %v5779 = vadd.f32 %v5730, %v5778
    %v5780 = vpop.f32.mrf.mxu0
    %v5781 = vadd.f32 %v5732, %v5780
    %5782 = vmatmul.bf16.gmra.mxu0 %v4031
    %v5783 = vpop.f32.mrf.mxu0
    %v5784 = vadd.f32 %v5735, %v5783
    %v5785 = vpop.f32.mrf.mxu0
    %v5786 = vadd.f32 %v5737, %v5785
    %5787 = vmatmul.bf16.gmra.mxu0 %v4037
    %v5788 = vpop.f32.mrf.mxu0
    %v5789 = vadd.f32 %v5740, %v5788
    %v5790 = vpop.f32.mrf.mxu0
    %v5791 = vadd.f32 %v5742, %v5790
    %5792 = vmatmul.bf16.gmra.mxu0 %v4043
    %v5793 = vpop.f32.mrf.mxu0
    %v5794 = vadd.f32 %v5745, %v5793
    %v5795 = vpop.f32.mrf.mxu0
    %v5796 = vadd.f32 %v5747, %v5795
    %5797 = vmatmul.bf16.gmra.mxu0 %v4049
    %v5798 = vpop.f32.mrf.mxu0
    %v5799 = vadd.f32 %v5750, %v5798
    %v5800 = vpop.f32.mrf.mxu0
    %v5801 = vadd.f32 %v5752, %v5800
    %5802 = vmatmul.bf16.gmra.mxu0 %v4055
    %v5803 = vpop.f32.mrf.mxu0
    %v5804 = vadd.f32 %v5755, %v5803
    %v5805 = vpop.f32.mrf.mxu0
    %v5806 = vadd.f32 %v5757, %v5805
    %5807 = vmatmul.bf16.gmra.mxu0 %v4061
    %v5808 = vpop.f32.mrf.mxu0
    %v5809 = vadd.f32 %v5760, %v5808
    %v5810 = vpop.f32.mrf.mxu0
    %v5811 = vadd.f32 %v5762, %v5810
    %5812 = vmatmul.bf16.gmra.mxu0 %v4067
    %v5813 = vpop.f32.mrf.mxu0
    %v5814 = vadd.f32 %v5765, %v5813
    %v5815 = vpop.f32.mrf.mxu0
    %v5816 = vadd.f32 %v5767, %v5815
    %5817 = vdwg.mxu0
    %5818 = vmatpush.bf16.msra.mxu0 %v4876
    %5819 = vmatpush.bf16.msra.mxu0 %v4872
    %5820 = vmatpush.bf16.msra.mxu0 %v4868
    %5821 = vmatpush.bf16.msra.mxu0 %v4864
    %5822 = vmatpush.bf16.msra.mxu0 %v4860
    %5823 = vmatpush.bf16.msra.mxu0 %v4856
    %5824 = vmatpush.bf16.msra.mxu0 %v4852
    %5825 = vmatpush.bf16.msra.mxu0 %v4848
    %5826 = vmatmul.bf16.gmra.mxu0 %v4020
    %v5827 = vpop.f32.mrf.mxu0
    %v5828 = vadd.f32 %v4264, %v5827
    %v5829 = vpop.f32.mrf.mxu0
    %v5830 = vadd.f32 %v4264, %v5829
    %5831 = vmatmul.bf16.gmra.mxu0 %v4026
    %v5832 = vpop.f32.mrf.mxu0
    %v5833 = vadd.f32 %v4264, %v5832
    %v5834 = vpop.f32.mrf.mxu0
    %v5835 = vadd.f32 %v4264, %v5834
    %5836 = vmatmul.bf16.gmra.mxu0 %v4032
    %v5837 = vpop.f32.mrf.mxu0
    %v5838 = vadd.f32 %v4264, %v5837
    %v5839 = vpop.f32.mrf.mxu0
    %v5840 = vadd.f32 %v4264, %v5839
    %5841 = vmatmul.bf16.gmra.mxu0 %v4038
    %v5842 = vpop.f32.mrf.mxu0
    %v5843 = vadd.f32 %v4264, %v5842
    %v5844 = vpop.f32.mrf.mxu0
    %v5845 = vadd.f32 %v4264, %v5844
    %5846 = vmatmul.bf16.gmra.mxu0 %v4044
    %v5847 = vpop.f32.mrf.mxu0
    %v5848 = vadd.f32 %v4264, %v5847
    %v5849 = vpop.f32.mrf.mxu0
    %v5850 = vadd.f32 %v4264, %v5849
    %5851 = vmatmul.bf16.gmra.mxu0 %v4050
    %v5852 = vpop.f32.mrf.mxu0
    %v5853 = vadd.f32 %v4264, %v5852
    %v5854 = vpop.f32.mrf.mxu0
    %v5855 = vadd.f32 %v4264, %v5854
    %5856 = vmatmul.bf16.gmra.mxu0 %v4056
    %v5857 = vpop.f32.mrf.mxu0
    %v5858 = vadd.f32 %v4264, %v5857
    %v5859 = vpop.f32.mrf.mxu0
    %v5860 = vadd.f32 %v4264, %v5859
    %5861 = vmatmul.bf16.gmra.mxu0 %v4062
    %v5862 = vpop.f32.mrf.mxu0
    %v5863 = vadd.f32 %v4264, %v5862
    %v5864 = vpop.f32.mrf.mxu0
    %v5865 = vadd.f32 %v4264, %v5864
    %5866 = vdwg.mxu0
    %5867 = vmatpush.bf16.msra.mxu0 %v4908
    %5868 = vmatpush.bf16.msra.mxu0 %v4904
    %5869 = vmatpush.bf16.msra.mxu0 %v4900
    %5870 = vmatpush.bf16.msra.mxu0 %v4896
    %5871 = vmatpush.bf16.msra.mxu0 %v4892
    %5872 = vmatpush.bf16.msra.mxu0 %v4888
    %5873 = vmatpush.bf16.msra.mxu0 %v4884
    %5874 = vmatpush.bf16.msra.mxu0 %v4880
    %5875 = vmatmul.bf16.gmra.mxu0 %v4021
    %v5876 = vpop.f32.mrf.mxu0
    %v5877 = vadd.f32 %v5828, %v5876
    %v5878 = vpop.f32.mrf.mxu0
    %v5879 = vadd.f32 %v5830, %v5878
    %5880 = vmatmul.bf16.gmra.mxu0 %v4027
    %v5881 = vpop.f32.mrf.mxu0
    %v5882 = vadd.f32 %v5833, %v5881
    %v5883 = vpop.f32.mrf.mxu0
    %v5884 = vadd.f32 %v5835, %v5883
    %5885 = vmatmul.bf16.gmra.mxu0 %v4033
    %v5886 = vpop.f32.mrf.mxu0
    %v5887 = vadd.f32 %v5838, %v5886
    %v5888 = vpop.f32.mrf.mxu0
    %v5889 = vadd.f32 %v5840, %v5888
    %5890 = vmatmul.bf16.gmra.mxu0 %v4039
    %v5891 = vpop.f32.mrf.mxu0
    %v5892 = vadd.f32 %v5843, %v5891
    %v5893 = vpop.f32.mrf.mxu0
    %v5894 = vadd.f32 %v5845, %v5893
    %5895 = vmatmul.bf16.gmra.mxu0 %v4045
    %v5896 = vpop.f32.mrf.mxu0
    %v5897 = vadd.f32 %v5848, %v5896
    %v5898 = vpop.f32.mrf.mxu0
    %v5899 = vadd.f32 %v5850, %v5898
    %5900 = vmatmul.bf16.gmra.mxu0 %v4051
    %v5901 = vpop.f32.mrf.mxu0
    %v5902 = vadd.f32 %v5853, %v5901
    %v5903 = vpop.f32.mrf.mxu0
    %v5904 = vadd.f32 %v5855, %v5903
    %5905 = vmatmul.bf16.gmra.mxu0 %v4057
    %v5906 = vpop.f32.mrf.mxu0
    %v5907 = vadd.f32 %v5858, %v5906
    %v5908 = vpop.f32.mrf.mxu0
    %v5909 = vadd.f32 %v5860, %v5908
    %5910 = vmatmul.bf16.gmra.mxu0 %v4063
    %v5911 = vpop.f32.mrf.mxu0
    %v5912 = vadd.f32 %v5863, %v5911
    %v5913 = vpop.f32.mrf.mxu0
    %v5914 = vadd.f32 %v5865, %v5913
    %5915 = vdwg.mxu0
    %5916 = vmatpush.bf16.msra.mxu0 %v4940
    %5917 = vmatpush.bf16.msra.mxu0 %v4936
    %5918 = vmatpush.bf16.msra.mxu0 %v4932
    %5919 = vmatpush.bf16.msra.mxu0 %v4928
    %5920 = vmatpush.bf16.msra.mxu0 %v4924
    %5921 = vmatpush.bf16.msra.mxu0 %v4920
    %5922 = vmatpush.bf16.msra.mxu0 %v4916
    %5923 = vmatpush.bf16.msra.mxu0 %v4912
    %5924 = vmatmul.bf16.gmra.mxu0 %v4022
    %v5925 = vpop.f32.mrf.mxu0
    %v5926 = vadd.f32 %v5877, %v5925
    %v5927 = vpop.f32.mrf.mxu0
    %v5928 = vadd.f32 %v5879, %v5927
    %5929 = vmatmul.bf16.gmra.mxu0 %v4028
    %v5930 = vpop.f32.mrf.mxu0
    %v5931 = vadd.f32 %v5882, %v5930
    %v5932 = vpop.f32.mrf.mxu0
    %v5933 = vadd.f32 %v5884, %v5932
    %5934 = vmatmul.bf16.gmra.mxu0 %v4034
    %v5935 = vpop.f32.mrf.mxu0
    %v5936 = vadd.f32 %v5887, %v5935
    %v5937 = vpop.f32.mrf.mxu0
    %v5938 = vadd.f32 %v5889, %v5937
    %5939 = vmatmul.bf16.gmra.mxu0 %v4040
    %v5940 = vpop.f32.mrf.mxu0
    %v5941 = vadd.f32 %v5892, %v5940
    %v5942 = vpop.f32.mrf.mxu0
    %v5943 = vadd.f32 %v5894, %v5942
    %5944 = vmatmul.bf16.gmra.mxu0 %v4046
    %v5945 = vpop.f32.mrf.mxu0
    %v5946 = vadd.f32 %v5897, %v5945
    %v5947 = vpop.f32.mrf.mxu0
    %v5948 = vadd.f32 %v5899, %v5947
    %5949 = vmatmul.bf16.gmra.mxu0 %v4052
    %v5950 = vpop.f32.mrf.mxu0
    %v5951 = vadd.f32 %v5902, %v5950
    %v5952 = vpop.f32.mrf.mxu0
    %v5953 = vadd.f32 %v5904, %v5952
    %5954 = vmatmul.bf16.gmra.mxu0 %v4058
    %v5955 = vpop.f32.mrf.mxu0
    %v5956 = vadd.f32 %v5907, %v5955
    %v5957 = vpop.f32.mrf.mxu0
    %v5958 = vadd.f32 %v5909, %v5957
    %5959 = vmatmul.bf16.gmra.mxu0 %v4064
    %v5960 = vpop.f32.mrf.mxu0
    %v5961 = vadd.f32 %v5912, %v5960
    %v5962 = vpop.f32.mrf.mxu0
    %v5963 = vadd.f32 %v5914, %v5962
    %5964 = vdwg.mxu0
    %5965 = vmatpush.bf16.msra.mxu0 %v4972
    %5966 = vmatpush.bf16.msra.mxu0 %v4968
    %5967 = vmatpush.bf16.msra.mxu0 %v4964
    %5968 = vmatpush.bf16.msra.mxu0 %v4960
    %5969 = vmatpush.bf16.msra.mxu0 %v4956
    %5970 = vmatpush.bf16.msra.mxu0 %v4952
    %5971 = vmatpush.bf16.msra.mxu0 %v4948
    %5972 = vmatpush.bf16.msra.mxu0 %v4944
    %5973 = vmatmul.bf16.gmra.mxu0 %v4023
    %v5974 = vpop.f32.mrf.mxu0
    %v5975 = vadd.f32 %v5926, %v5974
    %v5976 = vpop.f32.mrf.mxu0
    %v5977 = vadd.f32 %v5928, %v5976
    %5978 = vmatmul.bf16.gmra.mxu0 %v4029
    %v5979 = vpop.f32.mrf.mxu0
    %v5980 = vadd.f32 %v5931, %v5979
    %v5981 = vpop.f32.mrf.mxu0
    %v5982 = vadd.f32 %v5933, %v5981
    %5983 = vmatmul.bf16.gmra.mxu0 %v4035
    %v5984 = vpop.f32.mrf.mxu0
    %v5985 = vadd.f32 %v5936, %v5984
    %v5986 = vpop.f32.mrf.mxu0
    %v5987 = vadd.f32 %v5938, %v5986
    %5988 = vmatmul.bf16.gmra.mxu0 %v4041
    %v5989 = vpop.f32.mrf.mxu0
    %v5990 = vadd.f32 %v5941, %v5989
    %v5991 = vpop.f32.mrf.mxu0
    %v5992 = vadd.f32 %v5943, %v5991
    %5993 = vmatmul.bf16.gmra.mxu0 %v4047
    %v5994 = vpop.f32.mrf.mxu0
    %v5995 = vadd.f32 %v5946, %v5994
    %v5996 = vpop.f32.mrf.mxu0
    %v5997 = vadd.f32 %v5948, %v5996
    %5998 = vmatmul.bf16.gmra.mxu0 %v4053
    %v5999 = vpop.f32.mrf.mxu0
    %v6000 = vadd.f32 %v5951, %v5999
    %v6001 = vpop.f32.mrf.mxu0
    %v6002 = vadd.f32 %v5953, %v6001
    %6003 = vmatmul.bf16.gmra.mxu0 %v4059
    %v6004 = vpop.f32.mrf.mxu0
    %v6005 = vadd.f32 %v5956, %v6004
    %v6006 = vpop.f32.mrf.mxu0
    %v6007 = vadd.f32 %v5958, %v6006
    %6008 = vmatmul.bf16.gmra.mxu0 %v4065
    %v6009 = vpop.f32.mrf.mxu0
    %v6010 = vadd.f32 %v5961, %v6009
    %v6011 = vpop.f32.mrf.mxu0
    %v6012 = vadd.f32 %v5963, %v6011
    %6013 = vdwg.mxu0
    %6014 = vmatpush.bf16.msra.mxu0 %v5004
    %6015 = vmatpush.bf16.msra.mxu0 %v5000
    %6016 = vmatpush.bf16.msra.mxu0 %v4996
    %6017 = vmatpush.bf16.msra.mxu0 %v4992
    %6018 = vmatpush.bf16.msra.mxu0 %v4988
    %6019 = vmatpush.bf16.msra.mxu0 %v4984
    %6020 = vmatpush.bf16.msra.mxu0 %v4980
    %6021 = vmatpush.bf16.msra.mxu0 %v4976
    %6022 = vmatmul.bf16.gmra.mxu0 %v4024
    %v6023 = vpop.f32.mrf.mxu0
    %v6024 = vadd.f32 %v5975, %v6023
    %v6025 = vpop.f32.mrf.mxu0
    %v6026 = vadd.f32 %v5977, %v6025
    %6027 = vmatmul.bf16.gmra.mxu0 %v4030
    %v6028 = vpop.f32.mrf.mxu0
    %v6029 = vadd.f32 %v5980, %v6028
    %v6030 = vpop.f32.mrf.mxu0
    %v6031 = vadd.f32 %v5982, %v6030
    %6032 = vmatmul.bf16.gmra.mxu0 %v4036
    %v6033 = vpop.f32.mrf.mxu0
    %v6034 = vadd.f32 %v5985, %v6033
    %v6035 = vpop.f32.mrf.mxu0
    %v6036 = vadd.f32 %v5987, %v6035
    %6037 = vmatmul.bf16.gmra.mxu0 %v4042
    %v6038 = vpop.f32.mrf.mxu0
    %v6039 = vadd.f32 %v5990, %v6038
    %v6040 = vpop.f32.mrf.mxu0
    %v6041 = vadd.f32 %v5992, %v6040
    %6042 = vmatmul.bf16.gmra.mxu0 %v4048
    %v6043 = vpop.f32.mrf.mxu0
    %v6044 = vadd.f32 %v5995, %v6043
    %v6045 = vpop.f32.mrf.mxu0
    %v6046 = vadd.f32 %v5997, %v6045
    %6047 = vmatmul.bf16.gmra.mxu0 %v4054
    %v6048 = vpop.f32.mrf.mxu0
    %v6049 = vadd.f32 %v6000, %v6048
    %v6050 = vpop.f32.mrf.mxu0
    %v6051 = vadd.f32 %v6002, %v6050
    %6052 = vmatmul.bf16.gmra.mxu0 %v4060
    %v6053 = vpop.f32.mrf.mxu0
    %v6054 = vadd.f32 %v6005, %v6053
    %v6055 = vpop.f32.mrf.mxu0
    %v6056 = vadd.f32 %v6007, %v6055
    %6057 = vmatmul.bf16.gmra.mxu0 %v4066
    %v6058 = vpop.f32.mrf.mxu0
    %v6059 = vadd.f32 %v6010, %v6058
    %v6060 = vpop.f32.mrf.mxu0
    %v6061 = vadd.f32 %v6012, %v6060
    %6062 = vdwg.mxu0
    %6063 = vmatpush.bf16.msra.mxu0 %v5036
    %6064 = vmatpush.bf16.msra.mxu0 %v5032
    %6065 = vmatpush.bf16.msra.mxu0 %v5028
    %6066 = vmatpush.bf16.msra.mxu0 %v5024
    %6067 = vmatpush.bf16.msra.mxu0 %v5020
    %6068 = vmatpush.bf16.msra.mxu0 %v5016
    %6069 = vmatpush.bf16.msra.mxu0 %v5012
    %6070 = vmatpush.bf16.msra.mxu0 %v5008
    %6071 = vmatmul.bf16.gmra.mxu0 %v4025
    %v6072 = vpop.f32.mrf.mxu0
    %v6073 = vadd.f32 %v6024, %v6072
    %v6074 = vpop.f32.mrf.mxu0
    %v6075 = vadd.f32 %v6026, %v6074
    %6076 = vmatmul.bf16.gmra.mxu0 %v4031
    %v6077 = vpop.f32.mrf.mxu0
    %v6078 = vadd.f32 %v6029, %v6077
    %v6079 = vpop.f32.mrf.mxu0
    %v6080 = vadd.f32 %v6031, %v6079
    %6081 = vmatmul.bf16.gmra.mxu0 %v4037
    %v6082 = vpop.f32.mrf.mxu0
    %v6083 = vadd.f32 %v6034, %v6082
    %v6084 = vpop.f32.mrf.mxu0
    %v6085 = vadd.f32 %v6036, %v6084
    %6086 = vmatmul.bf16.gmra.mxu0 %v4043
    %v6087 = vpop.f32.mrf.mxu0
    %v6088 = vadd.f32 %v6039, %v6087
    %v6089 = vpop.f32.mrf.mxu0
    %v6090 = vadd.f32 %v6041, %v6089
    %6091 = vmatmul.bf16.gmra.mxu0 %v4049
    %v6092 = vpop.f32.mrf.mxu0
    %v6093 = vadd.f32 %v6044, %v6092
    %v6094 = vpop.f32.mrf.mxu0
    %v6095 = vadd.f32 %v6046, %v6094
    %6096 = vmatmul.bf16.gmra.mxu0 %v4055
    %v6097 = vpop.f32.mrf.mxu0
    %v6098 = vadd.f32 %v6049, %v6097
    %v6099 = vpop.f32.mrf.mxu0
    %v6100 = vadd.f32 %v6051, %v6099
    %6101 = vmatmul.bf16.gmra.mxu0 %v4061
    %v6102 = vpop.f32.mrf.mxu0
    %v6103 = vadd.f32 %v6054, %v6102
    %v6104 = vpop.f32.mrf.mxu0
    %v6105 = vadd.f32 %v6056, %v6104
    %6106 = vmatmul.bf16.gmra.mxu0 %v4067
    %v6107 = vpop.f32.mrf.mxu0
    %v6108 = vadd.f32 %v6059, %v6107
    %v6109 = vpop.f32.mrf.mxu0
    %v6110 = vadd.f32 %v6061, %v6109
    %6111 = vdwg.mxu0
    %6112 = vmatpush.bf16.msra.mxu0 %v4877
    %6113 = vmatpush.bf16.msra.mxu0 %v4873
    %6114 = vmatpush.bf16.msra.mxu0 %v4869
    %6115 = vmatpush.bf16.msra.mxu0 %v4865
    %6116 = vmatpush.bf16.msra.mxu0 %v4861
    %6117 = vmatpush.bf16.msra.mxu0 %v4857
    %6118 = vmatpush.bf16.msra.mxu0 %v4853
    %6119 = vmatpush.bf16.msra.mxu0 %v4849
    %6120 = vmatmul.bf16.gmra.mxu0 %v4020
    %v6121 = vpop.f32.mrf.mxu0
    %v6122 = vadd.f32 %v4265, %v6121
    %v6123 = vpop.f32.mrf.mxu0
    %v6124 = vadd.f32 %v4265, %v6123
    %6125 = vmatmul.bf16.gmra.mxu0 %v4026
    %v6126 = vpop.f32.mrf.mxu0
    %v6127 = vadd.f32 %v4265, %v6126
    %v6128 = vpop.f32.mrf.mxu0
    %v6129 = vadd.f32 %v4265, %v6128
    %6130 = vmatmul.bf16.gmra.mxu0 %v4032
    %v6131 = vpop.f32.mrf.mxu0
    %v6132 = vadd.f32 %v4265, %v6131
    %v6133 = vpop.f32.mrf.mxu0
    %v6134 = vadd.f32 %v4265, %v6133
    %6135 = vmatmul.bf16.gmra.mxu0 %v4038
    %v6136 = vpop.f32.mrf.mxu0
    %v6137 = vadd.f32 %v4265, %v6136
    %v6138 = vpop.f32.mrf.mxu0
    %v6139 = vadd.f32 %v4265, %v6138
    %6140 = vmatmul.bf16.gmra.mxu0 %v4044
    %v6141 = vpop.f32.mrf.mxu0
    %v6142 = vadd.f32 %v4265, %v6141
    %v6143 = vpop.f32.mrf.mxu0
    %v6144 = vadd.f32 %v4265, %v6143
    %6145 = vmatmul.bf16.gmra.mxu0 %v4050
    %v6146 = vpop.f32.mrf.mxu0
    %v6147 = vadd.f32 %v4265, %v6146
    %v6148 = vpop.f32.mrf.mxu0
    %v6149 = vadd.f32 %v4265, %v6148
    %6150 = vmatmul.bf16.gmra.mxu0 %v4056
    %v6151 = vpop.f32.mrf.mxu0
    %v6152 = vadd.f32 %v4265, %v6151
    %v6153 = vpop.f32.mrf.mxu0
    %v6154 = vadd.f32 %v4265, %v6153
    %6155 = vmatmul.bf16.gmra.mxu0 %v4062
    %v6156 = vpop.f32.mrf.mxu0
    %v6157 = vadd.f32 %v4265, %v6156
    %v6158 = vpop.f32.mrf.mxu0
    %v6159 = vadd.f32 %v4265, %v6158
    %6160 = vdwg.mxu0
    %6161 = vmatpush.bf16.msra.mxu0 %v4909
    %6162 = vmatpush.bf16.msra.mxu0 %v4905
    %6163 = vmatpush.bf16.msra.mxu0 %v4901
    %6164 = vmatpush.bf16.msra.mxu0 %v4897
    %6165 = vmatpush.bf16.msra.mxu0 %v4893
    %6166 = vmatpush.bf16.msra.mxu0 %v4889
    %6167 = vmatpush.bf16.msra.mxu0 %v4885
    %6168 = vmatpush.bf16.msra.mxu0 %v4881
    %6169 = vmatmul.bf16.gmra.mxu0 %v4021
    %v6170 = vpop.f32.mrf.mxu0
    %v6171 = vadd.f32 %v6122, %v6170
    %v6172 = vpop.f32.mrf.mxu0
    %v6173 = vadd.f32 %v6124, %v6172
    %6174 = vmatmul.bf16.gmra.mxu0 %v4027
    %v6175 = vpop.f32.mrf.mxu0
    %v6176 = vadd.f32 %v6127, %v6175
    %v6177 = vpop.f32.mrf.mxu0
    %v6178 = vadd.f32 %v6129, %v6177
    %6179 = vmatmul.bf16.gmra.mxu0 %v4033
    %v6180 = vpop.f32.mrf.mxu0
    %v6181 = vadd.f32 %v6132, %v6180
    %v6182 = vpop.f32.mrf.mxu0
    %v6183 = vadd.f32 %v6134, %v6182
    %6184 = vmatmul.bf16.gmra.mxu0 %v4039
    %v6185 = vpop.f32.mrf.mxu0
    %v6186 = vadd.f32 %v6137, %v6185
    %v6187 = vpop.f32.mrf.mxu0
    %v6188 = vadd.f32 %v6139, %v6187
    %6189 = vmatmul.bf16.gmra.mxu0 %v4045
    %v6190 = vpop.f32.mrf.mxu0
    %v6191 = vadd.f32 %v6142, %v6190
    %v6192 = vpop.f32.mrf.mxu0
    %v6193 = vadd.f32 %v6144, %v6192
    %6194 = vmatmul.bf16.gmra.mxu0 %v4051
    %v6195 = vpop.f32.mrf.mxu0
    %v6196 = vadd.f32 %v6147, %v6195
    %v6197 = vpop.f32.mrf.mxu0
    %v6198 = vadd.f32 %v6149, %v6197
    %6199 = vmatmul.bf16.gmra.mxu0 %v4057
    %v6200 = vpop.f32.mrf.mxu0
    %v6201 = vadd.f32 %v6152, %v6200
    %v6202 = vpop.f32.mrf.mxu0
    %v6203 = vadd.f32 %v6154, %v6202
    %6204 = vmatmul.bf16.gmra.mxu0 %v4063
    %v6205 = vpop.f32.mrf.mxu0
    %v6206 = vadd.f32 %v6157, %v6205
    %v6207 = vpop.f32.mrf.mxu0
    %v6208 = vadd.f32 %v6159, %v6207
    %6209 = vdwg.mxu0
    %6210 = vmatpush.bf16.msra.mxu0 %v4941
    %6211 = vmatpush.bf16.msra.mxu0 %v4937
    %6212 = vmatpush.bf16.msra.mxu0 %v4933
    %6213 = vmatpush.bf16.msra.mxu0 %v4929
    %6214 = vmatpush.bf16.msra.mxu0 %v4925
    %6215 = vmatpush.bf16.msra.mxu0 %v4921
    %6216 = vmatpush.bf16.msra.mxu0 %v4917
    %6217 = vmatpush.bf16.msra.mxu0 %v4913
    %6218 = vmatmul.bf16.gmra.mxu0 %v4022
    %v6219 = vpop.f32.mrf.mxu0
    %v6220 = vadd.f32 %v6171, %v6219
    %v6221 = vpop.f32.mrf.mxu0
    %v6222 = vadd.f32 %v6173, %v6221
    %6223 = vmatmul.bf16.gmra.mxu0 %v4028
    %v6224 = vpop.f32.mrf.mxu0
    %v6225 = vadd.f32 %v6176, %v6224
    %v6226 = vpop.f32.mrf.mxu0
    %v6227 = vadd.f32 %v6178, %v6226
    %6228 = vmatmul.bf16.gmra.mxu0 %v4034
    %v6229 = vpop.f32.mrf.mxu0
    %v6230 = vadd.f32 %v6181, %v6229
    %v6231 = vpop.f32.mrf.mxu0
    %v6232 = vadd.f32 %v6183, %v6231
    %6233 = vmatmul.bf16.gmra.mxu0 %v4040
    %v6234 = vpop.f32.mrf.mxu0
    %v6235 = vadd.f32 %v6186, %v6234
    %v6236 = vpop.f32.mrf.mxu0
    %v6237 = vadd.f32 %v6188, %v6236
    %6238 = vmatmul.bf16.gmra.mxu0 %v4046
    %v6239 = vpop.f32.mrf.mxu0
    %v6240 = vadd.f32 %v6191, %v6239
    %v6241 = vpop.f32.mrf.mxu0
    %v6242 = vadd.f32 %v6193, %v6241
    %6243 = vmatmul.bf16.gmra.mxu0 %v4052
    %v6244 = vpop.f32.mrf.mxu0
    %v6245 = vadd.f32 %v6196, %v6244
    %v6246 = vpop.f32.mrf.mxu0
    %v6247 = vadd.f32 %v6198, %v6246
    %6248 = vmatmul.bf16.gmra.mxu0 %v4058
    %v6249 = vpop.f32.mrf.mxu0
    %v6250 = vadd.f32 %v6201, %v6249
    %v6251 = vpop.f32.mrf.mxu0
    %v6252 = vadd.f32 %v6203, %v6251
    %6253 = vmatmul.bf16.gmra.mxu0 %v4064
    %v6254 = vpop.f32.mrf.mxu0
    %v6255 = vadd.f32 %v6206, %v6254
    %v6256 = vpop.f32.mrf.mxu0
    %v6257 = vadd.f32 %v6208, %v6256
    %6258 = vdwg.mxu0
    %6259 = vmatpush.bf16.msra.mxu0 %v4973
    %6260 = vmatpush.bf16.msra.mxu0 %v4969
    %6261 = vmatpush.bf16.msra.mxu0 %v4965
    %6262 = vmatpush.bf16.msra.mxu0 %v4961
    %6263 = vmatpush.bf16.msra.mxu0 %v4957
    %6264 = vmatpush.bf16.msra.mxu0 %v4953
    %6265 = vmatpush.bf16.msra.mxu0 %v4949
    %6266 = vmatpush.bf16.msra.mxu0 %v4945
    %6267 = vmatmul.bf16.gmra.mxu0 %v4023
    %v6268 = vpop.f32.mrf.mxu0
    %v6269 = vadd.f32 %v6220, %v6268
    %v6270 = vpop.f32.mrf.mxu0
    %v6271 = vadd.f32 %v6222, %v6270
    %6272 = vmatmul.bf16.gmra.mxu0 %v4029
    %v6273 = vpop.f32.mrf.mxu0
    %v6274 = vadd.f32 %v6225, %v6273
    %v6275 = vpop.f32.mrf.mxu0
    %v6276 = vadd.f32 %v6227, %v6275
    %6277 = vmatmul.bf16.gmra.mxu0 %v4035
    %v6278 = vpop.f32.mrf.mxu0
    %v6279 = vadd.f32 %v6230, %v6278
    %v6280 = vpop.f32.mrf.mxu0
    %v6281 = vadd.f32 %v6232, %v6280
    %6282 = vmatmul.bf16.gmra.mxu0 %v4041
    %v6283 = vpop.f32.mrf.mxu0
    %v6284 = vadd.f32 %v6235, %v6283
    %v6285 = vpop.f32.mrf.mxu0
    %v6286 = vadd.f32 %v6237, %v6285
    %6287 = vmatmul.bf16.gmra.mxu0 %v4047
    %v6288 = vpop.f32.mrf.mxu0
    %v6289 = vadd.f32 %v6240, %v6288
    %v6290 = vpop.f32.mrf.mxu0
    %v6291 = vadd.f32 %v6242, %v6290
    %6292 = vmatmul.bf16.gmra.mxu0 %v4053
    %v6293 = vpop.f32.mrf.mxu0
    %v6294 = vadd.f32 %v6245, %v6293
    %v6295 = vpop.f32.mrf.mxu0
    %v6296 = vadd.f32 %v6247, %v6295
    %6297 = vmatmul.bf16.gmra.mxu0 %v4059
    %v6298 = vpop.f32.mrf.mxu0
    %v6299 = vadd.f32 %v6250, %v6298
    %v6300 = vpop.f32.mrf.mxu0
    %v6301 = vadd.f32 %v6252, %v6300
    %6302 = vmatmul.bf16.gmra.mxu0 %v4065
    %v6303 = vpop.f32.mrf.mxu0
    %v6304 = vadd.f32 %v6255, %v6303
    %v6305 = vpop.f32.mrf.mxu0
    %v6306 = vadd.f32 %v6257, %v6305
    %6307 = vdwg.mxu0
    %6308 = vmatpush.bf16.msra.mxu0 %v5005
    %6309 = vmatpush.bf16.msra.mxu0 %v5001
    %6310 = vmatpush.bf16.msra.mxu0 %v4997
    %6311 = vmatpush.bf16.msra.mxu0 %v4993
    %6312 = vmatpush.bf16.msra.mxu0 %v4989
    %6313 = vmatpush.bf16.msra.mxu0 %v4985
    %6314 = vmatpush.bf16.msra.mxu0 %v4981
    %6315 = vmatpush.bf16.msra.mxu0 %v4977
    %6316 = vmatmul.bf16.gmra.mxu0 %v4024
    %v6317 = vpop.f32.mrf.mxu0
    %v6318 = vadd.f32 %v6269, %v6317
    %v6319 = vpop.f32.mrf.mxu0
    %v6320 = vadd.f32 %v6271, %v6319
    %6321 = vmatmul.bf16.gmra.mxu0 %v4030
    %v6322 = vpop.f32.mrf.mxu0
    %v6323 = vadd.f32 %v6274, %v6322
    %v6324 = vpop.f32.mrf.mxu0
    %v6325 = vadd.f32 %v6276, %v6324
    %6326 = vmatmul.bf16.gmra.mxu0 %v4036
    %v6327 = vpop.f32.mrf.mxu0
    %v6328 = vadd.f32 %v6279, %v6327
    %v6329 = vpop.f32.mrf.mxu0
    %v6330 = vadd.f32 %v6281, %v6329
    %6331 = vmatmul.bf16.gmra.mxu0 %v4042
    %v6332 = vpop.f32.mrf.mxu0
    %v6333 = vadd.f32 %v6284, %v6332
    %v6334 = vpop.f32.mrf.mxu0
    %v6335 = vadd.f32 %v6286, %v6334
    %6336 = vmatmul.bf16.gmra.mxu0 %v4048
    %v6337 = vpop.f32.mrf.mxu0
    %v6338 = vadd.f32 %v6289, %v6337
    %v6339 = vpop.f32.mrf.mxu0
    %v6340 = vadd.f32 %v6291, %v6339
    %6341 = vmatmul.bf16.gmra.mxu0 %v4054
    %v6342 = vpop.f32.mrf.mxu0
    %v6343 = vadd.f32 %v6294, %v6342
    %v6344 = vpop.f32.mrf.mxu0
    %v6345 = vadd.f32 %v6296, %v6344
    %6346 = vmatmul.bf16.gmra.mxu0 %v4060
    %v6347 = vpop.f32.mrf.mxu0
    %v6348 = vadd.f32 %v6299, %v6347
    %v6349 = vpop.f32.mrf.mxu0
    %v6350 = vadd.f32 %v6301, %v6349
    %6351 = vmatmul.bf16.gmra.mxu0 %v4066
    %v6352 = vpop.f32.mrf.mxu0
    %v6353 = vadd.f32 %v6304, %v6352
    %v6354 = vpop.f32.mrf.mxu0
    %v6355 = vadd.f32 %v6306, %v6354
    %6356 = vdwg.mxu0
    %6357 = vmatpush.bf16.msra.mxu0 %v5037
    %6358 = vmatpush.bf16.msra.mxu0 %v5033
    %6359 = vmatpush.bf16.msra.mxu0 %v5029
    %6360 = vmatpush.bf16.msra.mxu0 %v5025
    %6361 = vmatpush.bf16.msra.mxu0 %v5021
    %6362 = vmatpush.bf16.msra.mxu0 %v5017
    %6363 = vmatpush.bf16.msra.mxu0 %v5013
    %6364 = vmatpush.bf16.msra.mxu0 %v5009
    %6365 = vmatmul.bf16.gmra.mxu0 %v4025
    %v6366 = vpop.f32.mrf.mxu0
    %v6367 = vadd.f32 %v6318, %v6366
    %v6368 = vpop.f32.mrf.mxu0
    %v6369 = vadd.f32 %v6320, %v6368
    %6370 = vmatmul.bf16.gmra.mxu0 %v4031
    %v6371 = vpop.f32.mrf.mxu0
    %v6372 = vadd.f32 %v6323, %v6371
    %v6373 = vpop.f32.mrf.mxu0
    %v6374 = vadd.f32 %v6325, %v6373
    %6375 = vmatmul.bf16.gmra.mxu0 %v4037
    %v6376 = vpop.f32.mrf.mxu0
    %v6377 = vadd.f32 %v6328, %v6376
    %v6378 = vpop.f32.mrf.mxu0
    %v6379 = vadd.f32 %v6330, %v6378
    %6380 = vmatmul.bf16.gmra.mxu0 %v4043
    %v6381 = vpop.f32.mrf.mxu0
    %v6382 = vadd.f32 %v6333, %v6381
    %v6383 = vpop.f32.mrf.mxu0
    %v6384 = vadd.f32 %v6335, %v6383
    %6385 = vmatmul.bf16.gmra.mxu0 %v4049
    %v6386 = vpop.f32.mrf.mxu0
    %v6387 = vadd.f32 %v6338, %v6386
    %v6388 = vpop.f32.mrf.mxu0
    %v6389 = vadd.f32 %v6340, %v6388
    %6390 = vmatmul.bf16.gmra.mxu0 %v4055
    %v6391 = vpop.f32.mrf.mxu0
    %v6392 = vadd.f32 %v6343, %v6391
    %v6393 = vpop.f32.mrf.mxu0
    %v6394 = vadd.f32 %v6345, %v6393
    %6395 = vmatmul.bf16.gmra.mxu0 %v4061
    %v6396 = vpop.f32.mrf.mxu0
    %v6397 = vadd.f32 %v6348, %v6396
    %v6398 = vpop.f32.mrf.mxu0
    %v6399 = vadd.f32 %v6350, %v6398
    %6400 = vmatmul.bf16.gmra.mxu0 %v4067
    %v6401 = vpop.f32.mrf.mxu0
    %v6402 = vadd.f32 %v6353, %v6401
    %v6403 = vpop.f32.mrf.mxu0
    %v6404 = vadd.f32 %v6355, %v6403
    %6405 = vdwg.mxu0
    %v6406 = vmax.f32 %v5485, 0.0
    %v6407 = vmax.f32 %v5779, 0.0
    %v6408 = vmax.f32 %v6073, 0.0
    %v6409 = vmax.f32 %v6367, 0.0
    %v6410 = vmax.f32 %v5487, 0.0
    %v6411 = vmax.f32 %v5781, 0.0
    %v6412 = vmax.f32 %v6075, 0.0
    %v6413 = vmax.f32 %v6369, 0.0
    %v6414 = vmax.f32 %v5490, 0.0
    %v6415 = vmax.f32 %v5784, 0.0
    %v6416 = vmax.f32 %v6078, 0.0
    %v6417 = vmax.f32 %v6372, 0.0
    %v6418 = vmax.f32 %v5492, 0.0
    %v6419 = vmax.f32 %v5786, 0.0
    %v6420 = vmax.f32 %v6080, 0.0
    %v6421 = vmax.f32 %v6374, 0.0
    %v6422 = vmax.f32 %v5495, 0.0
    %v6423 = vmax.f32 %v5789, 0.0
    %v6424 = vmax.f32 %v6083, 0.0
    %v6425 = vmax.f32 %v6377, 0.0
    %v6426 = vmax.f32 %v5497, 0.0
    %v6427 = vmax.f32 %v5791, 0.0
    %v6428 = vmax.f32 %v6085, 0.0
    %v6429 = vmax.f32 %v6379, 0.0
    %v6430 = vmax.f32 %v5500, 0.0
    %v6431 = vmax.f32 %v5794, 0.0
    %v6432 = vmax.f32 %v6088, 0.0
    %v6433 = vmax.f32 %v6382, 0.0
    %v6434 = vmax.f32 %v5502, 0.0
    %v6435 = vmax.f32 %v5796, 0.0
    %v6436 = vmax.f32 %v6090, 0.0
    %v6437 = vmax.f32 %v6384, 0.0
    %v6438 = vmax.f32 %v5505, 0.0
    %v6439 = vmax.f32 %v5799, 0.0
    %v6440 = vmax.f32 %v6093, 0.0
    %v6441 = vmax.f32 %v6387, 0.0
    %v6442 = vmax.f32 %v5507, 0.0
    %v6443 = vmax.f32 %v5801, 0.0
    %v6444 = vmax.f32 %v6095, 0.0
    %v6445 = vmax.f32 %v6389, 0.0
    %v6446 = vmax.f32 %v5510, 0.0
    %v6447 = vmax.f32 %v5804, 0.0
    %v6448 = vmax.f32 %v6098, 0.0
    %v6449 = vmax.f32 %v6392, 0.0
    %v6450 = vmax.f32 %v5512, 0.0
    %v6451 = vmax.f32 %v5806, 0.0
    %v6452 = vmax.f32 %v6100, 0.0
    %v6453 = vmax.f32 %v6394, 0.0
    %v6454 = vmax.f32 %v5515, 0.0
    %v6455 = vmax.f32 %v5809, 0.0
    %v6456 = vmax.f32 %v6103, 0.0
    %v6457 = vmax.f32 %v6397, 0.0
    %v6458 = vmax.f32 %v5517, 0.0
    %v6459 = vmax.f32 %v5811, 0.0
    %v6460 = vmax.f32 %v6105, 0.0
    %v6461 = vmax.f32 %v6399, 0.0
    %v6462 = vmax.f32 %v5520, 0.0
    %v6463 = vmax.f32 %v5814, 0.0
    %v6464 = vmax.f32 %v6108, 0.0
    %v6465 = vmax.f32 %v6402, 0.0
    %v6466 = vmax.f32 %v5522, 0.0
    %v6467 = vmax.f32 %v5816, 0.0
    %v6468 = vmax.f32 %v6110, 0.0
    %v6469 = vmax.f32 %v6404, 0.0
    %v6470 = vpack.c.bf16 %v6410, %v6406
    %v6471 = vpack.c.bf16 %v6411, %v6407
    %v6472 = vpack.c.bf16 %v6412, %v6408
    %v6473 = vpack.c.bf16 %v6413, %v6409
    %v6474 = vpack.c.bf16 %v6418, %v6414
    %v6475 = vpack.c.bf16 %v6419, %v6415
    %v6476 = vpack.c.bf16 %v6420, %v6416
    %v6477 = vpack.c.bf16 %v6421, %v6417
    %v6478 = vpack.c.bf16 %v6426, %v6422
    %v6479 = vpack.c.bf16 %v6427, %v6423
    %v6480 = vpack.c.bf16 %v6428, %v6424
    %v6481 = vpack.c.bf16 %v6429, %v6425
    %v6482 = vpack.c.bf16 %v6434, %v6430
    %v6483 = vpack.c.bf16 %v6435, %v6431
    %v6484 = vpack.c.bf16 %v6436, %v6432
    %v6485 = vpack.c.bf16 %v6437, %v6433
    %v6486 = vpack.c.bf16 %v6442, %v6438
    %v6487 = vpack.c.bf16 %v6443, %v6439
    %v6488 = vpack.c.bf16 %v6444, %v6440
    %v6489 = vpack.c.bf16 %v6445, %v6441
    %v6490 = vpack.c.bf16 %v6450, %v6446
    %v6491 = vpack.c.bf16 %v6451, %v6447
    %v6492 = vpack.c.bf16 %v6452, %v6448
    %v6493 = vpack.c.bf16 %v6453, %v6449
    %v6494 = vpack.c.bf16 %v6458, %v6454
    %v6495 = vpack.c.bf16 %v6459, %v6455
    %v6496 = vpack.c.bf16 %v6460, %v6456
    %v6497 = vpack.c.bf16 %v6461, %v6457
    %v6498 = vpack.c.bf16 %v6466, %v6462
    %v6499 = vpack.c.bf16 %v6467, %v6463
    %v6500 = vpack.c.bf16 %v6468, %v6464
    %v6501 = vpack.c.bf16 %v6469, %v6465
    %v6502 = vld [vmem:[#allocation11] sm:$0xf]
    %v6503 = vld [vmem:[#allocation11 + $0x4] sm:$0xf]
    %v6504 = vld [vmem:[#allocation11 + $0x8] sm:$0xf]
    %v6505 = vld [vmem:[#allocation11 + $0xc] sm:$0xf]
    %v6506 = vld [vmem:[#allocation11 + $0x10] sm:$0xf]
    %v6507 = vld [vmem:[#allocation11 + $0x14] sm:$0xf]
    %v6508 = vld [vmem:[#allocation11 + $0x18] sm:$0xf]
    %v6509 = vld [vmem:[#allocation11 + $0x1c] sm:$0xf]
    %v6510 = vld [vmem:[#allocation11 + $0x20] sm:$0xf]
    %v6511 = vld [vmem:[#allocation11 + $0x24] sm:$0xf]
    %v6512 = vld [vmem:[#allocation11 + $0x28] sm:$0xf]
    %v6513 = vld [vmem:[#allocation11 + $0x2c] sm:$0xf]
    %v6514 = vld [vmem:[#allocation11 + $0x30] sm:$0xf]
    %v6515 = vld [vmem:[#allocation11 + $0x34] sm:$0xf]
    %v6516 = vld [vmem:[#allocation11 + $0x38] sm:$0xf]
    %v6517 = vld [vmem:[#allocation11 + $0x3c] sm:$0xf]
    %v6518 = vld [vmem:[#allocation11 + $0x40] sm:$0xf]
    %v6519 = vld [vmem:[#allocation11 + $0x44] sm:$0xf]
    %v6520 = vld [vmem:[#allocation11 + $0x48] sm:$0xf]
    %v6521 = vld [vmem:[#allocation11 + $0x4c] sm:$0xf]
    %v6522 = vld [vmem:[#allocation11 + $0x50] sm:$0xf]
    %v6523 = vld [vmem:[#allocation11 + $0x54] sm:$0xf]
    %v6524 = vld [vmem:[#allocation11 + $0x58] sm:$0xf]
    %v6525 = vld [vmem:[#allocation11 + $0x5c] sm:$0xf]
    %v6526 = vld [vmem:[#allocation11 + $0x60] sm:$0xf]
    %v6527 = vld [vmem:[#allocation11 + $0x64] sm:$0xf]
    %v6528 = vld [vmem:[#allocation11 + $0x68] sm:$0xf]
    %v6529 = vld [vmem:[#allocation11 + $0x6c] sm:$0xf]
    %v6530 = vld [vmem:[#allocation11 + $0x70] sm:$0xf]
    %v6531 = vld [vmem:[#allocation11 + $0x74] sm:$0xf]
    %v6532 = vld [vmem:[#allocation11 + $0x78] sm:$0xf]
    %v6533 = vld [vmem:[#allocation11 + $0x7c] sm:$0xf]
    %v6534 = vld [vmem:[#allocation11 + $0x80] sm:$0xf]
    %v6535 = vld [vmem:[#allocation11 + $0x84] sm:$0xf]
    %v6536 = vld [vmem:[#allocation11 + $0x88] sm:$0xf]
    %v6537 = vld [vmem:[#allocation11 + $0x8c] sm:$0xf]
    %v6538 = vld [vmem:[#allocation11 + $0x90] sm:$0xf]
    %v6539 = vld [vmem:[#allocation11 + $0x94] sm:$0xf]
    %v6540 = vld [vmem:[#allocation11 + $0x98] sm:$0xf]
    %v6541 = vld [vmem:[#allocation11 + $0x9c] sm:$0xf]
    %v6542 = vld [vmem:[#allocation11 + $0xa0] sm:$0xf]
    %v6543 = vld [vmem:[#allocation11 + $0xa4] sm:$0xf]
    %v6544 = vld [vmem:[#allocation11 + $0xa8] sm:$0xf]
    %v6545 = vld [vmem:[#allocation11 + $0xac] sm:$0xf]
    %v6546 = vld [vmem:[#allocation11 + $0xb0] sm:$0xf]
    %v6547 = vld [vmem:[#allocation11 + $0xb4] sm:$0xf]
    %v6548 = vld [vmem:[#allocation11 + $0xb8] sm:$0xf]
    %v6549 = vld [vmem:[#allocation11 + $0xbc] sm:$0xf]
    %v6550 = vld [vmem:[#allocation11 + $0xc0] sm:$0xf]
    %v6551 = vld [vmem:[#allocation11 + $0xc4] sm:$0xf]
    %v6552 = vld [vmem:[#allocation11 + $0xc8] sm:$0xf]
    %v6553 = vld [vmem:[#allocation11 + $0xcc] sm:$0xf]
    %v6554 = vld [vmem:[#allocation11 + $0xd0] sm:$0xf]
    %v6555 = vld [vmem:[#allocation11 + $0xd4] sm:$0xf]
    %v6556 = vld [vmem:[#allocation11 + $0xd8] sm:$0xf]
    %v6557 = vld [vmem:[#allocation11 + $0xdc] sm:$0xf]
    %v6558 = vld [vmem:[#allocation11 + $0xe0] sm:$0xf]
    %v6559 = vld [vmem:[#allocation11 + $0xe4] sm:$0xf]
    %v6560 = vld [vmem:[#allocation11 + $0xe8] sm:$0xf]
    %v6561 = vld [vmem:[#allocation11 + $0xec] sm:$0xf]
    %v6562 = vld [vmem:[#allocation11 + $0xf0] sm:$0xf]
    %v6563 = vld [vmem:[#allocation11 + $0xf4] sm:$0xf]
    %v6564 = vld [vmem:[#allocation11 + $0xf8] sm:$0xf]
    %v6565 = vld [vmem:[#allocation11 + $0xfc] sm:$0xf]
    %v6566 = vld [vmem:[#allocation13] sm:$0x1]
    %v6568 = vperm.slane %v6566, 0
    %v6634 = vunpack.c.l.b16 %v6502
    %v6635 = vunpack.c.l.b16 %v6503
    %v6636 = vunpack.c.l.b16 %v6504
    %v6637 = vunpack.c.l.b16 %v6505
    %v6638 = vunpack.c.l.b16 %v6506
    %v6639 = vunpack.c.l.b16 %v6507
    %v6640 = vunpack.c.l.b16 %v6508
    %v6641 = vunpack.c.l.b16 %v6509
    %v6642 = vunpack.c.l.b16 %v6510
    %v6643 = vunpack.c.l.b16 %v6511
    %v6644 = vunpack.c.l.b16 %v6512
    %v6645 = vunpack.c.l.b16 %v6513
    %v6646 = vunpack.c.l.b16 %v6514
    %v6647 = vunpack.c.l.b16 %v6515
    %v6648 = vunpack.c.l.b16 %v6516
    %v6649 = vunpack.c.l.b16 %v6517
    %v6650 = vunpack.c.l.b16 %v6518
    %v6651 = vunpack.c.l.b16 %v6519
    %v6652 = vunpack.c.l.b16 %v6520
    %v6653 = vunpack.c.l.b16 %v6521
    %v6654 = vunpack.c.l.b16 %v6522
    %v6655 = vunpack.c.l.b16 %v6523
    %v6656 = vunpack.c.l.b16 %v6524
    %v6657 = vunpack.c.l.b16 %v6525
    %v6658 = vunpack.c.l.b16 %v6526
    %v6659 = vunpack.c.l.b16 %v6527
    %v6660 = vunpack.c.l.b16 %v6528
    %v6661 = vunpack.c.l.b16 %v6529
    %v6662 = vunpack.c.l.b16 %v6530
    %v6663 = vunpack.c.l.b16 %v6531
    %v6664 = vunpack.c.l.b16 %v6532
    %v6665 = vunpack.c.l.b16 %v6533
    %v6666 = vunpack.c.l.b16 %v6534
    %v6667 = vunpack.c.l.b16 %v6535
    %v6668 = vunpack.c.l.b16 %v6536
    %v6669 = vunpack.c.l.b16 %v6537
    %v6670 = vunpack.c.l.b16 %v6538
    %v6671 = vunpack.c.l.b16 %v6539
    %v6672 = vunpack.c.l.b16 %v6540
    %v6673 = vunpack.c.l.b16 %v6541
    %v6674 = vunpack.c.l.b16 %v6542
    %v6675 = vunpack.c.l.b16 %v6543
    %v6676 = vunpack.c.l.b16 %v6544
    %v6677 = vunpack.c.l.b16 %v6545
    %v6678 = vunpack.c.l.b16 %v6546
    %v6679 = vunpack.c.l.b16 %v6547
    %v6680 = vunpack.c.l.b16 %v6548
    %v6681 = vunpack.c.l.b16 %v6549
    %v6682 = vunpack.c.l.b16 %v6550
    %v6683 = vunpack.c.l.b16 %v6551
    %v6684 = vunpack.c.l.b16 %v6552
    %v6685 = vunpack.c.l.b16 %v6553
    %v6686 = vunpack.c.l.b16 %v6554
    %v6687 = vunpack.c.l.b16 %v6555
    %v6688 = vunpack.c.l.b16 %v6556
    %v6689 = vunpack.c.l.b16 %v6557
    %v6690 = vunpack.c.l.b16 %v6558
    %v6691 = vunpack.c.l.b16 %v6559
    %v6692 = vunpack.c.l.b16 %v6560
    %v6693 = vunpack.c.l.b16 %v6561
    %v6694 = vunpack.c.l.b16 %v6562
    %v6695 = vunpack.c.l.b16 %v6563
    %v6696 = vunpack.c.l.b16 %v6564
    %v6697 = vunpack.c.l.b16 %v6565
    %v6698 = vpack.c.b16 %v6635, %v6634
    %v6699 = vpack.c.b16 %v6637, %v6636
    %v6700 = vpack.c.b16 %v6639, %v6638
    %v6701 = vpack.c.b16 %v6641, %v6640
    %v6702 = vpack.c.b16 %v6643, %v6642
    %v6703 = vpack.c.b16 %v6645, %v6644
    %v6704 = vpack.c.b16 %v6647, %v6646
    %v6705 = vpack.c.b16 %v6649, %v6648
    %v6706 = vpack.c.b16 %v6651, %v6650
    %v6707 = vpack.c.b16 %v6653, %v6652
    %v6708 = vpack.c.b16 %v6655, %v6654
    %v6709 = vpack.c.b16 %v6657, %v6656
    %v6710 = vpack.c.b16 %v6659, %v6658
    %v6711 = vpack.c.b16 %v6661, %v6660
    %v6712 = vpack.c.b16 %v6663, %v6662
    %v6713 = vpack.c.b16 %v6665, %v6664
    %v6714 = vpack.c.b16 %v6667, %v6666
    %v6715 = vpack.c.b16 %v6669, %v6668
    %v6716 = vpack.c.b16 %v6671, %v6670
    %v6717 = vpack.c.b16 %v6673, %v6672
    %v6718 = vpack.c.b16 %v6675, %v6674
    %v6719 = vpack.c.b16 %v6677, %v6676
    %v6720 = vpack.c.b16 %v6679, %v6678
    %v6721 = vpack.c.b16 %v6681, %v6680
    %v6722 = vpack.c.b16 %v6683, %v6682
    %v6723 = vpack.c.b16 %v6685, %v6684
    %v6724 = vpack.c.b16 %v6687, %v6686
    %v6725 = vpack.c.b16 %v6689, %v6688
    %v6726 = vpack.c.b16 %v6691, %v6690
    %v6727 = vpack.c.b16 %v6693, %v6692
    %v6728 = vpack.c.b16 %v6695, %v6694
    %v6729 = vpack.c.b16 %v6697, %v6696
    %6762 = vmatpush.bf16.msra.mxu0 %v6705
    %6763 = vmatpush.bf16.msra.mxu0 %v6704
    %6764 = vmatpush.bf16.msra.mxu0 %v6703
    %6765 = vmatpush.bf16.msra.mxu0 %v6702
    %6766 = vmatpush.bf16.msra.mxu0 %v6701
    %6767 = vmatpush.bf16.msra.mxu0 %v6700
    %6768 = vmatpush.bf16.msra.mxu0 %v6699
    %6769 = vmatpush.bf16.msra.mxu0 %v6698
    %6770 = vmatmul.bf16.gmra.mxu0 %v6470
    %v6771 = vpop.f32.mrf.mxu0
    %v6772 = vadd.f32 %v6568, %v6771
    %v6773 = vpop.f32.mrf.mxu0
    %v6774 = vadd.f32 %v6568, %v6773
    %6775 = vmatmul.bf16.gmra.mxu0 %v6474
    %v6776 = vpop.f32.mrf.mxu0
    %v6777 = vadd.f32 %v6568, %v6776
    %v6778 = vpop.f32.mrf.mxu0
    %v6779 = vadd.f32 %v6568, %v6778
    %6780 = vmatmul.bf16.gmra.mxu0 %v6478
    %v6781 = vpop.f32.mrf.mxu0
    %v6782 = vadd.f32 %v6568, %v6781
    %v6783 = vpop.f32.mrf.mxu0
    %v6784 = vadd.f32 %v6568, %v6783
    %6785 = vmatmul.bf16.gmra.mxu0 %v6482
    %v6786 = vpop.f32.mrf.mxu0
    %v6787 = vadd.f32 %v6568, %v6786
    %v6788 = vpop.f32.mrf.mxu0
    %v6789 = vadd.f32 %v6568, %v6788
    %6790 = vmatmul.bf16.gmra.mxu0 %v6486
    %v6791 = vpop.f32.mrf.mxu0
    %v6792 = vadd.f32 %v6568, %v6791
    %v6793 = vpop.f32.mrf.mxu0
    %v6794 = vadd.f32 %v6568, %v6793
    %6795 = vmatmul.bf16.gmra.mxu0 %v6490
    %v6796 = vpop.f32.mrf.mxu0
    %v6797 = vadd.f32 %v6568, %v6796
    %v6798 = vpop.f32.mrf.mxu0
    %v6799 = vadd.f32 %v6568, %v6798
    %6800 = vmatmul.bf16.gmra.mxu0 %v6494
    %v6801 = vpop.f32.mrf.mxu0
    %v6802 = vadd.f32 %v6568, %v6801
    %v6803 = vpop.f32.mrf.mxu0
    %v6804 = vadd.f32 %v6568, %v6803
    %6805 = vmatmul.bf16.gmra.mxu0 %v6498
    %v6806 = vpop.f32.mrf.mxu0
    %v6807 = vadd.f32 %v6568, %v6806
    %v6808 = vpop.f32.mrf.mxu0
    %v6809 = vadd.f32 %v6568, %v6808
    %6810 = vdwg.mxu0
    %6811 = vmatpush.bf16.msra.mxu0 %v6713
    %6812 = vmatpush.bf16.msra.mxu0 %v6712
    %6813 = vmatpush.bf16.msra.mxu0 %v6711
    %6814 = vmatpush.bf16.msra.mxu0 %v6710
    %6815 = vmatpush.bf16.msra.mxu0 %v6709
    %6816 = vmatpush.bf16.msra.mxu0 %v6708
    %6817 = vmatpush.bf16.msra.mxu0 %v6707
    %6818 = vmatpush.bf16.msra.mxu0 %v6706
    %6819 = vmatmul.bf16.gmra.mxu0 %v6471
    %v6820 = vpop.f32.mrf.mxu0
    %v6821 = vadd.f32 %v6772, %v6820
    %v6822 = vpop.f32.mrf.mxu0
    %v6823 = vadd.f32 %v6774, %v6822
    %6824 = vmatmul.bf16.gmra.mxu0 %v6475
    %v6825 = vpop.f32.mrf.mxu0
    %v6826 = vadd.f32 %v6777, %v6825
    %v6827 = vpop.f32.mrf.mxu0
    %v6828 = vadd.f32 %v6779, %v6827
    %6829 = vmatmul.bf16.gmra.mxu0 %v6479
    %v6830 = vpop.f32.mrf.mxu0
    %v6831 = vadd.f32 %v6782, %v6830
    %v6832 = vpop.f32.mrf.mxu0
    %v6833 = vadd.f32 %v6784, %v6832
    %6834 = vmatmul.bf16.gmra.mxu0 %v6483
    %v6835 = vpop.f32.mrf.mxu0
    %v6836 = vadd.f32 %v6787, %v6835
    %v6837 = vpop.f32.mrf.mxu0
    %v6838 = vadd.f32 %v6789, %v6837
    %6839 = vmatmul.bf16.gmra.mxu0 %v6487
    %v6840 = vpop.f32.mrf.mxu0
    %v6841 = vadd.f32 %v6792, %v6840
    %v6842 = vpop.f32.mrf.mxu0
    %v6843 = vadd.f32 %v6794, %v6842
    %6844 = vmatmul.bf16.gmra.mxu0 %v6491
    %v6845 = vpop.f32.mrf.mxu0
    %v6846 = vadd.f32 %v6797, %v6845
    %v6847 = vpop.f32.mrf.mxu0
    %v6848 = vadd.f32 %v6799, %v6847
    %6849 = vmatmul.bf16.gmra.mxu0 %v6495
    %v6850 = vpop.f32.mrf.mxu0
    %v6851 = vadd.f32 %v6802, %v6850
    %v6852 = vpop.f32.mrf.mxu0
    %v6853 = vadd.f32 %v6804, %v6852
    %6854 = vmatmul.bf16.gmra.mxu0 %v6499
    %v6855 = vpop.f32.mrf.mxu0
    %v6856 = vadd.f32 %v6807, %v6855
    %v6857 = vpop.f32.mrf.mxu0
    %v6858 = vadd.f32 %v6809, %v6857
    %6859 = vdwg.mxu0
    %6860 = vmatpush.bf16.msra.mxu0 %v6721
    %6861 = vmatpush.bf16.msra.mxu0 %v6720
    %6862 = vmatpush.bf16.msra.mxu0 %v6719
    %6863 = vmatpush.bf16.msra.mxu0 %v6718
    %6864 = vmatpush.bf16.msra.mxu0 %v6717
    %6865 = vmatpush.bf16.msra.mxu0 %v6716
    %6866 = vmatpush.bf16.msra.mxu0 %v6715
    %6867 = vmatpush.bf16.msra.mxu0 %v6714
    %6868 = vmatmul.bf16.gmra.mxu0 %v6472
    %v6869 = vpop.f32.mrf.mxu0
    %v6870 = vadd.f32 %v6821, %v6869
    %v6871 = vpop.f32.mrf.mxu0
    %v6872 = vadd.f32 %v6823, %v6871
    %6873 = vmatmul.bf16.gmra.mxu0 %v6476
    %v6874 = vpop.f32.mrf.mxu0
    %v6875 = vadd.f32 %v6826, %v6874
    %v6876 = vpop.f32.mrf.mxu0
    %v6877 = vadd.f32 %v6828, %v6876
    %6878 = vmatmul.bf16.gmra.mxu0 %v6480
    %v6879 = vpop.f32.mrf.mxu0
    %v6880 = vadd.f32 %v6831, %v6879
    %v6881 = vpop.f32.mrf.mxu0
    %v6882 = vadd.f32 %v6833, %v6881
    %6883 = vmatmul.bf16.gmra.mxu0 %v6484
    %v6884 = vpop.f32.mrf.mxu0
    %v6885 = vadd.f32 %v6836, %v6884
    %v6886 = vpop.f32.mrf.mxu0
    %v6887 = vadd.f32 %v6838, %v6886
    %6888 = vmatmul.bf16.gmra.mxu0 %v6488
    %v6889 = vpop.f32.mrf.mxu0
    %v6890 = vadd.f32 %v6841, %v6889
    %v6891 = vpop.f32.mrf.mxu0
    %v6892 = vadd.f32 %v6843, %v6891
    %6893 = vmatmul.bf16.gmra.mxu0 %v6492
    %v6894 = vpop.f32.mrf.mxu0
    %v6895 = vadd.f32 %v6846, %v6894
    %v6896 = vpop.f32.mrf.mxu0
    %v6897 = vadd.f32 %v6848, %v6896
    %6898 = vmatmul.bf16.gmra.mxu0 %v6496
    %v6899 = vpop.f32.mrf.mxu0
    %v6900 = vadd.f32 %v6851, %v6899
    %v6901 = vpop.f32.mrf.mxu0
    %v6902 = vadd.f32 %v6853, %v6901
    %6903 = vmatmul.bf16.gmra.mxu0 %v6500
    %v6904 = vpop.f32.mrf.mxu0
    %v6905 = vadd.f32 %v6856, %v6904
    %v6906 = vpop.f32.mrf.mxu0
    %v6907 = vadd.f32 %v6858, %v6906
    %6908 = vdwg.mxu0
    %6909 = vmatpush.bf16.msra.mxu0 %v6729
    %6910 = vmatpush.bf16.msra.mxu0 %v6728
    %6911 = vmatpush.bf16.msra.mxu0 %v6727
    %6912 = vmatpush.bf16.msra.mxu0 %v6726
    %6913 = vmatpush.bf16.msra.mxu0 %v6725
    %6914 = vmatpush.bf16.msra.mxu0 %v6724
    %6915 = vmatpush.bf16.msra.mxu0 %v6723
    %6916 = vmatpush.bf16.msra.mxu0 %v6722
    %6917 = vmatmul.bf16.gmra.mxu0 %v6473
    %v6918 = vpop.f32.mrf.mxu0
    %v6919 = vadd.f32 %v6870, %v6918
    %v6920 = vpop.f32.mrf.mxu0
    %v6921 = vadd.f32 %v6872, %v6920
    %6922 = vmatmul.bf16.gmra.mxu0 %v6477
    %v6923 = vpop.f32.mrf.mxu0
    %v6924 = vadd.f32 %v6875, %v6923
    %v6925 = vpop.f32.mrf.mxu0
    %v6926 = vadd.f32 %v6877, %v6925
    %6927 = vmatmul.bf16.gmra.mxu0 %v6481
    %v6928 = vpop.f32.mrf.mxu0
    %v6929 = vadd.f32 %v6880, %v6928
    %v6930 = vpop.f32.mrf.mxu0
    %v6931 = vadd.f32 %v6882, %v6930
    %6932 = vmatmul.bf16.gmra.mxu0 %v6485
    %v6933 = vpop.f32.mrf.mxu0
    %v6934 = vadd.f32 %v6885, %v6933
    %v6935 = vpop.f32.mrf.mxu0
    %v6936 = vadd.f32 %v6887, %v6935
    %6937 = vmatmul.bf16.gmra.mxu0 %v6489
    %v6938 = vpop.f32.mrf.mxu0
    %v6939 = vadd.f32 %v6890, %v6938
    %v6940 = vpop.f32.mrf.mxu0
    %v6941 = vadd.f32 %v6892, %v6940
    %6942 = vmatmul.bf16.gmra.mxu0 %v6493
    %v6943 = vpop.f32.mrf.mxu0
    %v6944 = vadd.f32 %v6895, %v6943
    %v6945 = vpop.f32.mrf.mxu0
    %v6946 = vadd.f32 %v6897, %v6945
    %6947 = vmatmul.bf16.gmra.mxu0 %v6497
    %v6948 = vpop.f32.mrf.mxu0
    %v6949 = vadd.f32 %v6900, %v6948
    %v6950 = vpop.f32.mrf.mxu0
    %v6951 = vadd.f32 %v6902, %v6950
    %6952 = vmatmul.bf16.gmra.mxu0 %v6501
    %v6953 = vpop.f32.mrf.mxu0
    %v6954 = vadd.f32 %v6905, %v6953
    %v6955 = vpop.f32.mrf.mxu0
    %v6956 = vadd.f32 %v6907, %v6955
    %6957 = vdwg.mxu0
    %v6958 = vlaneseq
    %v6959 = vand.u32 %v6958, 127
    %vm6960 = vcmp.lt.s32.totalorder %v6959, 2
    %v6961 = vsel %vm6960, %v6919, -1e+30
    %v6962 = vsel %vm6960, %v6921, -1e+30
    %v6963 = vsel %vm6960, %v6924, -1e+30
    %v6964 = vsel %vm6960, %v6926, -1e+30
    %v6965 = vsel %vm6960, %v6929, -1e+30
    %v6966 = vsel %vm6960, %v6931, -1e+30
    %v6967 = vsel %vm6960, %v6934, -1e+30
    %v6968 = vsel %vm6960, %v6936, -1e+30
    %v6969 = vsel %vm6960, %v6939, -1e+30
    %v6970 = vsel %vm6960, %v6941, -1e+30
    %v6971 = vsel %vm6960, %v6944, -1e+30
    %v6972 = vsel %vm6960, %v6946, -1e+30
    %v6973 = vsel %vm6960, %v6949, -1e+30
    %v6974 = vsel %vm6960, %v6951, -1e+30
    %v6975 = vsel %vm6960, %v6954, -1e+30
    %v6976 = vsel %vm6960, %v6956, -1e+30
    %6977 = vmax.xlane.f32.xlu0 %v6961
    %v6978 = vpop.xlane.xlu0 %6977
    %6979 = vmax.xlane.f32.xlu0 %v6962
    %v6980 = vpop.xlane.xlu0 %6979
    %6981 = vmax.xlane.f32.xlu0 %v6963
    %v6982 = vpop.xlane.xlu0 %6981
    %6983 = vmax.xlane.f32.xlu0 %v6964
    %v6984 = vpop.xlane.xlu0 %6983
    %6985 = vmax.xlane.f32.xlu0 %v6965
    %v6986 = vpop.xlane.xlu0 %6985
    %6987 = vmax.xlane.f32.xlu0 %v6966
    %v6988 = vpop.xlane.xlu0 %6987
    %6989 = vmax.xlane.f32.xlu0 %v6967
    %v6990 = vpop.xlane.xlu0 %6989
    %6991 = vmax.xlane.f32.xlu0 %v6968
    %v6992 = vpop.xlane.xlu0 %6991
    %6993 = vmax.xlane.f32.xlu0 %v6969
    %v6994 = vpop.xlane.xlu0 %6993
    %6995 = vmax.xlane.f32.xlu0 %v6970
    %v6996 = vpop.xlane.xlu0 %6995
    %6997 = vmax.xlane.f32.xlu0 %v6971
    %v6998 = vpop.xlane.xlu0 %6997
    %6999 = vmax.xlane.f32.xlu0 %v6972
    %v7000 = vpop.xlane.xlu0 %6999
    %7001 = vmax.xlane.f32.xlu0 %v6973
    %v7002 = vpop.xlane.xlu0 %7001
    %7003 = vmax.xlane.f32.xlu0 %v6974
    %v7004 = vpop.xlane.xlu0 %7003
    %7005 = vmax.xlane.f32.xlu0 %v6975
    %v7006 = vpop.xlane.xlu0 %7005
    %7007 = vmax.xlane.f32.xlu0 %v6976
    %v7008 = vpop.xlane.xlu0 %7007
    %v7009 = vsub.f32 %v6961, %v6978
    %v7010 = vsub.f32 %v6962, %v6980
    %v7011 = vsub.f32 %v6963, %v6982
    %v7012 = vsub.f32 %v6964, %v6984
    %v7013 = vsub.f32 %v6965, %v6986
    %v7014 = vsub.f32 %v6966, %v6988
    %v7015 = vsub.f32 %v6967, %v6990
    %v7016 = vsub.f32 %v6968, %v6992
    %v7017 = vsub.f32 %v6969, %v6994
    %v7018 = vsub.f32 %v6970, %v6996
    %v7019 = vsub.f32 %v6971, %v6998
    %v7020 = vsub.f32 %v6972, %v7000
    %v7021 = vsub.f32 %v6973, %v7002
    %v7022 = vsub.f32 %v6974, %v7004
    %v7023 = vsub.f32 %v6975, %v7006
    %v7024 = vsub.f32 %v6976, %v7008
    %v7025 = vmul.f32 %v7009, 1.442695
    %v7026 = vpow.pop %v7025
    %v7027 = vmul.f32 %v7010, 1.442695
    %v7028 = vpow.pop %v7027
    %v7029 = vmul.f32 %v7011, 1.442695
    %v7030 = vpow.pop %v7029
    %v7031 = vmul.f32 %v7012, 1.442695
    %v7032 = vpow.pop %v7031
    %v7033 = vmul.f32 %v7013, 1.442695
    %v7034 = vpow.pop %v7033
    %v7035 = vmul.f32 %v7014, 1.442695
    %v7036 = vpow.pop %v7035
    %v7037 = vmul.f32 %v7015, 1.442695
    %v7038 = vpow.pop %v7037
    %v7039 = vmul.f32 %v7016, 1.442695
    %v7040 = vpow.pop %v7039
    %v7041 = vmul.f32 %v7017, 1.442695
    %v7042 = vpow.pop %v7041
    %v7043 = vmul.f32 %v7018, 1.442695
    %v7044 = vpow.pop %v7043
    %v7045 = vmul.f32 %v7019, 1.442695
    %v7046 = vpow.pop %v7045
    %v7047 = vmul.f32 %v7020, 1.442695
    %v7048 = vpow.pop %v7047
    %v7049 = vmul.f32 %v7021, 1.442695
    %v7050 = vpow.pop %v7049
    %v7051 = vmul.f32 %v7022, 1.442695
    %v7052 = vpow.pop %v7051
    %v7053 = vmul.f32 %v7023, 1.442695
    %v7054 = vpow.pop %v7053
    %v7055 = vmul.f32 %v7024, 1.442695
    %v7056 = vpow.pop %v7055
    %7057 = vadd.xlane.f32.xlu0 %v7026
    %v7058 = vpop.xlane.xlu0 %7057
    %7059 = vadd.xlane.f32.xlu0 %v7028
    %v7060 = vpop.xlane.xlu0 %7059
    %7061 = vadd.xlane.f32.xlu0 %v7030
    %v7062 = vpop.xlane.xlu0 %7061
    %7063 = vadd.xlane.f32.xlu0 %v7032
    %v7064 = vpop.xlane.xlu0 %7063
    %7065 = vadd.xlane.f32.xlu0 %v7034
    %v7066 = vpop.xlane.xlu0 %7065
    %7067 = vadd.xlane.f32.xlu0 %v7036
    %v7068 = vpop.xlane.xlu0 %7067
    %7069 = vadd.xlane.f32.xlu0 %v7038
    %v7070 = vpop.xlane.xlu0 %7069
    %7071 = vadd.xlane.f32.xlu0 %v7040
    %v7072 = vpop.xlane.xlu0 %7071
    %7073 = vadd.xlane.f32.xlu0 %v7042
    %v7074 = vpop.xlane.xlu0 %7073
    %7075 = vadd.xlane.f32.xlu0 %v7044
    %v7076 = vpop.xlane.xlu0 %7075
    %7077 = vadd.xlane.f32.xlu0 %v7046
    %v7078 = vpop.xlane.xlu0 %7077
    %7079 = vadd.xlane.f32.xlu0 %v7048
    %v7080 = vpop.xlane.xlu0 %7079
    %7081 = vadd.xlane.f32.xlu0 %v7050
    %v7082 = vpop.xlane.xlu0 %7081
    %7083 = vadd.xlane.f32.xlu0 %v7052
    %v7084 = vpop.xlane.xlu0 %7083
    %7085 = vadd.xlane.f32.xlu0 %v7054
    %v7086 = vpop.xlane.xlu0 %7085
    %7087 = vadd.xlane.f32.xlu0 %v7056
    %v7088 = vpop.xlane.xlu0 %7087
    %v7089 = vlog2.pop %v7058
    %v7090 = vmul.f32 %v7089, 0.6931472
    %v7091 = vlog2.pop %v7060
    %v7092 = vmul.f32 %v7091, 0.6931472
    %v7093 = vlog2.pop %v7062
    %v7094 = vmul.f32 %v7093, 0.6931472
    %v7095 = vlog2.pop %v7064
    %v7096 = vmul.f32 %v7095, 0.6931472
    %v7097 = vlog2.pop %v7066
    %v7098 = vmul.f32 %v7097, 0.6931472
    %v7099 = vlog2.pop %v7068
    %v7100 = vmul.f32 %v7099, 0.6931472
    %v7101 = vlog2.pop %v7070
    %v7102 = vmul.f32 %v7101, 0.6931472
    %v7103 = vlog2.pop %v7072
    %v7104 = vmul.f32 %v7103, 0.6931472
    %v7105 = vlog2.pop %v7074
    %v7106 = vmul.f32 %v7105, 0.6931472
    %v7107 = vlog2.pop %v7076
    %v7108 = vmul.f32 %v7107, 0.6931472
    %v7109 = vlog2.pop %v7078
    %v7110 = vmul.f32 %v7109, 0.6931472
    %v7111 = vlog2.pop %v7080
    %v7112 = vmul.f32 %v7111, 0.6931472
    %v7113 = vlog2.pop %v7082
    %v7114 = vmul.f32 %v7113, 0.6931472
    %v7115 = vlog2.pop %v7084
    %v7116 = vmul.f32 %v7115, 0.6931472
    %v7117 = vlog2.pop %v7086
    %v7118 = vmul.f32 %v7117, 0.6931472
    %v7119 = vlog2.pop %v7088
    %v7120 = vmul.f32 %v7119, 0.6931472
    %v7121 = vsub.f32 %v7009, %v7090
    %v7122 = vsub.f32 %v7010, %v7092
    %v7123 = vsub.f32 %v7011, %v7094
    %v7124 = vsub.f32 %v7012, %v7096
    %v7125 = vsub.f32 %v7013, %v7098
    %v7126 = vsub.f32 %v7014, %v7100
    %v7127 = vsub.f32 %v7015, %v7102
    %v7128 = vsub.f32 %v7016, %v7104
    %v7129 = vsub.f32 %v7017, %v7106
    %v7130 = vsub.f32 %v7018, %v7108
    %v7131 = vsub.f32 %v7019, %v7110
    %v7132 = vsub.f32 %v7020, %v7112
    %v7133 = vsub.f32 %v7021, %v7114
    %v7134 = vsub.f32 %v7022, %v7116
    %v7135 = vsub.f32 %v7023, %v7118
    %v7136 = vsub.f32 %v7024, %v7120
    %7137 = vst [vmem:[#allocation14] sm:$0xff] %v7121
    %7138 = vst [vmem:[#allocation14 + $0x8] sm:$0xff] %v7122
    %7139 = vst [vmem:[#allocation14 + $0x10] sm:$0xff] %v7123
    %7140 = vst [vmem:[#allocation14 + $0x18] sm:$0xff] %v7124
    %7141 = vst [vmem:[#allocation14 + $0x20] sm:$0xff] %v7125
    %7142 = vst [vmem:[#allocation14 + $0x28] sm:$0xff] %v7126
    %7143 = vst [vmem:[#allocation14 + $0x30] sm:$0xff] %v7127
    %7144 = vst [vmem:[#allocation14 + $0x38] sm:$0xff] %v7128
    %7145 = vst [vmem:[#allocation14 + $0x40] sm:$0xff] %v7129
    %7146 = vst [vmem:[#allocation14 + $0x48] sm:$0xff] %v7130
    %7147 = vst [vmem:[#allocation14 + $0x50] sm:$0xff] %v7131
    %7148 = vst [vmem:[#allocation14 + $0x58] sm:$0xff] %v7132
    %7149 = vst [vmem:[#allocation14 + $0x60] sm:$0xff] %v7133
    %7150 = vst [vmem:[#allocation14 + $0x68] sm:$0xff] %v7134
    %7151 = vst [vmem:[#allocation14 + $0x70] sm:$0xff] %v7135
    %7152 = vst [vmem:[#allocation14 + $0x78] sm:$0xff] %v7136
    // Predicated region
    $region58: #{tpu_custom_call.1} parent=1 // pred_check
      _
    $region59: #{tpu_custom_call.1} parent=1 // pred_check_branch
      %7154 = sbr.rel (0) target = $region61
    $region60: #{tpu_custom_call.1} parent=1 // pred_region
      %7156 = vsyncadd [#allocation4], 0
      %s7157 = sshll.u32 [#allocation14], 4
      %s7158 = int_to_ptr.vmem [resolvable:$true] %s7157
      %s7159 = sshll.u32 %s7, 4
      %s7160 = int_to_ptr.hbm [resolvable:$true] %s7159
      %7165 = dma.vmem_to_hbm [thread:$0]  %s7158, 2048, %s7160, [#allocation4], 128, 128, 8
    $region61: #{tpu_custom_call.1} parent=1 // pred_fallthru
      _
    // Predicated region
    $region62: #{tpu_custom_call.1} parent=1 // pred_check
      _
    $region63: #{tpu_custom_call.1} parent=1 // pred_check_branch
      %7167 = sbr.rel (0) target = $region65
    $region64: #{tpu_custom_call.1} parent=1 // pred_region
      %7169 = dma.done [#allocation4], 2048
    $region65: #{tpu_custom_call.1} parent=1 // pred_fallthru
      _
    %7170 = vsyncpa [#allocation3], 1
    %7171 = vsyncpa [#allocation6], 1
    %7172 = vsyncpa [#allocation9], 1
    %7173 = vsyncpa [#allocation12], 1
    %7174 = vsyncpa [#allocation4], 1

</llo_original>
